<compile_context>
chip_gen: v5e
topology: v5e:2x2
jax: 0.10.0
libtpu: 0.0.40
codegen_flags: <defaults>
</compile_context>

<pallas_src>
import functools

import jax
import jax.numpy as jnp
from jax import lax
from jax.experimental import pallas as pl
from jax.experimental.pallas import tpu as pltpu

_BN_EPS = 1e-5
_MAX_TILE_ROWS = 8192           # cap on T*Wp rows per grid step (value sizes)


def _round_up(x, m):
    return ((x + m - 1) // m) * m


def _pad_to(a, target, axis=-1):
    """Zero-pad `a` along `axis` up to size `target`."""
    pad = target - a.shape[axis]
    if pad <= 0:
        return a
    cfg = [(0, 0)] * a.ndim
    cfg[axis] = (0, pad)
    return jnp.pad(a, cfg)


def _vmem_caps():
    """(vmem_limit_bytes, block-buffer budget) derived from physical VMEM."""
    try:
        cap = int(pltpu.get_tpu_info().vmem_capacity_bytes)
    except Exception:
        cap = 64 * 1024 * 1024           # conservative default (v7x-sized)
    limit = max(min(int(cap * 0.70), 110 * 1024 * 1024), 32 * 1024 * 1024)
    budget = max(int(cap * 0.42), 16 * 1024 * 1024)
    return limit, budget


def _pick_up_tile_rows(H, W, Ck, Cp, budget):
    """Largest divisor T of H whose upconv per-step footprint fits the budget."""
    best = 1
    for T in range(1, H + 1):
        if H % T:
            continue
        if T * W > _MAX_TILE_ROWS:
            break
        inb = T * W * Ck * 2
        wgt = Ck * 4 * Cp * 2
        outb = T * 2 * W * 2 * Cp * 2
        yv = T * W * 4 * Cp * 4
        tot = 2 * (inb + wgt + outb) + yv + inb
        if tot <= budget:
            best = T
    return best


def _pick_conv_tile_rows(Hs, Wp, Ck, Cout, budget):
    """Largest divisor T of Hs whose conv per-step footprint fits the budget."""
    best = 1
    for T in range(1, Hs + 1):
        if Hs % T:
            continue
        if T * Wp > _MAX_TILE_ROWS:
            break
        slab = (T + 3) * Wp * Ck * 2
        outb = T * Wp * Cout * 2
        wgt = 9 * Ck * Cout * 2
        accv = T * Wp * Cout * 4
        tmp = T * Wp * max(Ck, Cout) * 2 + T * Wp * Cout * 4
        tot = 2 * (slab + outb + wgt) + accv + tmp
        if tot <= budget:
            best = T
    return best


# ---------------------------------------------------------------------------
# Kernel 1: ConvTranspose2d(k=2, s=2) with fused pixel shuffle
# ---------------------------------------------------------------------------
def _upconv2x2(x, w_up, b_up, *, tile_h, vmem_limit):
    """x: (N, H, W, Ck) bf16; w_up: (Ck, 4*Cp) bf16 (cols ordered dh,dw,c);
    b_up: (1, 4*Cp) f32.  Returns (N, 2H, 2W, Cp) bf16."""
    N, H, W, Ck = x.shape
    Cp4 = w_up.shape[1]
    Cp = Cp4 // 4
    ht = H // tile_h

    def kernel(x_ref, w_ref, b_ref, o_ref):
        T, Wk = x_ref.shape[1], x_ref.shape[2]
        xv = x_ref[0].reshape(T * Wk, x_ref.shape[3])
        y = jnp.dot(xv, w_ref[...], preferred_element_type=jnp.float32) + b_ref[...]
        # Columns are (dh, dw, c)-ordered; (dw, c) is contiguous with the output
        # lane axis, so each dh half writes straight into its output slice.
        for dh in range(2):
            blk = y[:, dh * 2 * Cp:(dh + 1) * 2 * Cp].reshape(T, Wk, 2 * Cp)
            o_ref[:, dh, :, :] = blk.astype(o_ref.dtype)

    out = pl.pallas_call(
        kernel,
        grid=(N, ht),
        in_specs=[
            pl.BlockSpec((1, tile_h, W, Ck), lambda n, i: (n, i, 0, 0)),
            pl.BlockSpec((Ck, Cp4), lambda n, i: (0, 0)),
            pl.BlockSpec((1, Cp4), lambda n, i: (0, 0)),
        ],
        out_specs=pl.BlockSpec((tile_h, 2, W, 2 * Cp),
                               lambda n, i: (n * ht + i, 0, 0, 0)),
        out_shape=jax.ShapeDtypeStruct((N * H, 2, W, 2 * Cp), jnp.bfloat16),
        compiler_params=pltpu.CompilerParams(
            dimension_semantics=("parallel", "parallel"),
            vmem_limit_bytes=vmem_limit,
        ),
    )(x, w_up, b_up)
    # (N*H, 2, W, 2*Cp) is exactly row-major (N, 2H, 2W, Cp): free reshape.
    return out.reshape(N, 2 * H, 2 * W, Cp)


# ---------------------------------------------------------------------------
# Kernel 2: 3x3 SAME conv (+ bias) over a flattened halo slab, with per-tile
#           BatchNorm batch statistics (sum, sumsq over valid columns).
# ---------------------------------------------------------------------------
def _conv3x3_kernel(slab_ref, w_ref, b_ref, o_ref, stats_ref, *, T, Wp, Wv):
    # slab_ref: (1, 1, (T+3)*Wp, Ck) bf16 (rows flattened, zero ring included)
    # w_ref: (3, 3, Ck, Cout) bf16; b_ref: (1, Cout) f32
    # o_ref: (1, T, Wp, Cout) bf16 (cols >= Wv are don't-care)
    # stats_ref: (1, 1, 2, Cout) f32
    TWp = T * Wp
    Cout = o_ref.shape[-1]

    # Full padded-width accumulation: each tap is one contiguous row-window
    # matmul at static offset kh*Wp+kw (no per-tap relayout, no concat, no
    # explicit zero-fill of the accumulator).
    acc = None
    for kh in range(3):
        for kw in range(3):
            lhs = slab_ref[0, 0, pl.ds(kh * Wp + kw, TWp), :]
            part = jnp.dot(lhs, w_ref[kh, kw], preferred_element_type=jnp.float32)
            acc = part if acc is None else acc + part
    y = acc + b_ref[...]                                        # (TWp, Cout) f32

    o_ref[...] = y.reshape(1, T, Wp, Cout).astype(o_ref.dtype)  # lane-dense store

    # BN batch statistics over the Wv valid columns only (the ring/garbage
    # columns are masked exactly once, here).
    col = lax.broadcasted_iota(jnp.int32, (TWp, 1), 0) % Wp
    ym = jnp.where(col < Wv, y, 0.0)
    ssum = jnp.sum(ym, axis=0, keepdims=True)
    ssq = jnp.sum(ym * ym, axis=0, keepdims=True)
    stats_ref[...] = jnp.concatenate([ssum, ssq], axis=0).reshape(1, 1, 2, Cout)


def _conv3x3_bn_stats(slab, w, bias, *, T, Wp, Wv, Hs, vmem_limit):
    """slab: (N, nt, (T+3)*Wp, Ck) bf16; w: (3,3,Ck,Cout) bf16; bias: (1,Cout) f32.
    Returns y: (N, Hs, Wp, Cout) bf16 (columns >= Wv are garbage) and per-tile
    BN stats (N, nt, 2, Cout) f32."""
    N, nt, S, Ck = slab.shape
    Cout = w.shape[-1]
    kern = functools.partial(_conv3x3_kernel, T=T, Wp=Wp, Wv=Wv)

    y, stats = pl.pallas_call(
        kern,
        grid=(N, nt),
        in_specs=[
            pl.BlockSpec((1, 1, S, Ck), lambda n, i: (n, i, 0, 0)),
            pl.BlockSpec((3, 3, Ck, Cout), lambda n, i: (0, 0, 0, 0)),
            pl.BlockSpec((1, Cout), lambda n, i: (0, 0)),
        ],
        out_specs=(
            pl.BlockSpec((1, T, Wp, Cout), lambda n, i: (n, i, 0, 0)),
            pl.BlockSpec((1, 1, 2, Cout), lambda n, i: (n, i, 0, 0)),
        ),
        out_shape=(
            jax.ShapeDtypeStruct((N, Hs, Wp, Cout), jnp.bfloat16),
            jax.ShapeDtypeStruct((N, nt, 2, Cout), jnp.float32),
        ),
        compiler_params=pltpu.CompilerParams(
            # Stats are per (image, tile) -> no cross-step accumulator, so both
            # grid axes are parallel (megacore-friendly even at N=1).
            dimension_semantics=("parallel", "parallel"),
            vmem_limit_bytes=vmem_limit,
        ),
    )(slab, w, bias)
    return y, stats


# ---------------------------------------------------------------------------
# XLA glue: halo-slab layout build and BN scale/shift from accumulated stats.
# ---------------------------------------------------------------------------
def _build_slab(f, T):
    """f: (N, Hs, Ws, C) -> flattened halo slabs (N, nt, (T+3)*(Ws+2), C).

    Tile i holds rows [i*T-1, i*T+T+1] of f with a zero ring (plus one extra
    trailing row so every in-kernel shifted row-window stays in bounds); rows
    and the width ring are flattened so the kernel takes contiguous slices."""
    N, Hs, Ws, C = f.shape
    nt = Hs // T
    Wp = Ws + 2
    fp = jnp.pad(f, ((0, 0), (1, 2), (1, 1), (0, 0)))
    tiles = [fp[:, i * T:i * T + T + 3] for i in range(nt)]
    slab = jnp.stack(tiles, axis=1)                  # (N, nt, T+3, Wp, C)
    return slab.reshape(N, nt, (T + 3) * Wp, C)


def _bn_scale_shift(stats, gamma, beta, count, Cp):
    """Training-mode BatchNorm (biased var) -> per-channel scale/shift."""
    s = jnp.sum(stats, axis=(0, 1))                  # (2, Cp)
    mean = s[0] / count
    # TODO(synk): E[x^2]-E[x]^2 in f32 can cancel for large-mean activations; a
    # per-tile mean-shifted accumulation would be more robust.
    var = jnp.maximum(s[1] / count - mean * mean, 0.0)
    scale = _pad_to(gamma, Cp) * lax.rsqrt(var + _BN_EPS)
    shift = _pad_to(beta, Cp) - mean * scale
    return scale, shift


# ---------------------------------------------------------------------------
# Public forward
# ---------------------------------------------------------------------------
def decoder_block_forward(params, inputs_nchw, skip_nchw):
    x = jnp.transpose(inputs_nchw, (0, 2, 3, 1)).astype(jnp.float32)    # NHWC
    skip = jnp.transpose(skip_nchw, (0, 2, 3, 1)).astype(jnp.float32)   # NHWC
    N, H, W, Cin = x.shape
    Hs, Ws = skip.shape[1], skip.shape[2]
    out_c = params["up_w"].shape[1]

    Cp = _round_up(out_c, 128)             # produced channels (lane dense)
    Ck1 = _round_up(2 * out_c, 128)        # conv1 contraction depth ([up | skip])
    Cku = _round_up(Cin, 128)              # upconv contraction depth (lane dense)
    Wp = Ws + 2                            # conv working width (1-pixel ring)
    vmem_limit, budget = _vmem_caps()

    # --- parameter prep (bf16 MXU operands) ---------------------------------
    # ConvTranspose2d weight (in_c, out_c, 2, 2) -> (Cku, 4*Cp), cols (dh,dw,c)
    w_up = jnp.transpose(params["up_w"], (0, 2, 3, 1))
    w_up = _pad_to(_pad_to(w_up, Cp, axis=-1), Cku, axis=0)
    w_up = w_up.reshape(Cku, 4 * Cp).astype(jnp.bfloat16)
    b_up = jnp.tile(_pad_to(params["up_b"], Cp), 4).reshape(1, 4 * Cp)
    b_up = b_up.astype(jnp.float32)

    # conv weights (O, I, 3, 3) -> (3, 3, I_pad, O_pad)
    w1 = jnp.transpose(params["c1_w"], (2, 3, 1, 0))
    w1 = _pad_to(_pad_to(w1, Cp, axis=-1), Ck1, axis=2).astype(jnp.bfloat16)
    b1 = _pad_to(params["c1_b"], Cp).reshape(1, Cp).astype(jnp.float32)

    w2 = jnp.transpose(params["c2_w"], (2, 3, 1, 0))
    w2 = _pad_to(_pad_to(w2, Cp, axis=-1), Cp, axis=2).astype(jnp.bfloat16)
    b2 = _pad_to(params["c2_b"], Cp).reshape(1, Cp).astype(jnp.float32)

    # --- ConvTranspose2d(k=2, s=2): pixel shuffle fused into output layout ---
    x_in = _pad_to(x, Cku).astype(jnp.bfloat16)
    t_up = _pick_up_tile_rows(H, W, Cku, Cp, budget)
    y = _upconv2x2(x_in, w_up, b_up, tile_h=t_up, vmem_limit=vmem_limit)

    # --- F.pad(up(x)) + channel concat with skip, packed as one K-block ------
    dY, dX = Hs - 2 * H, Ws - 2 * W
    y_fit = jnp.pad(y[..., :out_c],
                    ((0, 0), (dY // 2, dY - dY // 2),
                     (dX // 2, dX - dX // 2), (0, 0)))
    f1 = _pad_to(jnp.concatenate([y_fit, skip.astype(jnp.bfloat16)], axis=-1),
                 Ck1).astype(jnp.bfloat16)
    T1 = _pick_conv_tile_rows(Hs, Wp, Ck1, Cp, budget)
    slab1 = _build_slab(f1, T1)

    # --- conv1 (+ BN1 batch statistics) --------------------------------------
    y1, st1 = _conv3x3_bn_stats(slab1, w1, b1, T=T1, Wp=Wp, Wv=Ws, Hs=Hs,
                                vmem_limit=vmem_limit)
    sc1, sh1 = _bn_scale_shift(st1, params["bn1_g"], params["bn1_b"],
                               N * Hs * Ws, Cp)

    # --- BN1 normalize + ReLU + bf16 cast fused into conv2's slab build ------
    T2 = _pick_conv_tile_rows(Hs, Wp, Cp, Cp, budget)
    h1 = jnp.maximum(y1[:, :, :Ws, :].astype(jnp.float32) * sc1 + sh1, 0.0)
    slab2 = _build_slab(h1.astype(jnp.bfloat16), T2)

    # --- conv2 (+ BN2 batch statistics) --------------------------------------
    y2, st2 = _conv3x3_bn_stats(slab2, w2, b2, T=T2, Wp=Wp, Wv=Ws, Hs=Hs,
                                vmem_limit=vmem_limit)
    sc2, sh2 = _bn_scale_shift(st2, params["bn2_g"], params["bn2_b"],
                               N * Hs * Ws, Cp)
    out = jnp.maximum(y2[:, :, :Ws, :].astype(jnp.float32) * sc2 + sh2, 0.0)

    return jnp.transpose(out[..., :out_c], (0, 3, 1, 2))         # NCHW, f32


# ---------------------------------------------------------------------------
# Pure-JAX f32 reference (same math, no Pallas) for the correctness check
# ---------------------------------------------------------------------------
def _reference_forward(params, inputs_nchw, skip_nchw):
    x = jnp.transpose(inputs_nchw, (0, 2, 3, 1)).astype(jnp.float32)
    skip = jnp.transpose(skip_nchw, (0, 2, 3, 1)).astype(jnp.float32)
    N, H, W, Cin = x.shape
    out_c = params["up_w"].shape[1]

    y = jnp.einsum("nhwc,coij->nhiwjo", x, params["up_w"]) + params["up_b"]
    y = y.reshape(N, 2 * H, 2 * W, out_c)
    diffY = skip.shape[1] - y.shape[1]
    diffX = skip.shape[2] - y.shape[2]
    y = jnp.pad(y, ((0, 0), (diffY // 2, diffY - diffY // 2),
                    (diffX // 2, diffX - diffX // 2), (0, 0)))
    cat = jnp.concatenate([y, skip], axis=-1)

    def cbr(h, w, b, g, be):
        z = lax.conv_general_dilated(
            h, jnp.transpose(w, (2, 3, 1, 0)), (1, 1), "SAME",
            dimension_numbers=("NHWC", "HWIO", "NHWC"),
        ) + b
        mean = jnp.mean(z, axis=(0, 1, 2), keepdims=True)
        var = jnp.mean((z - mean) ** 2, axis=(0, 1, 2), keepdims=True)
        return jnp.maximum((z - mean) * lax.rsqrt(var + _BN_EPS) * g + be, 0.0)

    h1 = cbr(cat, params["c1_w"], params["c1_b"], params["bn1_g"], params["bn1_b"])
    h2 = cbr(h1, params["c2_w"], params["c2_b"], params["bn2_g"], params["bn2_b"])
    return jnp.transpose(h2, (0, 3, 1, 2))


def init_params(key, in_c, out_c):
    ks = jax.random.split(key, 6)
    return {
        "up_w": 0.1 * jax.random.normal(ks[0], (in_c, out_c, 2, 2), jnp.float32),
        "up_b": 0.1 * jax.random.normal(ks[1], (out_c,), jnp.float32),
        "c1_w": 0.1 * jax.random.normal(ks[2], (out_c, 2 * out_c, 3, 3), jnp.float32),
        "c1_b": 0.1 * jax.random.normal(ks[3], (out_c,), jnp.float32),
        "bn1_g": jnp.ones((out_c,), jnp.float32),
        "bn1_b": jnp.zeros((out_c,), jnp.float32),
        "c2_w": 0.1 * jax.random.normal(ks[4], (out_c, out_c, 3, 3), jnp.float32),
        "c2_b": 0.1 * jax.random.normal(ks[5], (out_c,), jnp.float32),
        "bn2_g": jnp.ones((out_c,), jnp.float32),
        "bn2_b": jnp.zeros((out_c,), jnp.float32),
    }


if __name__ == "__main__":
    key = jax.random.PRNGKey(0)
    k_in, k_skip, k_par = jax.random.split(key, 3)

    N, in_c, out_c = 2, 8, 4
    H, W = 8, 8                       # inputs spatial
    Hs, Ws = 16, 16                   # skip spatial (= 2x inputs -> diff = 0)

    inputs = jax.random.normal(k_in, (N, in_c, H, W), jnp.float32)     # NCHW
    skip = jax.random.normal(k_skip, (N, out_c, Hs, Ws), jnp.float32)  # NCHW
    params = init_params(k_par, in_c, out_c)

    fwd = jax.jit(decoder_block_forward)
    out = jax.block_until_ready(fwd(params, inputs, skip))
    assert out.shape == (N, out_c, Hs, Ws), out.shape

    ref = jax.block_until_ready(_reference_forward(params, inputs, skip))
    # bf16 MXU operands -> compare with a bf16-appropriate tolerance.
    rel = float(jnp.max(jnp.abs(out - ref)) / (jnp.max(jnp.abs(ref)) + 1e-6))
    assert rel < 5e-2, rel

    print("KERNEL_OK")
</pallas_src>

<mosaic_0001>
module attributes {stable_mosaic.version = 11 : i64} {
  func.func @kernel(%arg0: i32, %arg1: i32, %arg2: memref<1x8x8x128xbf16, #tpu.memory_space<vmem>>, %arg3: memref<128x512xbf16, #tpu.memory_space<vmem>>, %arg4: memref<1x512xf32, #tpu.memory_space<vmem>>, %arg5: memref<8x2x8x256xbf16, #tpu.memory_space<vmem>>) attributes {dimension_semantics = [#tpu.dimension_semantics<parallel>, #tpu.dimension_semantics<parallel>], iteration_bounds = array<i64: 2, 1>, scalar_prefetch = 0 : i64, scratch_operands = 0 : i64, tpu.core_type = #tpu.core_type<tc>, window_params = [{transform_indices = @transform_0, window_bounds = array<i64: 1, 8, 8, 128>}, {pipeline_mode = #tpu.pipeline_mode<synchronous>, transform_indices = @transform_1, window_bounds = array<i64: 128, 512>}, {pipeline_mode = #tpu.pipeline_mode<synchronous>, transform_indices = @transform_2, window_bounds = array<i64: 1, 512>}, {transform_indices = @transform_3, window_bounds = array<i64: 8, 2, 8, 256>}]} {
    %c0 = arith.constant 0 : index
    %c0_0 = arith.constant 0 : index
    %c0_1 = arith.constant 0 : index
    %c0_2 = arith.constant 0 : index
    %0 = vector.load %arg2[%c0, %c0_0, %c0_1, %c0_2] : memref<1x8x8x128xbf16, #tpu.memory_space<vmem>>, vector<1x8x8x128xbf16>
    %1 = vector.shape_cast %0 : vector<1x8x8x128xbf16> to vector<8x8x128xbf16>
    %2 = vector.shape_cast %1 : vector<8x8x128xbf16> to vector<64x128xbf16>
    %c0_3 = arith.constant 0 : index
    %c0_4 = arith.constant 0 : index
    %3 = vector.load %arg3[%c0_3, %c0_4] : memref<128x512xbf16, #tpu.memory_space<vmem>>, vector<128x512xbf16>
    %cst = arith.constant dense<0.000000e+00> : vector<64x512xf32>
    %4 = tpu.matmul %2, %3, %cst {dimension_numbers = #tpu.dot_dimension_numbers<[1], [0], [0], [1], [0, 0, 1, 1], [], []>} : vector<64x128xbf16>, vector<128x512xbf16>, vector<64x512xf32> -> vector<64x512xf32>
    %c0_5 = arith.constant 0 : index
    %c0_6 = arith.constant 0 : index
    %5 = vector.load %arg4[%c0_5, %c0_6] : memref<1x512xf32, #tpu.memory_space<vmem>>, vector<1x512xf32>
    %6 = vector.broadcast %5 : vector<1x512xf32> to vector<64x512xf32>
    %7 = arith.addf %4, %6 : vector<64x512xf32>
    %8 = vector.extract_strided_slice %7 {offsets = [0, 0], sizes = [64, 256], strides = [1, 1]} : vector<64x512xf32> to vector<64x256xf32>
    %9 = vector.shape_cast %8 : vector<64x256xf32> to vector<8x8x256xf32>
    %10 = arith.truncf %9 : vector<8x8x256xf32> to vector<8x8x256xbf16>
    %c0_7 = arith.constant 0 : index
    %c0_8 = arith.constant 0 : index
    %c0_9 = arith.constant 0 : index
    %c0_10 = arith.constant 0 : index
    %11 = vector.load %arg5[%c0_7, %c0_8, %c0_9, %c0_10] : memref<8x2x8x256xbf16, #tpu.memory_space<vmem>>, vector<8x1x8x256xbf16>
    %12 = vector.shape_cast %11 : vector<8x1x8x256xbf16> to vector<8x8x256xbf16>
    %13 = vector.shape_cast %10 : vector<8x8x256xbf16> to vector<8x1x8x256xbf16>
    tpu.vector_store %arg5[%c0_7, %c0_8, %c0_9, %c0_10], %13 {strides = array<i32>} : memref<8x2x8x256xbf16, #tpu.memory_space<vmem>>, vector<8x1x8x256xbf16>,
    %14 = vector.extract_strided_slice %7 {offsets = [0, 256], sizes = [64, 256], strides = [1, 1]} : vector<64x512xf32> to vector<64x256xf32>
    %15 = vector.shape_cast %14 : vector<64x256xf32> to vector<8x8x256xf32>
    %16 = arith.truncf %15 : vector<8x8x256xf32> to vector<8x8x256xbf16>
    %c0_11 = arith.constant 0 : index
    %c1 = arith.constant 1 : index
    %c0_12 = arith.constant 0 : index
    %c0_13 = arith.constant 0 : index
    %17 = vector.load %arg5[%c0_11, %c1, %c0_12, %c0_13] : memref<8x2x8x256xbf16, #tpu.memory_space<vmem>>, vector<8x1x8x256xbf16>
    %18 = vector.shape_cast %17 : vector<8x1x8x256xbf16> to vector<8x8x256xbf16>
    %19 = vector.shape_cast %16 : vector<8x8x256xbf16> to vector<8x1x8x256xbf16>
    tpu.vector_store %arg5[%c0_11, %c1, %c0_12, %c0_13], %19 {strides = array<i32>} : memref<8x2x8x256xbf16, #tpu.memory_space<vmem>>, vector<8x1x8x256xbf16>,
    return
  }
  func.func @transform_0(%arg0: i32, %arg1: i32) -> (i32, i32, i32, i32) {
    %c0_i32 = arith.constant 0 : i32
    %c0_i32_0 = arith.constant 0 : i32
    %c0_i32_1 = arith.constant 0 : i32
    return %arg0, %arg1, %c0_i32, %c0_i32_0 : i32, i32, i32, i32
  }
  func.func @transform_1(%arg0: i32, %arg1: i32) -> (i32, i32) {
    %c0_i32 = arith.constant 0 : i32
    %c0_i32_0 = arith.constant 0 : i32
    %c0_i32_1 = arith.constant 0 : i32
    return %c0_i32, %c0_i32_0 : i32, i32
  }
  func.func @transform_2(%arg0: i32, %arg1: i32) -> (i32, i32) {
    %c0_i32 = arith.constant 0 : i32
    %c0_i32_0 = arith.constant 0 : i32
    %c0_i32_1 = arith.constant 0 : i32
    return %c0_i32, %c0_i32_0 : i32, i32
  }
  func.func @transform_3(%arg0: i32, %arg1: i32) -> (i32, i32, i32, i32) {
    %c1_i32 = arith.constant 1 : i32
    %0 = arith.muli %arg0, %c1_i32 : i32
    %1 = arith.addi %0, %arg1 : i32
    %c0_i32 = arith.constant 0 : i32
    %c0_i32_0 = arith.constant 0 : i32
    %c0_i32_1 = arith.constant 0 : i32
    %c0_i32_2 = arith.constant 0 : i32
    return %1, %c0_i32, %c0_i32_0, %c0_i32_1 : i32, i32, i32, i32
  }
}

module attributes {stable_mosaic.version = 11 : i64} {
  func.func @_conv3x3_kernel(%arg0: i32, %arg1: i32, %arg2: memref<1x1x342x128xbf16, #tpu.memory_space<vmem>>, %arg3: memref<3x3x128x128xbf16, #tpu.memory_space<vmem>>, %arg4: memref<1x128xf32, #tpu.memory_space<vmem>>, %arg5: memref<1x16x18x128xbf16, #tpu.memory_space<vmem>>, %arg6: memref<1x1x2x128xf32, #tpu.memory_space<vmem>>) attributes {dimension_semantics = [#tpu.dimension_semantics<parallel>, #tpu.dimension_semantics<parallel>], iteration_bounds = array<i64: 2, 1>, scalar_prefetch = 0 : i64, scratch_operands = 0 : i64, tpu.core_type = #tpu.core_type<tc>, window_params = [{transform_indices = @transform_0, window_bounds = array<i64: 1, 1, 342, 128>}, {pipeline_mode = #tpu.pipeline_mode<synchronous>, transform_indices = @transform_1, window_bounds = array<i64: 3, 3, 128, 128>}, {pipeline_mode = #tpu.pipeline_mode<synchronous>, transform_indices = @transform_2, window_bounds = array<i64: 1, 128>}, {transform_indices = @transform_3, window_bounds = array<i64: 1, 16, 18, 128>}, {transform_indices = @transform_4, window_bounds = array<i64: 1, 1, 2, 128>}]} {
    %c0 = arith.constant 0 : index
    %c0_0 = arith.constant 0 : index
    %c0_1 = arith.constant 0 : index
    %c0_2 = arith.constant 0 : index
    %0 = vector.load %arg2[%c0, %c0_0, %c0_1, %c0_2] : memref<1x1x342x128xbf16, #tpu.memory_space<vmem>>, vector<1x1x288x128xbf16>
    %1 = vector.shape_cast %0 : vector<1x1x288x128xbf16> to vector<288x128xbf16>
    %c0_3 = arith.constant 0 : index
    %c0_4 = arith.constant 0 : index
    %c0_5 = arith.constant 0 : index
    %c0_6 = arith.constant 0 : index
    %2 = vector.load %arg3[%c0_3, %c0_4, %c0_5, %c0_6] : memref<3x3x128x128xbf16, #tpu.memory_space<vmem>>, vector<1x1x128x128xbf16>
    %3 = vector.shape_cast %2 : vector<1x1x128x128xbf16> to vector<128x128xbf16>
    %cst = arith.constant dense<0.000000e+00> : vector<288x128xf32>
    %4 = tpu.matmul %1, %3, %cst {dimension_numbers = #tpu.dot_dimension_numbers<[1], [0], [0], [1], [0, 0, 1, 1], [], []>} : vector<288x128xbf16>, vector<128x128xbf16>, vector<288x128xf32> -> vector<288x128xf32>
    %c0_7 = arith.constant 0 : index
    %c0_8 = arith.constant 0 : index
    %c1 = arith.constant 1 : index
    %c0_9 = arith.constant 0 : index
    %5 = vector.load %arg2[%c0_7, %c0_8, %c1, %c0_9] : memref<1x1x342x128xbf16, #tpu.memory_space<vmem>>, vector<1x1x288x128xbf16>
    %6 = vector.shape_cast %5 : vector<1x1x288x128xbf16> to vector<288x128xbf16>
    %c0_10 = arith.constant 0 : index
    %c1_11 = arith.constant 1 : index
    %c0_12 = arith.constant 0 : index
    %c0_13 = arith.constant 0 : index
    %7 = vector.load %arg3[%c0_10, %c1_11, %c0_12, %c0_13] : memref<3x3x128x128xbf16, #tpu.memory_space<vmem>>, vector<1x1x128x128xbf16>
    %8 = vector.shape_cast %7 : vector<1x1x128x128xbf16> to vector<128x128xbf16>
    %cst_14 = arith.constant dense<0.000000e+00> : vector<288x128xf32>
    %9 = tpu.matmul %6, %8, %cst_14 {dimension_numbers = #tpu.dot_dimension_numbers<[1], [0], [0], [1], [0, 0, 1, 1], [], []>} : vector<288x128xbf16>, vector<128x128xbf16>, vector<288x128xf32> -> vector<288x128xf32>
    %10 = arith.addf %4, %9 : vector<288x128xf32>
    %c0_15 = arith.constant 0 : index
    %c0_16 = arith.constant 0 : index
    %c2 = arith.constant 2 : index
    %c0_17 = arith.constant 0 : index
    %11 = vector.load %arg2[%c0_15, %c0_16, %c2, %c0_17] : memref<1x1x342x128xbf16, #tpu.memory_space<vmem>>, vector<1x1x288x128xbf16>
    %12 = vector.shape_cast %11 : vector<1x1x288x128xbf16> to vector<288x128xbf16>
    %c0_18 = arith.constant 0 : index
    %c2_19 = arith.constant 2 : index
    %c0_20 = arith.constant 0 : index
    %c0_21 = arith.constant 0 : index
    %13 = vector.load %arg3[%c0_18, %c2_19, %c0_20, %c0_21] : memref<3x3x128x128xbf16, #tpu.memory_space<vmem>>, vector<1x1x128x128xbf16>
    %14 = vector.shape_cast %13 : vector<1x1x128x128xbf16> to vector<128x128xbf16>
    %cst_22 = arith.constant dense<0.000000e+00> : vector<288x128xf32>
    %15 = tpu.matmul %12, %14, %cst_22 {dimension_numbers = #tpu.dot_dimension_numbers<[1], [0], [0], [1], [0, 0, 1, 1], [], []>} : vector<288x128xbf16>, vector<128x128xbf16>, vector<288x128xf32> -> vector<288x128xf32>
    %16 = arith.addf %10, %15 : vector<288x128xf32>
    %c0_23 = arith.constant 0 : index
    %c0_24 = arith.constant 0 : index
    %c18 = arith.constant 18 : index
    %c0_25 = arith.constant 0 : index
    %17 = vector.load %arg2[%c0_23, %c0_24, %c18, %c0_25] : memref<1x1x342x128xbf16, #tpu.memory_space<vmem>>, vector<1x1x288x128xbf16>
    %18 = vector.shape_cast %17 : vector<1x1x288x128xbf16> to vector<288x128xbf16>
    %c1_26 = arith.constant 1 : index
    %c0_27 = arith.constant 0 : index
    %c0_28 = arith.constant 0 : index
    %c0_29 = arith.constant 0 : index
    %19 = vector.load %arg3[%c1_26, %c0_27, %c0_28, %c0_29] : memref<3x3x128x128xbf16, #tpu.memory_space<vmem>>, vector<1x1x128x128xbf16>
    %20 = vector.shape_cast %19 : vector<1x1x128x128xbf16> to vector<128x128xbf16>
    %cst_30 = arith.constant dense<0.000000e+00> : vector<288x128xf32>
    %21 = tpu.matmul %18, %20, %cst_30 {dimension_numbers = #tpu.dot_dimension_numbers<[1], [0], [0], [1], [0, 0, 1, 1], [], []>} : vector<288x128xbf16>, vector<128x128xbf16>, vector<288x128xf32> -> vector<288x128xf32>
    %22 = arith.addf %16, %21 : vector<288x128xf32>
    %c0_31 = arith.constant 0 : index
    %c0_32 = arith.constant 0 : index
    %c19 = arith.constant 19 : index
    %c0_33 = arith.constant 0 : index
    %23 = vector.load %arg2[%c0_31, %c0_32, %c19, %c0_33] : memref<1x1x342x128xbf16, #tpu.memory_space<vmem>>, vector<1x1x288x128xbf16>
    %24 = vector.shape_cast %23 : vector<1x1x288x128xbf16> to vector<288x128xbf16>
    %c1_34 = arith.constant 1 : index
    %c1_35 = arith.constant 1 : index
    %c0_36 = arith.constant 0 : index
    %c0_37 = arith.constant 0 : index
    %25 = vector.load %arg3[%c1_34, %c1_35, %c0_36, %c0_37] : memref<3x3x128x128xbf16, #tpu.memory_space<vmem>>, vector<1x1x128x128xbf16>
    %26 = vector.shape_cast %25 : vector<1x1x128x128xbf16> to vector<128x128xbf16>
    %cst_38 = arith.constant dense<0.000000e+00> : vector<288x128xf32>
    %27 = tpu.matmul %24, %26, %cst_38 {dimension_numbers = #tpu.dot_dimension_numbers<[1], [0], [0], [1], [0, 0, 1, 1], [], []>} : vector<288x128xbf16>, vector<128x128xbf16>, vector<288x128xf32> -> vector<288x128xf32>
    %28 = arith.addf %22, %27 : vector<288x128xf32>
    %c0_39 = arith.constant 0 : index
    %c0_40 = arith.constant 0 : index
    %c20 = arith.constant 20 : index
    %c0_41 = arith.constant 0 : index
    %29 = vector.load %arg2[%c0_39, %c0_40, %c20, %c0_41] : memref<1x1x342x128xbf16, #tpu.memory_space<vmem>>, vector<1x1x288x128xbf16>
    %30 = vector.shape_cast %29 : vector<1x1x288x128xbf16> to vector<288x128xbf16>
    %c1_42 = arith.constant 1 : index
    %c2_43 = arith.constant 2 : index
    %c0_44 = arith.constant 0 : index
    %c0_45 = arith.constant 0 : index
    %31 = vector.load %arg3[%c1_42, %c2_43, %c0_44, %c0_45] : memref<3x3x128x128xbf16, #tpu.memory_space<vmem>>, vector<1x1x128x128xbf16>
    %32 = vector.shape_cast %31 : vector<1x1x128x128xbf16> to vector<128x128xbf16>
    %cst_46 = arith.constant dense<0.000000e+00> : vector<288x128xf32>
    %33 = tpu.matmul %30, %32, %cst_46 {dimension_numbers = #tpu.dot_dimension_numbers<[1], [0], [0], [1], [0, 0, 1, 1], [], []>} : vector<288x128xbf16>, vector<128x128xbf16>, vector<288x128xf32> -> vector<288x128xf32>
    %34 = arith.addf %28, %33 : vector<288x128xf32>
    %c0_47 = arith.constant 0 : index
    %c0_48 = arith.constant 0 : index
    %c36 = arith.constant 36 : index
    %c0_49 = arith.constant 0 : index
    %35 = vector.load %arg2[%c0_47, %c0_48, %c36, %c0_49] : memref<1x1x342x128xbf16, #tpu.memory_space<vmem>>, vector<1x1x288x128xbf16>
    %36 = vector.shape_cast %35 : vector<1x1x288x128xbf16> to vector<288x128xbf16>
    %c2_50 = arith.constant 2 : index
    %c0_51 = arith.constant 0 : index
    %c0_52 = arith.constant 0 : index
    %c0_53 = arith.constant 0 : index
    %37 = vector.load %arg3[%c2_50, %c0_51, %c0_52, %c0_53] : memref<3x3x128x128xbf16, #tpu.memory_space<vmem>>, vector<1x1x128x128xbf16>
    %38 = vector.shape_cast %37 : vector<1x1x128x128xbf16> to vector<128x128xbf16>
    %cst_54 = arith.constant dense<0.000000e+00> : vector<288x128xf32>
    %39 = tpu.matmul %36, %38, %cst_54 {dimension_numbers = #tpu.dot_dimension_numbers<[1], [0], [0], [1], [0, 0, 1, 1], [], []>} : vector<288x128xbf16>, vector<128x128xbf16>, vector<288x128xf32> -> vector<288x128xf32>
    %40 = arith.addf %34, %39 : vector<288x128xf32>
    %c0_55 = arith.constant 0 : index
    %c0_56 = arith.constant 0 : index
    %c37 = arith.constant 37 : index
    %c0_57 = arith.constant 0 : index
    %41 = vector.load %arg2[%c0_55, %c0_56, %c37, %c0_57] : memref<1x1x342x128xbf16, #tpu.memory_space<vmem>>, vector<1x1x288x128xbf16>
    %42 = vector.shape_cast %41 : vector<1x1x288x128xbf16> to vector<288x128xbf16>
    %c2_58 = arith.constant 2 : index
    %c1_59 = arith.constant 1 : index
    %c0_60 = arith.constant 0 : index
    %c0_61 = arith.constant 0 : index
    %43 = vector.load %arg3[%c2_58, %c1_59, %c0_60, %c0_61] : memref<3x3x128x128xbf16, #tpu.memory_space<vmem>>, vector<1x1x128x128xbf16>
    %44 = vector.shape_cast %43 : vector<1x1x128x128xbf16> to vector<128x128xbf16>
    %cst_62 = arith.constant dense<0.000000e+00> : vector<288x128xf32>
    %45 = tpu.matmul %42, %44, %cst_62 {dimension_numbers = #tpu.dot_dimension_numbers<[1], [0], [0], [1], [0, 0, 1, 1], [], []>} : vector<288x128xbf16>, vector<128x128xbf16>, vector<288x128xf32> -> vector<288x128xf32>
    %46 = arith.addf %40, %45 : vector<288x128xf32>
    %c0_63 = arith.constant 0 : index
    %c0_64 = arith.constant 0 : index
    %c38 = arith.constant 38 : index
    %c0_65 = arith.constant 0 : index
    %47 = vector.load %arg2[%c0_63, %c0_64, %c38, %c0_65] : memref<1x1x342x128xbf16, #tpu.memory_space<vmem>>, vector<1x1x288x128xbf16>
    %48 = vector.shape_cast %47 : vector<1x1x288x128xbf16> to vector<288x128xbf16>
    %c2_66 = arith.constant 2 : index
    %c2_67 = arith.constant 2 : index
    %c0_68 = arith.constant 0 : index
    %c0_69 = arith.constant 0 : index
    %49 = vector.load %arg3[%c2_66, %c2_67, %c0_68, %c0_69] : memref<3x3x128x128xbf16, #tpu.memory_space<vmem>>, vector<1x1x128x128xbf16>
    %50 = vector.shape_cast %49 : vector<1x1x128x128xbf16> to vector<128x128xbf16>
    %cst_70 = arith.constant dense<0.000000e+00> : vector<288x128xf32>
    %51 = tpu.matmul %48, %50, %cst_70 {dimension_numbers = #tpu.dot_dimension_numbers<[1], [0], [0], [1], [0, 0, 1, 1], [], []>} : vector<288x128xbf16>, vector<128x128xbf16>, vector<288x128xf32> -> vector<288x128xf32>
    %52 = arith.addf %46, %51 : vector<288x128xf32>
    %c0_71 = arith.constant 0 : index
    %c0_72 = arith.constant 0 : index
    %53 = vector.load %arg4[%c0_71, %c0_72] : memref<1x128xf32, #tpu.memory_space<vmem>>, vector<1x128xf32>
    %54 = vector.broadcast %53 : vector<1x128xf32> to vector<288x128xf32>
    %55 = arith.addf %52, %54 : vector<288x128xf32>
    %56 = vector.shape_cast %55 : vector<288x128xf32> to vector<1x16x18x128xf32>
    %57 = arith.truncf %56 : vector<1x16x18x128xf32> to vector<1x16x18x128xbf16>
    %c0_73 = arith.constant 0 : index
    %c0_74 = arith.constant 0 : index
    %c0_75 = arith.constant 0 : index
    %c0_76 = arith.constant 0 : index
    %58 = vector.load %arg5[%c0_73, %c0_74, %c0_75, %c0_76] : memref<1x16x18x128xbf16, #tpu.memory_space<vmem>>, vector<1x16x18x128xbf16>
    tpu.vector_store %arg5[%c0_73, %c0_74, %c0_75, %c0_76], %57 {strides = array<i32>} : memref<1x16x18x128xbf16, #tpu.memory_space<vmem>>, vector<1x16x18x128xbf16>,
    %59 = tpu.iota {dimensions = array<i32: 0>} : vector<288x1xi32>
    %c18_i32 = arith.constant 18 : i32
    %c0_i32 = arith.constant 0 : i32
    %60 = arith.cmpi eq, %c18_i32, %c0_i32 : i32
    %c1_i32 = arith.constant 1 : i32
    %61 = arith.select %60, %c1_i32, %c18_i32 : i32
    %62 = vector.broadcast %61 : i32 to vector<288x1xi32>
    %63 = arith.remsi %59, %62 : vector<288x1xi32>
    %c0_i32_77 = arith.constant 0 : i32
    %64 = vector.broadcast %c0_i32_77 : i32 to vector<288x1xi32>
    %65 = arith.cmpi ne, %63, %64 : vector<288x1xi32>
    %c0_i32_78 = arith.constant 0 : i32
    %66 = vector.broadcast %c0_i32_78 : i32 to vector<288x1xi32>
    %67 = arith.cmpi slt, %63, %66 : vector<288x1xi32>
    %c0_i32_79 = arith.constant 0 : i32
    %68 = arith.cmpi slt, %61, %c0_i32_79 : i32
    %69 = vector.broadcast %68 : i1 to vector<288x1xi1>
    %70 = vector.broadcast %69 : vector<288x1xi1> to vector<288x1xi1>
    %71 = arith.xori %67, %70 : vector<288x1xi1>
    %72 = arith.andi %71, %65 : vector<288x1xi1>
    %73 = vector.broadcast %61 : i32 to vector<288x1xi32>
    %74 = arith.addi %63, %73 : vector<288x1xi32>
    %75 = arith.select %72, %74, %63 : vector<288x1xi1>, vector<288x1xi32>
    %c16_i32 = arith.constant 16 : i32
    %76 = vector.broadcast %c16_i32 : i32 to vector<288x1xi32>
    %77 = arith.cmpi slt, %75, %76 : vector<288x1xi32>
    %cst_80 = arith.constant 0.000000e+00 : f32
    %78 = vector.shape_cast %77 : vector<288x1xi1> to vector<288x1xi1>
    %79 = vector.broadcast %78 : vector<288x1xi1> to vector<288x128xi1>
    %80 = vector.broadcast %cst_80 : f32 to vector<288x128xf32>
    %81 = arith.select %79, %55, %80 : vector<288x128xi1>, vector<288x128xf32>
    %cst_81 = arith.constant dense<0.000000e+00> : vector<128xf32>
    %82 = vector.multi_reduction <add>, %81, %cst_81 [0] : vector<288x128xf32> to vector<128xf32>
    %83 = vector.shape_cast %82 : vector<128xf32> to vector<1x128xf32>
    %84 = arith.mulf %81, %81 : vector<288x128xf32>
    %cst_82 = arith.constant dense<0.000000e+00> : vector<128xf32>
    %85 = vector.multi_reduction <add>, %84, %cst_82 [0] : vector<288x128xf32> to vector<128xf32>
    %86 = vector.shape_cast %85 : vector<128xf32> to vector<1x128xf32>
    %87 = tpu.concatenate %83, %86 in 0 : vector<1x128xf32>, vector<1x128xf32> -> vector<2x128xf32>
    %88 = vector.shape_cast %87 : vector<2x128xf32> to vector<1x1x2x128xf32>
    %c0_83 = arith.constant 0 : index
    %c0_84 = arith.constant 0 : index
    %c0_85 = arith.constant 0 : index
    %c0_86 = arith.constant 0 : index
    %89 = vector.load %arg6[%c0_83, %c0_84, %c0_85, %c0_86] : memref<1x1x2x128xf32, #tpu.memory_space<vmem>>, vector<1x1x2x128xf32>
    tpu.vector_store %arg6[%c0_83, %c0_84, %c0_85, %c0_86], %88 {strides = array<i32>} : memref<1x1x2x128xf32, #tpu.memory_space<vmem>>, vector<1x1x2x128xf32>,
    return
  }
  func.func @transform_0(%arg0: i32, %arg1: i32) -> (i32, i32, i32, i32) {
    %c0_i32 = arith.constant 0 : i32
    %c0_i32_0 = arith.constant 0 : i32
    %c0_i32_1 = arith.constant 0 : i32
    return %arg0, %arg1, %c0_i32, %c0_i32_0 : i32, i32, i32, i32
  }
  func.func @transform_1(%arg0: i32, %arg1: i32) -> (i32, i32, i32, i32) {
    %c0_i32 = arith.constant 0 : i32
    %c0_i32_0 = arith.constant 0 : i32
    %c0_i32_1 = arith.constant 0 : i32
    %c0_i32_2 = arith.constant 0 : i32
    %c0_i32_3 = arith.constant 0 : i32
    return %c0_i32, %c0_i32_0, %c0_i32_1, %c0_i32_2 : i32, i32, i32, i32
  }
  func.func @transform_2(%arg0: i32, %arg1: i32) -> (i32, i32) {
    %c0_i32 = arith.constant 0 : i32
    %c0_i32_0 = arith.constant 0 : i32
    %c0_i32_1 = arith.constant 0 : i32
    return %c0_i32, %c0_i32_0 : i32, i32
  }
  func.func @transform_3(%arg0: i32, %arg1: i32) -> (i32, i32, i32, i32) {
    %c0_i32 = arith.constant 0 : i32
    %c0_i32_0 = arith.constant 0 : i32
    %c0_i32_1 = arith.constant 0 : i32
    return %arg0, %arg1, %c0_i32, %c0_i32_0 : i32, i32, i32, i32
  }
  func.func @transform_4(%arg0: i32, %arg1: i32) -> (i32, i32, i32, i32) {
    %c0_i32 = arith.constant 0 : i32
    %c0_i32_0 = arith.constant 0 : i32
    %c0_i32_1 = arith.constant 0 : i32
    return %arg0, %arg1, %c0_i32, %c0_i32_0 : i32, i32, i32, i32
  }
}

</mosaic_0001>

<llo_original>
// kernel: tile.8
$region0: #{tile.8}
  #allocation0 [shape = 's32[1]{0}', space=sflag, size = 0x4, scoped, tag = 'scoped memory for tile.8']
  %s0 = inlined_call_operand.vmem [shape: f32[128], index: 0, kind: input, shape index: {}]
  %s1 = inlined_call_operand.vmem [shape: f32[4,128], index: 1, kind: output, shape index: {}]
  // Predicated region
  $region2: #{tile.8} parent=0 // pred_check
    _
  $region3: #{tile.8} parent=0 // pred_check_branch
    %3 = sbr.rel (0) target = $region5
  $region4: #{tile.8} parent=0 // pred_region
    _
  $region5: #{tile.8} parent=0 // pred_fallthru
    _
  %v4 = vld [vmem:[%s0] ss:$0 sm:$0xff]
  %5 = vst [vmem:[%s1] sm:$0xf] %v4

// kernel: decoder_block_forward.3
$region0: #{decoder_block_forward.3}
  #allocation0 [shape = 'u32[]', space=smem, size = 0x4, offset = 0x4, fixed_abs, tag = 'smem constant byte address 0x4 - core index']
  #allocation1 [shape = 'u32[72,128]{1,0:T(1,128)}', space=vmem, size = 0x9000, scoped, tag = 'internal scratch']
  %s0 = inlined_call_operand.vmem [shape: bf16[2,8,8,128], index: 0, kind: input, shape index: {}]
  %s1 = inlined_call_operand.vmem [shape: bf16[128,512], index: 1, kind: input, shape index: {}]
  %s2 = inlined_call_operand.vmem [shape: f32[1,512], index: 2, kind: input, shape index: {}]
  %s3 = inlined_call_operand.vmem [shape: bf16[16,2,8,256], index: 3, kind: output, shape index: {}]
  %s4 = sld [smem:[#allocation0]]
  $region45: #{decoder_block_forward.3} parent=0
    _
  %s6 = ssub.s32 1, %s4
  %s7 = scalar_select 0, %s6, %s4
  loop: start=0, step=1, limit=4
  $region2: #{decoder_block_forward.3} parent=0 // loop_pre_header
    _
  $region3: #{decoder_block_forward.3} parent=0 // loop_header
    %s9 = sphi 0, %s13
    %p10 = scmp.ge.s32.totalorder %s9, 4
    %s16 = sphi 0, %s28
    %s17 = sphi 0, %s24
    %s18 = sphi 0, %s16
    %s19 = sphi 0, %s17
    %s20 = sphi 0, %s18
    %s21 = sphi 0, %s19
    %s33 = sphi 0, %s35
    %s36 = sphi 0, %s33
    %s37 = sphi 0, %s36
    %s53 = sphi 0, %s37
    %s57 = sphi 0, %s57
    %s59 = sphi 0, %s57
    %s60 = sphi 0, %s59
    %s74 = sphi 0, %s60
    %s78 = sphi 0, %s78
    %s80 = sphi 0, %s78
    %s81 = sphi 0, %s80
    %s95 = sphi 0, %s81
    %s103 = sphi 0, %s105
    %s106 = sphi 0, %s103
    %s107 = sphi 0, %s106
    %s123 = sphi 0, %s107
  $region4: #{decoder_block_forward.3} parent=0 // loop_header_branch
    %12 = sbr.rel (%p10) target = $region8
  $region5: #{decoder_block_forward.3} parent=0 // loop_body
    %s14 = ssub.s32 %s9, 1
    %s15 = ssub.s32 %s9, 2
    %s22 = sadd.s32 1, %s17
    %p23 = scmp.ge.s32.totalorder %s22, 1
    %s24 = scalar_select %p23, 0, %s22
    %s25 = sadd.s32 1, %s16
    %s26 = scalar_select %p23, %s25, %s16
    %p27 = scmp.ge.s32.totalorder %s26, 2
    %s28 = scalar_select %p27, 0, %s26
    %s29 = ssub.s32 %s16, %s28
    %s30 = ssub.s32 %s17, %s24
    %s31 = sor.u32 %s29, %s30
    %p32 = scmp.eq.s32.totalorder %s31, 0
    %s34 = sadd.s32 %s33, 1
    %s35 = scalar_select %p32, %s33, %s34
    %p38 = pneg %p32
    %p39 = scmp.eq.s32.totalorder %s9, 1
    %p40 = por %p38, %p39
    %p41 = scmp.ne.s32.totalorder %s33, %s36
    %p42 = scmp.eq.s32.totalorder %s9, 0
    %p43 = por %p41, %p42
    %p44 = scmp.ne.s32.totalorder %s33, %s36
    %p45 = scmp.eq.s32.totalorder %s14, 1
    %p46 = por %p44, %p45
    %p47 = scmp.ne.s32.totalorder %s36, %s37
    %p48 = scmp.eq.s32.totalorder %s14, 0
    %p49 = por %p47, %p48
    %p50 = scmp.ne.s32.totalorder %s36, %s37
    %p51 = scmp.eq.s32.totalorder %s15, 1
    %p52 = por %p50, %p51
    %p54 = scmp.ne.s32.totalorder %s37, %s53
    %p55 = scmp.eq.s32.totalorder %s15, 0
    %p56 = por %p54, %p55
    %s58 = sadd.s32 %s57, 1
    %p61 = scmp.eq.s32.totalorder %s9, 1
    %p62 = scmp.ne.s32.totalorder %s57, %s59
    %p63 = scmp.eq.s32.totalorder %s9, 0
    %p64 = por %p62, %p63
    %p65 = scmp.ne.s32.totalorder %s57, %s59
    %p66 = scmp.eq.s32.totalorder %s14, 1
    %p67 = por %p65, %p66
    %p68 = scmp.ne.s32.totalorder %s59, %s60
    %p69 = scmp.eq.s32.totalorder %s14, 0
    %p70 = por %p68, %p69
    %p71 = scmp.ne.s32.totalorder %s59, %s60
    %p72 = scmp.eq.s32.totalorder %s15, 1
    %p73 = por %p71, %p72
    %p75 = scmp.ne.s32.totalorder %s60, %s74
    %p76 = scmp.eq.s32.totalorder %s15, 0
    %p77 = por %p75, %p76
    %s79 = sadd.s32 %s78, 1
    %p82 = scmp.eq.s32.totalorder %s9, 1
    %p83 = scmp.ne.s32.totalorder %s78, %s80
    %p84 = scmp.eq.s32.totalorder %s9, 0
    %p85 = por %p83, %p84
    %p86 = scmp.ne.s32.totalorder %s78, %s80
    %p87 = scmp.eq.s32.totalorder %s14, 1
    %p88 = por %p86, %p87
    %p89 = scmp.ne.s32.totalorder %s80, %s81
    %p90 = scmp.eq.s32.totalorder %s14, 0
    %p91 = por %p89, %p90
    %p92 = scmp.ne.s32.totalorder %s80, %s81
    %p93 = scmp.eq.s32.totalorder %s15, 1
    %p94 = por %p92, %p93
    %p96 = scmp.ne.s32.totalorder %s81, %s95
    %p97 = scmp.eq.s32.totalorder %s15, 0
    %p98 = por %p96, %p97
    %s99 = sadd.s32 %s16, %s17
    %s100 = sadd.s32 %s28, %s24
    %s101 = ssub.s32 %s99, %s100
    %p102 = scmp.eq.s32.totalorder %s101, 0
    %s104 = sadd.s32 %s103, 1
    %s105 = scalar_select %p102, %s103, %s104
    %p108 = pneg %p102
    %p109 = scmp.eq.s32.totalorder %s9, 1
    %p110 = por %p108, %p109
    %p111 = scmp.ne.s32.totalorder %s103, %s106
    %p112 = scmp.eq.s32.totalorder %s9, 0
    %p113 = por %p111, %p112
    %p114 = scmp.ne.s32.totalorder %s103, %s106
    %p115 = scmp.eq.s32.totalorder %s14, 1
    %p116 = por %p114, %p115
    %p117 = scmp.ne.s32.totalorder %s106, %s107
    %p118 = scmp.eq.s32.totalorder %s14, 0
    %p119 = por %p117, %p118
    %p120 = scmp.ne.s32.totalorder %s106, %s107
    %p121 = scmp.eq.s32.totalorder %s15, 1
    %p122 = por %p120, %p121
    %p124 = scmp.ne.s32.totalorder %s107, %s123
    %p125 = scmp.eq.s32.totalorder %s15, 0
    %p126 = por %p124, %p125
    %p127 = scmp.le.s32.totalorder 1, %s9
    %p128 = scmp.lt.s32.totalorder %s9, 3
    %p129 = pnand %p127, %p128
    %p130 = pneg %p129
    // Predicated region
    $region9: #{decoder_block_forward.3} parent=5 // pred_check
      _
    $region10: #{decoder_block_forward.3} parent=5 // pred_check_branch
      %132 = sbr.rel (%p129) target = $region12
    $region11: #{decoder_block_forward.3} parent=5 // pred_region
      %s133 = ssub.s32 %s9, 1
      // Predicated region
      $region13: #{decoder_block_forward.3} parent=11 // pred_check
        %p134 = pneg %p70
      $region14: #{decoder_block_forward.3} parent=11 // pred_check_branch
        %136 = sbr.rel (%p134) target = $region16
      $region15: #{decoder_block_forward.3} parent=11 // pred_region
        _
      $region16: #{decoder_block_forward.3} parent=11 // pred_fallthru
        _
      // Predicated region
      $region17: #{decoder_block_forward.3} parent=11 // pred_check
        %p137 = pneg %p91
      $region18: #{decoder_block_forward.3} parent=11 // pred_check_branch
        %139 = sbr.rel (%p137) target = $region20
      $region19: #{decoder_block_forward.3} parent=11 // pred_region
        _
      $region20: #{decoder_block_forward.3} parent=11 // pred_fallthru
        _
    $region12: #{decoder_block_forward.3} parent=5 // pred_fallthru
      _
    %p140 = scmp.lt.s32.totalorder %s9, 2
    // Predicated region
    $region21: #{decoder_block_forward.3} parent=5 // pred_check
      %p141 = pneg %p140
    $region22: #{decoder_block_forward.3} parent=5 // pred_check_branch
      %143 = sbr.rel (%p141) target = $region24
    $region23: #{decoder_block_forward.3} parent=5 // pred_region
      // Predicated region
      $region25: #{decoder_block_forward.3} parent=23 // pred_check
        %p144 = pneg %p43
      $region26: #{decoder_block_forward.3} parent=23 // pred_check_branch
        %146 = sbr.rel (%p144) target = $region28
      $region27: #{decoder_block_forward.3} parent=23 // pred_region
        %s147 = smul.u32 8, %s17
        %p148 = scmp.lt.s32.totalorder %s16, 1
        %s149 = scalar_select %p148, %s16, 1
        %p150 = scmp.lt.s32.totalorder %s147, 7
        %s151 = scalar_select %p150, %s147, 7
        %s152 = smul.addr %s149, 8
        %s153 = sadd.s32 %s151, %s152
        %s154 = smul.addr %s153, 4
        %s155 = scalar_lea.vmem %s0, %s154
        %s156 = smul.u32 8, %s17
      $region28: #{decoder_block_forward.3} parent=23 // pred_fallthru
        _
    $region24: #{decoder_block_forward.3} parent=5 // pred_fallthru
      _
    %p157 = scmp.le.s32.totalorder 1, %s9
    %p158 = scmp.lt.s32.totalorder %s9, 3
    %p159 = pnand %p157, %p158
    %p160 = pneg %p159
    // Predicated region
    $region29: #{decoder_block_forward.3} parent=5 // pred_check
      _
    $region30: #{decoder_block_forward.3} parent=5 // pred_check_branch
      %162 = sbr.rel (%p159) target = $region32
    $region31: #{decoder_block_forward.3} parent=5 // pred_region
      %s163 = ssub.s32 %s9, 1
      %s164 = smul.u32 8, %s19
      %p165 = scmp.lt.s32.totalorder %s18, 1
      %s166 = scalar_select %p165, %s18, 1
      %p167 = scmp.lt.s32.totalorder %s164, 7
      %s168 = scalar_select %p167, %s164, 7
      %s169 = smul.addr %s166, 8
      %s170 = sadd.s32 %s168, %s169
      %s171 = smul.addr %s170, 4
      %s172 = scalar_lea.vmem %s0, %s171
      %p173 = pneg %p49
      %p174 = pneg %p46
      %p175 = pneg %p70
      %p176 = pneg %p67
      %p177 = pneg %p91
      %p178 = pneg %p88
      %p179 = pneg %p119
      %p180 = pneg %p116
      %s181 = sadd.s32 %s18, %s19
      %s182 = smul.u32 8, %s181
      %p183 = scmp.lt.s32.totalorder %s182, 15
      %s184 = scalar_select %p183, %s182, 15
      %s185 = smul.addr %s184, 4
      %s186 = smul.addr %s185, 4
      %s187 = scalar_lea.vmem %s3, %s186
      %s188 = smul.u32 8, %s19
      %p189 = scmp.lt.s32.totalorder %s18, 1
      %s190 = scalar_select %p189, %s18, 1
      %p191 = scmp.lt.s32.totalorder %s188, 7
      %s192 = scalar_select %p191, %s188, 7
      %s193 = smul.addr %s190, 8
      %s194 = sadd.s32 %s192, %s193
      %s195 = smul.addr %s194, 4
      %s196 = scalar_lea.vmem %s0, %s195
      %s197 = smul.u32 8, %s19
      %s198 = sadd.s32 %s18, %s19
      %s199 = smul.u32 8, %s198
      %p200 = scmp.lt.s32.totalorder %s199, 15
      %s201 = scalar_select %p200, %s199, 15
      %s202 = smul.addr %s201, 4
      %s203 = smul.addr %s202, 4
      %s204 = scalar_lea.vmem %s3, %s203
      %s205 = sadd.s32 %s18, %s19
      %s206 = smul.u32 8, %s205
      %v207 = vld [vmem:[%s196] sm:$0xf]
      %v208 = vld [vmem:[%s196 + $0x4] sm:$0xf]
      %v209 = vld [vmem:[%s196 + $0x8] sm:$0xf]
      %v210 = vld [vmem:[%s196 + $0xc] sm:$0xf]
      %v211 = vld [vmem:[%s196 + $0x10] sm:$0xf]
      %v212 = vld [vmem:[%s196 + $0x14] sm:$0xf]
      %v213 = vld [vmem:[%s196 + $0x18] sm:$0xf]
      %v214 = vld [vmem:[%s196 + $0x1c] sm:$0xf]
      %v215 = vld [vmem:[%s1] sm:$0xff]
      %v216 = vld [vmem:[%s1 + $0x8] sm:$0xff]
      %v217 = vld [vmem:[%s1 + $0x10] sm:$0xff]
      %v218 = vld [vmem:[%s1 + $0x18] sm:$0xff]
      %v219 = vld [vmem:[%s1 + $0x20] sm:$0xff]
      %v220 = vld [vmem:[%s1 + $0x28] sm:$0xff]
      %v221 = vld [vmem:[%s1 + $0x30] sm:$0xff]
      %v222 = vld [vmem:[%s1 + $0x38] sm:$0xff]
      %v223 = vld [vmem:[%s1 + $0x40] sm:$0xff]
      %v224 = vld [vmem:[%s1 + $0x48] sm:$0xff]
      %v225 = vld [vmem:[%s1 + $0x50] sm:$0xff]
      %v226 = vld [vmem:[%s1 + $0x58] sm:$0xff]
      %v227 = vld [vmem:[%s1 + $0x60] sm:$0xff]
      %v228 = vld [vmem:[%s1 + $0x68] sm:$0xff]
      %v229 = vld [vmem:[%s1 + $0x70] sm:$0xff]
      %v230 = vld [vmem:[%s1 + $0x78] sm:$0xff]
      %v231 = vld [vmem:[%s1 + $0x80] sm:$0xff]
      %v232 = vld [vmem:[%s1 + $0x88] sm:$0xff]
      %v233 = vld [vmem:[%s1 + $0x90] sm:$0xff]
      %v234 = vld [vmem:[%s1 + $0x98] sm:$0xff]
      %v235 = vld [vmem:[%s1 + $0xa0] sm:$0xff]
      %v236 = vld [vmem:[%s1 + $0xa8] sm:$0xff]
      %v237 = vld [vmem:[%s1 + $0xb0] sm:$0xff]
      %v238 = vld [vmem:[%s1 + $0xb8] sm:$0xff]
      %v239 = vld [vmem:[%s1 + $0xc0] sm:$0xff]
      %v240 = vld [vmem:[%s1 + $0xc8] sm:$0xff]
      %v241 = vld [vmem:[%s1 + $0xd0] sm:$0xff]
      %v242 = vld [vmem:[%s1 + $0xd8] sm:$0xff]
      %v243 = vld [vmem:[%s1 + $0xe0] sm:$0xff]
      %v244 = vld [vmem:[%s1 + $0xe8] sm:$0xff]
      %v245 = vld [vmem:[%s1 + $0xf0] sm:$0xff]
      %v246 = vld [vmem:[%s1 + $0xf8] sm:$0xff]
      %v247 = vld [vmem:[%s2] sm:$0xf]
      %v249 = vperm.slane %v247, 0
      %v250 = vperm.slane %v247, 1
      %v251 = vperm.slane %v247, 2
      %v252 = vperm.slane %v247, 3
      %v265 = vunpack.c.l.b16 %v207
      %v266 = vunpack.c.l.b16 %v208
      %v267 = vunpack.c.l.b16 %v209
      %v268 = vunpack.c.l.b16 %v210
      %v269 = vunpack.c.l.b16 %v211
      %v270 = vunpack.c.l.b16 %v212
      %v271 = vunpack.c.l.b16 %v213
      %v272 = vunpack.c.l.b16 %v214
      %v273 = vpack.c.b16 %v266, %v265
      %v274 = vpack.c.b16 %v268, %v267
      %v275 = vpack.c.b16 %v270, %v269
      %v276 = vpack.c.b16 %v272, %v271
      %v313 = vunpack.c.l.b16 %v215
      %v314 = vunpack.c.h.b16 %v215
      %v315 = vunpack.c.l.b16 %v216
      %v316 = vunpack.c.h.b16 %v216
      %v317 = vunpack.c.l.b16 %v217
      %v318 = vunpack.c.h.b16 %v217
      %v319 = vunpack.c.l.b16 %v218
      %v320 = vunpack.c.h.b16 %v218
      %v321 = vunpack.c.l.b16 %v219
      %v322 = vunpack.c.h.b16 %v219
      %v323 = vunpack.c.l.b16 %v220
      %v324 = vunpack.c.h.b16 %v220
      %v325 = vunpack.c.l.b16 %v221
      %v326 = vunpack.c.h.b16 %v221
      %v327 = vunpack.c.l.b16 %v222
      %v328 = vunpack.c.h.b16 %v222
      %v329 = vunpack.c.l.b16 %v223
      %v330 = vunpack.c.h.b16 %v223
      %v331 = vunpack.c.l.b16 %v224
      %v332 = vunpack.c.h.b16 %v224
      %v333 = vunpack.c.l.b16 %v225
      %v334 = vunpack.c.h.b16 %v225
      %v335 = vunpack.c.l.b16 %v226
      %v336 = vunpack.c.h.b16 %v226
      %v337 = vunpack.c.l.b16 %v227
      %v338 = vunpack.c.h.b16 %v227
      %v339 = vunpack.c.l.b16 %v228
      %v340 = vunpack.c.h.b16 %v228
      %v341 = vunpack.c.l.b16 %v229
      %v342 = vunpack.c.h.b16 %v229
      %v343 = vunpack.c.l.b16 %v230
      %v344 = vunpack.c.h.b16 %v230
      %v345 = vunpack.c.l.b16 %v231
      %v346 = vunpack.c.h.b16 %v231
      %v347 = vunpack.c.l.b16 %v232
      %v348 = vunpack.c.h.b16 %v232
      %v349 = vunpack.c.l.b16 %v233
      %v350 = vunpack.c.h.b16 %v233
      %v351 = vunpack.c.l.b16 %v234
      %v352 = vunpack.c.h.b16 %v234
      %v353 = vunpack.c.l.b16 %v235
      %v354 = vunpack.c.h.b16 %v235
      %v355 = vunpack.c.l.b16 %v236
      %v356 = vunpack.c.h.b16 %v236
      %v357 = vunpack.c.l.b16 %v237
      %v358 = vunpack.c.h.b16 %v237
      %v359 = vunpack.c.l.b16 %v238
      %v360 = vunpack.c.h.b16 %v238
      %v361 = vunpack.c.l.b16 %v239
      %v362 = vunpack.c.h.b16 %v239
      %v363 = vunpack.c.l.b16 %v240
      %v364 = vunpack.c.h.b16 %v240
      %v365 = vunpack.c.l.b16 %v241
      %v366 = vunpack.c.h.b16 %v241
      %v367 = vunpack.c.l.b16 %v242
      %v368 = vunpack.c.h.b16 %v242
      %v369 = vunpack.c.l.b16 %v243
      %v370 = vunpack.c.h.b16 %v243
      %v371 = vunpack.c.l.b16 %v244
      %v372 = vunpack.c.h.b16 %v244
      %v373 = vunpack.c.l.b16 %v245
      %v374 = vunpack.c.h.b16 %v245
      %v375 = vunpack.c.l.b16 %v246
      %v376 = vunpack.c.h.b16 %v246
      %v377 = vpack.c.b16 %v317, %v313
      %v378 = vpack.c.b16 %v318, %v314
      %v379 = vpack.c.b16 %v319, %v315
      %v380 = vpack.c.b16 %v320, %v316
      %v381 = vpack.c.b16 %v325, %v321
      %v382 = vpack.c.b16 %v326, %v322
      %v383 = vpack.c.b16 %v327, %v323
      %v384 = vpack.c.b16 %v328, %v324
      %v385 = vpack.c.b16 %v333, %v329
      %v386 = vpack.c.b16 %v334, %v330
      %v387 = vpack.c.b16 %v335, %v331
      %v388 = vpack.c.b16 %v336, %v332
      %v389 = vpack.c.b16 %v341, %v337
      %v390 = vpack.c.b16 %v342, %v338
      %v391 = vpack.c.b16 %v343, %v339
      %v392 = vpack.c.b16 %v344, %v340
      %v393 = vpack.c.b16 %v349, %v345
      %v394 = vpack.c.b16 %v350, %v346
      %v395 = vpack.c.b16 %v351, %v347
      %v396 = vpack.c.b16 %v352, %v348
      %v397 = vpack.c.b16 %v357, %v353
      %v398 = vpack.c.b16 %v358, %v354
      %v399 = vpack.c.b16 %v359, %v355
      %v400 = vpack.c.b16 %v360, %v356
      %v401 = vpack.c.b16 %v365, %v361
      %v402 = vpack.c.b16 %v366, %v362
      %v403 = vpack.c.b16 %v367, %v363
      %v404 = vpack.c.b16 %v368, %v364
      %v405 = vpack.c.b16 %v373, %v369
      %v406 = vpack.c.b16 %v374, %v370
      %v407 = vpack.c.b16 %v375, %v371
      %v408 = vpack.c.b16 %v376, %v372
      %441 = vmatpush.bf16.msra.mxu0 %v405
      %442 = vmatpush.bf16.msra.mxu0 %v401
      %443 = vmatpush.bf16.msra.mxu0 %v397
      %444 = vmatpush.bf16.msra.mxu0 %v393
      %445 = vmatpush.bf16.msra.mxu0 %v389
      %446 = vmatpush.bf16.msra.mxu0 %v385
      %447 = vmatpush.bf16.msra.mxu0 %v381
      %448 = vmatpush.bf16.msra.mxu0 %v377
      %449 = vmatmul.bf16.gmra.mxu0 %v273
      %v450 = vpop.f32.mrf.mxu0
      %v451 = vadd.f32 %v249, %v450
      %v452 = vpop.f32.mrf.mxu0
      %v453 = vadd.f32 %v249, %v452
      %454 = vmatmul.bf16.gmra.mxu0 %v274
      %v455 = vpop.f32.mrf.mxu0
      %v456 = vadd.f32 %v249, %v455
      %v457 = vpop.f32.mrf.mxu0
      %v458 = vadd.f32 %v249, %v457
      %459 = vmatmul.bf16.gmra.mxu0 %v275
      %v460 = vpop.f32.mrf.mxu0
      %v461 = vadd.f32 %v249, %v460
      %v462 = vpop.f32.mrf.mxu0
      %v463 = vadd.f32 %v249, %v462
      %464 = vmatmul.bf16.gmra.mxu0 %v276
      %v465 = vpop.f32.mrf.mxu0
      %v466 = vadd.f32 %v249, %v465
      %v467 = vpop.f32.mrf.mxu0
      %v468 = vadd.f32 %v249, %v467
      %469 = vdwg.mxu0
      %470 = vmatpush.bf16.msra.mxu0 %v406
      %471 = vmatpush.bf16.msra.mxu0 %v402
      %472 = vmatpush.bf16.msra.mxu0 %v398
      %473 = vmatpush.bf16.msra.mxu0 %v394
      %474 = vmatpush.bf16.msra.mxu0 %v390
      %475 = vmatpush.bf16.msra.mxu0 %v386
      %476 = vmatpush.bf16.msra.mxu0 %v382
      %477 = vmatpush.bf16.msra.mxu0 %v378
      %478 = vmatmul.bf16.gmra.mxu0 %v273
      %v479 = vpop.f32.mrf.mxu0
      %v480 = vadd.f32 %v250, %v479
      %v481 = vpop.f32.mrf.mxu0
      %v482 = vadd.f32 %v250, %v481
      %483 = vmatmul.bf16.gmra.mxu0 %v274
      %v484 = vpop.f32.mrf.mxu0
      %v485 = vadd.f32 %v250, %v484
      %v486 = vpop.f32.mrf.mxu0
      %v487 = vadd.f32 %v250, %v486
      %488 = vmatmul.bf16.gmra.mxu0 %v275
      %v489 = vpop.f32.mrf.mxu0
      %v490 = vadd.f32 %v250, %v489
      %v491 = vpop.f32.mrf.mxu0
      %v492 = vadd.f32 %v250, %v491
      %493 = vmatmul.bf16.gmra.mxu0 %v276
      %v494 = vpop.f32.mrf.mxu0
      %v495 = vadd.f32 %v250, %v494
      %v496 = vpop.f32.mrf.mxu0
      %v497 = vadd.f32 %v250, %v496
      %498 = vdwg.mxu0
      %499 = vmatpush.bf16.msra.mxu0 %v407
      %500 = vmatpush.bf16.msra.mxu0 %v403
      %501 = vmatpush.bf16.msra.mxu0 %v399
      %502 = vmatpush.bf16.msra.mxu0 %v395
      %503 = vmatpush.bf16.msra.mxu0 %v391
      %504 = vmatpush.bf16.msra.mxu0 %v387
      %505 = vmatpush.bf16.msra.mxu0 %v383
      %506 = vmatpush.bf16.msra.mxu0 %v379
      %507 = vmatmul.bf16.gmra.mxu0 %v273
      %v508 = vpop.f32.mrf.mxu0
      %v509 = vadd.f32 %v251, %v508
      %v510 = vpop.f32.mrf.mxu0
      %v511 = vadd.f32 %v251, %v510
      %512 = vmatmul.bf16.gmra.mxu0 %v274
      %v513 = vpop.f32.mrf.mxu0
      %v514 = vadd.f32 %v251, %v513
      %v515 = vpop.f32.mrf.mxu0
      %v516 = vadd.f32 %v251, %v515
      %517 = vmatmul.bf16.gmra.mxu0 %v275
      %v518 = vpop.f32.mrf.mxu0
      %v519 = vadd.f32 %v251, %v518
      %v520 = vpop.f32.mrf.mxu0
      %v521 = vadd.f32 %v251, %v520
      %522 = vmatmul.bf16.gmra.mxu0 %v276
      %v523 = vpop.f32.mrf.mxu0
      %v524 = vadd.f32 %v251, %v523
      %v525 = vpop.f32.mrf.mxu0
      %v526 = vadd.f32 %v251, %v525
      %527 = vdwg.mxu0
      %528 = vmatpush.bf16.msra.mxu0 %v408
      %529 = vmatpush.bf16.msra.mxu0 %v404
      %530 = vmatpush.bf16.msra.mxu0 %v400
      %531 = vmatpush.bf16.msra.mxu0 %v396
      %532 = vmatpush.bf16.msra.mxu0 %v392
      %533 = vmatpush.bf16.msra.mxu0 %v388
      %534 = vmatpush.bf16.msra.mxu0 %v384
      %535 = vmatpush.bf16.msra.mxu0 %v380
      %536 = vmatmul.bf16.gmra.mxu0 %v273
      %v537 = vpop.f32.mrf.mxu0
      %v538 = vadd.f32 %v252, %v537
      %v539 = vpop.f32.mrf.mxu0
      %v540 = vadd.f32 %v252, %v539
      %541 = vmatmul.bf16.gmra.mxu0 %v274
      %v542 = vpop.f32.mrf.mxu0
      %v543 = vadd.f32 %v252, %v542
      %v544 = vpop.f32.mrf.mxu0
      %v545 = vadd.f32 %v252, %v544
      %546 = vmatmul.bf16.gmra.mxu0 %v275
      %v547 = vpop.f32.mrf.mxu0
      %v548 = vadd.f32 %v252, %v547
      %v549 = vpop.f32.mrf.mxu0
      %v550 = vadd.f32 %v252, %v549
      %551 = vmatmul.bf16.gmra.mxu0 %v276
      %v552 = vpop.f32.mrf.mxu0
      %v553 = vadd.f32 %v252, %v552
      %v554 = vpop.f32.mrf.mxu0
      %v555 = vadd.f32 %v252, %v554
      %556 = vdwg.mxu0
      %v557 = vpack.c.bf16 %v480, %v451
      %v558 = vpack.c.bf16 %v482, %v453
      %v559 = vpack.c.bf16 %v485, %v456
      %v560 = vpack.c.bf16 %v487, %v458
      %v561 = vpack.c.bf16 %v490, %v461
      %v562 = vpack.c.bf16 %v492, %v463
      %v563 = vpack.c.bf16 %v495, %v466
      %v564 = vpack.c.bf16 %v497, %v468
      %565 = vst [vmem:[%s204] sm:$0xff] %v557
      %566 = vst [vmem:[%s204 + $0x10] sm:$0xff] %v558
      %567 = vst [vmem:[%s204 + $0x20] sm:$0xff] %v559
      %568 = vst [vmem:[%s204 + $0x30] sm:$0xff] %v560
      %569 = vst [vmem:[%s204 + $0x40] sm:$0xff] %v561
      %570 = vst [vmem:[%s204 + $0x50] sm:$0xff] %v562
      %571 = vst [vmem:[%s204 + $0x60] sm:$0xff] %v563
      %572 = vst [vmem:[%s204 + $0x70] sm:$0xff] %v564
      %v573 = vpack.c.bf16 %v538, %v509
      %v574 = vpack.c.bf16 %v540, %v511
      %v575 = vpack.c.bf16 %v543, %v514
      %v576 = vpack.c.bf16 %v545, %v516
      %v577 = vpack.c.bf16 %v548, %v519
      %v578 = vpack.c.bf16 %v550, %v521
      %v579 = vpack.c.bf16 %v553, %v524
      %v580 = vpack.c.bf16 %v555, %v526
      %s581 = scalar_lea.vmem %s204, 8
      %582 = vst [vmem:[%s581] sm:$0xff] %v573
      %583 = vst [vmem:[%s581 + $0x10] sm:$0xff] %v574
      %584 = vst [vmem:[%s581 + $0x20] sm:$0xff] %v575
      %585 = vst [vmem:[%s581 + $0x30] sm:$0xff] %v576
      %586 = vst [vmem:[%s581 + $0x40] sm:$0xff] %v577
      %587 = vst [vmem:[%s581 + $0x50] sm:$0xff] %v578
      %588 = vst [vmem:[%s581 + $0x60] sm:$0xff] %v579
      %589 = vst [vmem:[%s581 + $0x70] sm:$0xff] %v580
      %s590 = sadd.s32 %s18, %s19
      %s591 = smul.u32 8, %s590
      %p592 = scmp.lt.s32.totalorder %s591, 15
      %s593 = scalar_select %p592, %s591, 15
      %s594 = smul.addr %s593, 4
      %s595 = smul.addr %s594, 4
      %s596 = scalar_lea.vmem %s3, %s595
      // Predicated region
      $region33: #{decoder_block_forward.3} parent=31 // pred_check
        %p597 = pneg %p116
      $region34: #{decoder_block_forward.3} parent=31 // pred_check_branch
        %599 = sbr.rel (%p597) target = $region36
      $region35: #{decoder_block_forward.3} parent=31 // pred_region
        %s600 = sadd.s32 %s18, %s19
        %s601 = smul.u32 8, %s600
      $region36: #{decoder_block_forward.3} parent=31 // pred_fallthru
        _
    $region32: #{decoder_block_forward.3} parent=5 // pred_fallthru
      _
    %p602 = scmp.le.s32.totalorder 2, %s9
    // Predicated region
    $region37: #{decoder_block_forward.3} parent=5 // pred_check
      %p603 = pneg %p602
    $region38: #{decoder_block_forward.3} parent=5 // pred_check_branch
      %605 = sbr.rel (%p603) target = $region40
    $region39: #{decoder_block_forward.3} parent=5 // pred_region
      %s606 = ssub.s32 %s9, 2
      // Predicated region
      $region41: #{decoder_block_forward.3} parent=39 // pred_check
        %p607 = pneg %p122
      $region42: #{decoder_block_forward.3} parent=39 // pred_check_branch
        %609 = sbr.rel (%p607) target = $region44
      $region43: #{decoder_block_forward.3} parent=39 // pred_region
        %s610 = sadd.s32 %s20, %s21
        %s611 = smul.u32 8, %s610
        %p612 = scmp.lt.s32.totalorder %s611, 15
        %s613 = scalar_select %p612, %s611, 15
        %s614 = smul.addr %s613, 4
        %s615 = smul.addr %s614, 4
        %s616 = scalar_lea.vmem %s3, %s615
      $region44: #{decoder_block_forward.3} parent=39 // pred_fallthru
        _
    $region40: #{decoder_block_forward.3} parent=5 // pred_fallthru
      _
  $region6: #{decoder_block_forward.3} parent=0 // loop_footer
    %s13 = sadd.s32 1, %s9
  $region7: #{decoder_block_forward.3} parent=0 // loop_footer_branch
    %8 = sbr.rel target = $region3
  $region8: #{decoder_block_forward.3} parent=0 // loop_exit
    _

// kernel: decoder_block_forward.4
$region0: #{decoder_block_forward.4}
  #allocation0 [shape = 'u32[]', space=smem, size = 0x4, offset = 0x4, fixed_abs, tag = 'smem constant byte address 0x4 - core index']
  #allocation1 [shape = 'u32[72,128]{1,0:T(1,128)}', space=vmem, size = 0x9000, scoped, tag = 'internal scratch']
  %s0 = inlined_call_operand.vmem [shape: bf16[2,1,342,128], index: 0, kind: input, shape index: {}]
  %s1 = inlined_call_operand.vmem [shape: bf16[3,3,128,128], index: 1, kind: input, shape index: {}]
  %s2 = inlined_call_operand.vmem [shape: f32[1,128], index: 2, kind: input, shape index: {}]
  %s3 = inlined_call_operand.vmem [shape: bf16[2,16,18,128], index: 3, kind: output, shape index: {0}]
  %s4 = inlined_call_operand.vmem [shape: f32[2,1,2,128], index: 4, kind: output, shape index: {1}]
  %5 = xla_tuple %s3, %s4
  %s6 = sld [smem:[#allocation0]]
  $region53: #{decoder_block_forward.4} parent=0
    _
  %s8 = ssub.s32 1, %s6
  %s9 = scalar_select 0, %s8, %s6
  loop: start=0, step=1, limit=4
  $region2: #{decoder_block_forward.4} parent=0 // loop_pre_header
    _
  $region3: #{decoder_block_forward.4} parent=0 // loop_header
    %s11 = sphi 0, %s15
    %p12 = scmp.ge.s32.totalorder %s11, 4
    %s18 = sphi 0, %s30
    %s19 = sphi 0, %s26
    %s20 = sphi 0, %s18
    %s21 = sphi 0, %s19
    %s22 = sphi 0, %s20
    %s23 = sphi 0, %s21
    %s35 = sphi 0, %s37
    %s38 = sphi 0, %s35
    %s39 = sphi 0, %s38
    %s55 = sphi 0, %s39
    %s59 = sphi 0, %s59
    %s61 = sphi 0, %s59
    %s62 = sphi 0, %s61
    %s76 = sphi 0, %s62
    %s80 = sphi 0, %s80
    %s82 = sphi 0, %s80
    %s83 = sphi 0, %s82
    %s97 = sphi 0, %s83
    %s105 = sphi 0, %s107
    %s108 = sphi 0, %s105
    %s109 = sphi 0, %s108
    %s125 = sphi 0, %s109
    %s133 = sphi 0, %s135
    %s136 = sphi 0, %s133
    %s137 = sphi 0, %s136
    %s153 = sphi 0, %s137
  $region4: #{decoder_block_forward.4} parent=0 // loop_header_branch
    %14 = sbr.rel (%p12) target = $region8
  $region5: #{decoder_block_forward.4} parent=0 // loop_body
    %s16 = ssub.s32 %s11, 1
    %s17 = ssub.s32 %s11, 2
    %s24 = sadd.s32 1, %s19
    %p25 = scmp.ge.s32.totalorder %s24, 1
    %s26 = scalar_select %p25, 0, %s24
    %s27 = sadd.s32 1, %s18
    %s28 = scalar_select %p25, %s27, %s18
    %p29 = scmp.ge.s32.totalorder %s28, 2
    %s30 = scalar_select %p29, 0, %s28
    %s31 = ssub.s32 %s18, %s30
    %s32 = ssub.s32 %s19, %s26
    %s33 = sor.u32 %s31, %s32
    %p34 = scmp.eq.s32.totalorder %s33, 0
    %s36 = sadd.s32 %s35, 1
    %s37 = scalar_select %p34, %s35, %s36
    %p40 = pneg %p34
    %p41 = scmp.eq.s32.totalorder %s11, 1
    %p42 = por %p40, %p41
    %p43 = scmp.ne.s32.totalorder %s35, %s38
    %p44 = scmp.eq.s32.totalorder %s11, 0
    %p45 = por %p43, %p44
    %p46 = scmp.ne.s32.totalorder %s35, %s38
    %p47 = scmp.eq.s32.totalorder %s16, 1
    %p48 = por %p46, %p47
    %p49 = scmp.ne.s32.totalorder %s38, %s39
    %p50 = scmp.eq.s32.totalorder %s16, 0
    %p51 = por %p49, %p50
    %p52 = scmp.ne.s32.totalorder %s38, %s39
    %p53 = scmp.eq.s32.totalorder %s17, 1
    %p54 = por %p52, %p53
    %p56 = scmp.ne.s32.totalorder %s39, %s55
    %p57 = scmp.eq.s32.totalorder %s17, 0
    %p58 = por %p56, %p57
    %s60 = sadd.s32 %s59, 1
    %p63 = scmp.eq.s32.totalorder %s11, 1
    %p64 = scmp.ne.s32.totalorder %s59, %s61
    %p65 = scmp.eq.s32.totalorder %s11, 0
    %p66 = por %p64, %p65
    %p67 = scmp.ne.s32.totalorder %s59, %s61
    %p68 = scmp.eq.s32.totalorder %s16, 1
    %p69 = por %p67, %p68
    %p70 = scmp.ne.s32.totalorder %s61, %s62
    %p71 = scmp.eq.s32.totalorder %s16, 0
    %p72 = por %p70, %p71
    %p73 = scmp.ne.s32.totalorder %s61, %s62
    %p74 = scmp.eq.s32.totalorder %s17, 1
    %p75 = por %p73, %p74
    %p77 = scmp.ne.s32.totalorder %s62, %s76
    %p78 = scmp.eq.s32.totalorder %s17, 0
    %p79 = por %p77, %p78
    %s81 = sadd.s32 %s80, 1
    %p84 = scmp.eq.s32.totalorder %s11, 1
    %p85 = scmp.ne.s32.totalorder %s80, %s82
    %p86 = scmp.eq.s32.totalorder %s11, 0
    %p87 = por %p85, %p86
    %p88 = scmp.ne.s32.totalorder %s80, %s82
    %p89 = scmp.eq.s32.totalorder %s16, 1
    %p90 = por %p88, %p89
    %p91 = scmp.ne.s32.totalorder %s82, %s83
    %p92 = scmp.eq.s32.totalorder %s16, 0
    %p93 = por %p91, %p92
    %p94 = scmp.ne.s32.totalorder %s82, %s83
    %p95 = scmp.eq.s32.totalorder %s17, 1
    %p96 = por %p94, %p95
    %p98 = scmp.ne.s32.totalorder %s83, %s97
    %p99 = scmp.eq.s32.totalorder %s17, 0
    %p100 = por %p98, %p99
    %s101 = ssub.s32 %s18, %s30
    %s102 = ssub.s32 %s19, %s26
    %s103 = sor.u32 %s101, %s102
    %p104 = scmp.eq.s32.totalorder %s103, 0
    %s106 = sadd.s32 %s105, 1
    %s107 = scalar_select %p104, %s105, %s106
    %p110 = pneg %p104
    %p111 = scmp.eq.s32.totalorder %s11, 1
    %p112 = por %p110, %p111
    %p113 = scmp.ne.s32.totalorder %s105, %s108
    %p114 = scmp.eq.s32.totalorder %s11, 0
    %p115 = por %p113, %p114
    %p116 = scmp.ne.s32.totalorder %s105, %s108
    %p117 = scmp.eq.s32.totalorder %s16, 1
    %p118 = por %p116, %p117
    %p119 = scmp.ne.s32.totalorder %s108, %s109
    %p120 = scmp.eq.s32.totalorder %s16, 0
    %p121 = por %p119, %p120
    %p122 = scmp.ne.s32.totalorder %s108, %s109
    %p123 = scmp.eq.s32.totalorder %s17, 1
    %p124 = por %p122, %p123
    %p126 = scmp.ne.s32.totalorder %s109, %s125
    %p127 = scmp.eq.s32.totalorder %s17, 0
    %p128 = por %p126, %p127
    %s129 = ssub.s32 %s18, %s30
    %s130 = ssub.s32 %s19, %s26
    %s131 = sor.u32 %s129, %s130
    %p132 = scmp.eq.s32.totalorder %s131, 0
    %s134 = sadd.s32 %s133, 1
    %s135 = scalar_select %p132, %s133, %s134
    %p138 = pneg %p132
    %p139 = scmp.eq.s32.totalorder %s11, 1
    %p140 = por %p138, %p139
    %p141 = scmp.ne.s32.totalorder %s133, %s136
    %p142 = scmp.eq.s32.totalorder %s11, 0
    %p143 = por %p141, %p142
    %p144 = scmp.ne.s32.totalorder %s133, %s136
    %p145 = scmp.eq.s32.totalorder %s16, 1
    %p146 = por %p144, %p145
    %p147 = scmp.ne.s32.totalorder %s136, %s137
    %p148 = scmp.eq.s32.totalorder %s16, 0
    %p149 = por %p147, %p148
    %p150 = scmp.ne.s32.totalorder %s136, %s137
    %p151 = scmp.eq.s32.totalorder %s17, 1
    %p152 = por %p150, %p151
    %p154 = scmp.ne.s32.totalorder %s137, %s153
    %p155 = scmp.eq.s32.totalorder %s17, 0
    %p156 = por %p154, %p155
    %p157 = scmp.le.s32.totalorder 1, %s11
    %p158 = scmp.lt.s32.totalorder %s11, 3
    %p159 = pnand %p157, %p158
    %p160 = pneg %p159
    // Predicated region
    $region9: #{decoder_block_forward.4} parent=5 // pred_check
      _
    $region10: #{decoder_block_forward.4} parent=5 // pred_check_branch
      %162 = sbr.rel (%p159) target = $region12
    $region11: #{decoder_block_forward.4} parent=5 // pred_region
      %s163 = ssub.s32 %s11, 1
      // Predicated region
      $region13: #{decoder_block_forward.4} parent=11 // pred_check
        %p164 = pneg %p72
      $region14: #{decoder_block_forward.4} parent=11 // pred_check_branch
        %166 = sbr.rel (%p164) target = $region16
      $region15: #{decoder_block_forward.4} parent=11 // pred_region
        _
      $region16: #{decoder_block_forward.4} parent=11 // pred_fallthru
        _
      // Predicated region
      $region17: #{decoder_block_forward.4} parent=11 // pred_check
        %p167 = pneg %p93
      $region18: #{decoder_block_forward.4} parent=11 // pred_check_branch
        %169 = sbr.rel (%p167) target = $region20
      $region19: #{decoder_block_forward.4} parent=11 // pred_region
        _
      $region20: #{decoder_block_forward.4} parent=11 // pred_fallthru
        _
    $region12: #{decoder_block_forward.4} parent=5 // pred_fallthru
      _
    %p170 = scmp.lt.s32.totalorder %s11, 2
    // Predicated region
    $region21: #{decoder_block_forward.4} parent=5 // pred_check
      %p171 = pneg %p170
    $region22: #{decoder_block_forward.4} parent=5 // pred_check_branch
      %173 = sbr.rel (%p171) target = $region24
    $region23: #{decoder_block_forward.4} parent=5 // pred_region
      // Predicated region
      $region25: #{decoder_block_forward.4} parent=23 // pred_check
        %p174 = pneg %p45
      $region26: #{decoder_block_forward.4} parent=23 // pred_check_branch
        %176 = sbr.rel (%p174) target = $region28
      $region27: #{decoder_block_forward.4} parent=23 // pred_region
        %p177 = scmp.lt.s32.totalorder %s18, 1
        %s178 = scalar_select %p177, %s18, 1
        %p179 = scmp.lt.s32.totalorder %s19, 0
        %s180 = scalar_select %p179, %s19, 0
        %s181 = smul.addr %s180, 43
        %s182 = smul.addr %s178, 43
        %s183 = sadd.s32 %s181, %s182
        %s184 = smul.addr %s183, 4
        %s185 = scalar_lea.vmem %s0, %s184
      $region28: #{decoder_block_forward.4} parent=23 // pred_fallthru
        _
    $region24: #{decoder_block_forward.4} parent=5 // pred_fallthru
      _
    %p186 = scmp.le.s32.totalorder 1, %s11
    %p187 = scmp.lt.s32.totalorder %s11, 3
    %p188 = pnand %p186, %p187
    %p189 = pneg %p188
    // Predicated region
    $region29: #{decoder_block_forward.4} parent=5 // pred_check
      _
    $region30: #{decoder_block_forward.4} parent=5 // pred_check_branch
      %191 = sbr.rel (%p188) target = $region32
    $region31: #{decoder_block_forward.4} parent=5 // pred_region
      %s192 = ssub.s32 %s11, 1
      %p193 = scmp.lt.s32.totalorder %s20, 1
      %s194 = scalar_select %p193, %s20, 1
      %p195 = scmp.lt.s32.totalorder %s21, 0
      %s196 = scalar_select %p195, %s21, 0
      %s197 = smul.addr %s196, 43
      %s198 = smul.addr %s194, 43
      %s199 = sadd.s32 %s197, %s198
      %s200 = smul.addr %s199, 4
      %s201 = scalar_lea.vmem %s0, %s200
      %p202 = pneg %p51
      %p203 = pneg %p48
      %p204 = pneg %p72
      %p205 = pneg %p69
      %p206 = pneg %p93
      %p207 = pneg %p90
      %p208 = pneg %p121
      %p209 = pneg %p118
      %s210 = smul.u32 16, %s21
      %p211 = scmp.lt.s32.totalorder %s20, 1
      %s212 = scalar_select %p211, %s20, 1
      %p213 = scmp.lt.s32.totalorder %s210, 15
      %s214 = scalar_select %p213, %s210, 15
      %s215 = smul.addr %s214, 3
      %s216 = smul.addr %s212, 48
      %s217 = sadd.s32 %s215, %s216
      %s218 = smul.addr %s217, 4
      %s219 = scalar_lea.vmem %s3, %s218
      %p220 = pneg %p149
      %p221 = pneg %p146
      %p222 = scmp.lt.s32.totalorder %s20, 1
      %s223 = scalar_select %p222, %s20, 1
      %p224 = scmp.lt.s32.totalorder %s21, 0
      %s225 = scalar_select %p224, %s21, 0
      %s226 = sadd.s32 %s225, %s223
      %s227 = smul.addr %s226, 2
      %s228 = scalar_lea.vmem %s4, %s227
      %p229 = scmp.lt.s32.totalorder %s20, 1
      %s230 = scalar_select %p229, %s20, 1
      %p231 = scmp.lt.s32.totalorder %s21, 0
      %s232 = scalar_select %p231, %s21, 0
      %s233 = smul.addr %s232, 43
      %s234 = smul.addr %s230, 43
      %s235 = sadd.s32 %s233, %s234
      %s236 = smul.addr %s235, 4
      %s237 = scalar_lea.vmem %s0, %s236
      %s238 = smul.u32 16, %s21
      %p239 = scmp.lt.s32.totalorder %s20, 1
      %s240 = scalar_select %p239, %s20, 1
      %p241 = scmp.lt.s32.totalorder %s238, 15
      %s242 = scalar_select %p241, %s238, 15
      %s243 = smul.addr %s242, 3
      %s244 = smul.addr %s240, 48
      %s245 = sadd.s32 %s243, %s244
      %s246 = smul.addr %s245, 4
      %s247 = scalar_lea.vmem %s3, %s246
      %s248 = smul.u32 16, %s21
      %p249 = scmp.lt.s32.totalorder %s20, 1
      %s250 = scalar_select %p249, %s20, 1
      %p251 = scmp.lt.s32.totalorder %s21, 0
      %s252 = scalar_select %p251, %s21, 0
      %s253 = sadd.s32 %s252, %s250
      %s254 = smul.addr %s253, 2
      %s255 = scalar_lea.vmem %s4, %s254
      %v256 = vld [vmem:[%s237] sm:$0xf]
      %v257 = vld [vmem:[%s237 + $0x4] sm:$0xf]
      %v258 = vld [vmem:[%s237 + $0x8] sm:$0xf]
      %v259 = vld [vmem:[%s237 + $0xc] sm:$0xf]
      %v260 = vld [vmem:[%s237 + $0x10] sm:$0xf]
      %v261 = vld [vmem:[%s237 + $0x14] sm:$0xf]
      %v262 = vld [vmem:[%s237 + $0x18] sm:$0xf]
      %v263 = vld [vmem:[%s237 + $0x1c] sm:$0xf]
      %v264 = vld [vmem:[%s237 + $0x20] sm:$0xf]
      %v265 = vld [vmem:[%s237 + $0x24] sm:$0xf]
      %v266 = vld [vmem:[%s237 + $0x28] sm:$0xf]
      %v267 = vld [vmem:[%s237 + $0x2c] sm:$0xf]
      %v268 = vld [vmem:[%s237 + $0x30] sm:$0xf]
      %v269 = vld [vmem:[%s237 + $0x34] sm:$0xf]
      %v270 = vld [vmem:[%s237 + $0x38] sm:$0xf]
      %v271 = vld [vmem:[%s237 + $0x3c] sm:$0xf]
      %v272 = vld [vmem:[%s237 + $0x40] sm:$0xf]
      %v273 = vld [vmem:[%s237 + $0x44] sm:$0xf]
      %v274 = vld [vmem:[%s237 + $0x48] sm:$0xf]
      %v275 = vld [vmem:[%s237 + $0x4c] sm:$0xf]
      %v276 = vld [vmem:[%s237 + $0x50] sm:$0xf]
      %v277 = vld [vmem:[%s237 + $0x54] sm:$0xf]
      %v278 = vld [vmem:[%s237 + $0x58] sm:$0xf]
      %v279 = vld [vmem:[%s237 + $0x5c] sm:$0xf]
      %v280 = vld [vmem:[%s237 + $0x60] sm:$0xf]
      %v281 = vld [vmem:[%s237 + $0x64] sm:$0xf]
      %v282 = vld [vmem:[%s237 + $0x68] sm:$0xf]
      %v283 = vld [vmem:[%s237 + $0x6c] sm:$0xf]
      %v284 = vld [vmem:[%s237 + $0x70] sm:$0xf]
      %v285 = vld [vmem:[%s237 + $0x74] sm:$0xf]
      %v286 = vld [vmem:[%s237 + $0x78] sm:$0xf]
      %v287 = vld [vmem:[%s237 + $0x7c] sm:$0xf]
      %v288 = vld [vmem:[%s237 + $0x80] sm:$0xf]
      %v289 = vld [vmem:[%s237 + $0x84] sm:$0xf]
      %v290 = vld [vmem:[%s237 + $0x88] sm:$0xf]
      %v291 = vld [vmem:[%s237 + $0x8c] sm:$0xf]
      %v292 = vld [vmem:[%s1] sm:$0xf]
      %v293 = vld [vmem:[%s1 + $0x4] sm:$0xf]
      %v294 = vld [vmem:[%s1 + $0x8] sm:$0xf]
      %v295 = vld [vmem:[%s1 + $0xc] sm:$0xf]
      %v296 = vld [vmem:[%s1 + $0x10] sm:$0xf]
      %v297 = vld [vmem:[%s1 + $0x14] sm:$0xf]
      %v298 = vld [vmem:[%s1 + $0x18] sm:$0xf]
      %v299 = vld [vmem:[%s1 + $0x1c] sm:$0xf]
      %v300 = vld [vmem:[%s1 + $0x20] sm:$0xf]
      %v301 = vld [vmem:[%s1 + $0x24] sm:$0xf]
      %v302 = vld [vmem:[%s1 + $0x28] sm:$0xf]
      %v303 = vld [vmem:[%s1 + $0x2c] sm:$0xf]
      %v304 = vld [vmem:[%s1 + $0x30] sm:$0xf]
      %v305 = vld [vmem:[%s1 + $0x34] sm:$0xf]
      %v306 = vld [vmem:[%s1 + $0x38] sm:$0xf]
      %v307 = vld [vmem:[%s1 + $0x3c] sm:$0xf]
      %v308 = vld [vmem:[%s237 + $0x90] sm:$0x1]
      %s309 = scalar_lea.vmem %s1, 64
      %v310 = vld [vmem:[%s309] sm:$0xf]
      %v311 = vld [vmem:[%s309 + $0x4] sm:$0xf]
      %v312 = vld [vmem:[%s309 + $0x8] sm:$0xf]
      %v313 = vld [vmem:[%s309 + $0xc] sm:$0xf]
      %v314 = vld [vmem:[%s309 + $0x10] sm:$0xf]
      %v315 = vld [vmem:[%s309 + $0x14] sm:$0xf]
      %v316 = vld [vmem:[%s309 + $0x18] sm:$0xf]
      %v317 = vld [vmem:[%s309 + $0x1c] sm:$0xf]
      %v318 = vld [vmem:[%s309 + $0x20] sm:$0xf]
      %v319 = vld [vmem:[%s309 + $0x24] sm:$0xf]
      %v320 = vld [vmem:[%s309 + $0x28] sm:$0xf]
      %v321 = vld [vmem:[%s309 + $0x2c] sm:$0xf]
      %v322 = vld [vmem:[%s309 + $0x30] sm:$0xf]
      %v323 = vld [vmem:[%s309 + $0x34] sm:$0xf]
      %v324 = vld [vmem:[%s309 + $0x38] sm:$0xf]
      %v325 = vld [vmem:[%s309 + $0x3c] sm:$0xf]
      %v363 = vunpack.c.l.b16 %v256
      %v364 = vunpack.c.l.b16 %v257
      %v365 = vunpack.c.l.b16 %v258
      %v366 = vunpack.c.l.b16 %v259
      %v367 = vunpack.c.l.b16 %v260
      %v368 = vunpack.c.l.b16 %v261
      %v369 = vunpack.c.l.b16 %v262
      %v370 = vunpack.c.l.b16 %v263
      %v371 = vunpack.c.l.b16 %v264
      %v372 = vunpack.c.l.b16 %v265
      %v373 = vunpack.c.l.b16 %v266
      %v374 = vunpack.c.l.b16 %v267
      %v375 = vunpack.c.l.b16 %v268
      %v376 = vunpack.c.l.b16 %v269
      %v377 = vunpack.c.l.b16 %v270
      %v378 = vunpack.c.l.b16 %v271
      %v379 = vunpack.c.l.b16 %v272
      %v380 = vunpack.c.l.b16 %v273
      %v381 = vunpack.c.l.b16 %v274
      %v382 = vunpack.c.l.b16 %v275
      %v383 = vunpack.c.l.b16 %v276
      %v384 = vunpack.c.l.b16 %v277
      %v385 = vunpack.c.l.b16 %v278
      %v386 = vunpack.c.l.b16 %v279
      %v387 = vunpack.c.l.b16 %v280
      %v388 = vunpack.c.l.b16 %v281
      %v389 = vunpack.c.l.b16 %v282
      %v390 = vunpack.c.l.b16 %v283
      %v391 = vunpack.c.l.b16 %v284
      %v392 = vunpack.c.l.b16 %v285
      %v393 = vunpack.c.l.b16 %v286
      %v394 = vunpack.c.l.b16 %v287
      %v395 = vunpack.c.l.b16 %v288
      %v396 = vunpack.c.l.b16 %v289
      %v397 = vunpack.c.l.b16 %v290
      %v398 = vunpack.c.l.b16 %v291
      %v399 = vunpack.c.l.b16 %v308
      %v400 = vpack.c.b16 %v364, %v363
      %v401 = vpack.c.b16 %v366, %v365
      %v402 = vpack.c.b16 %v368, %v367
      %v403 = vpack.c.b16 %v370, %v369
      %v404 = vpack.c.b16 %v372, %v371
      %v405 = vpack.c.b16 %v374, %v373
      %v406 = vpack.c.b16 %v376, %v375
      %v407 = vpack.c.b16 %v378, %v377
      %v408 = vpack.c.b16 %v380, %v379
      %v409 = vpack.c.b16 %v382, %v381
      %v410 = vpack.c.b16 %v384, %v383
      %v411 = vpack.c.b16 %v386, %v385
      %v412 = vpack.c.b16 %v388, %v387
      %v413 = vpack.c.b16 %v390, %v389
      %v414 = vpack.c.b16 %v392, %v391
      %v415 = vpack.c.b16 %v394, %v393
      %v416 = vpack.c.b16 %v396, %v395
      %v417 = vpack.c.b16 %v398, %v397
      %v418 = vpack.c.b16 %v399, %v399
      %vm419 = vsmask.f32 7424
      %v421 = vshrl.u32 %v400, 16
      %v423 = vshll.u32 %v400, 16
      %v425 = vrot.slane %v423, 1
      %v426 = vor.u32 %v421, %v425
      %v428 = vshll.u32 %v401, 16
      %v430 = vrot.slane %v428, 1
      %v431 = vsel %vm419, %v426, %v430
      %v432 = vshrl.u32 %v401, 16
      %v434 = vor.u32 %v432, %v430
      %v436 = vshll.u32 %v402, 16
      %v438 = vrot.slane %v436, 1
      %v439 = vsel %vm419, %v434, %v438
      %v440 = vshrl.u32 %v402, 16
      %v442 = vor.u32 %v440, %v438
      %v444 = vshll.u32 %v403, 16
      %v446 = vrot.slane %v444, 1
      %v447 = vsel %vm419, %v442, %v446
      %v448 = vshrl.u32 %v403, 16
      %v450 = vor.u32 %v448, %v446
      %v452 = vshll.u32 %v404, 16
      %v454 = vrot.slane %v452, 1
      %v455 = vsel %vm419, %v450, %v454
      %v456 = vshrl.u32 %v404, 16
      %v458 = vor.u32 %v456, %v454
      %v460 = vshll.u32 %v405, 16
      %v462 = vrot.slane %v460, 1
      %v463 = vsel %vm419, %v458, %v462
      %v464 = vshrl.u32 %v405, 16
      %v466 = vor.u32 %v464, %v462
      %v468 = vshll.u32 %v406, 16
      %v470 = vrot.slane %v468, 1
      %v471 = vsel %vm419, %v466, %v470
      %v472 = vshrl.u32 %v406, 16
      %v474 = vor.u32 %v472, %v470
      %v476 = vshll.u32 %v407, 16
      %v478 = vrot.slane %v476, 1
      %v479 = vsel %vm419, %v474, %v478
      %v480 = vshrl.u32 %v407, 16
      %v482 = vor.u32 %v480, %v478
      %v484 = vshll.u32 %v408, 16
      %v486 = vrot.slane %v484, 1
      %v487 = vsel %vm419, %v482, %v486
      %v488 = vshrl.u32 %v408, 16
      %v490 = vor.u32 %v488, %v486
      %v492 = vshll.u32 %v409, 16
      %v494 = vrot.slane %v492, 1
      %v495 = vsel %vm419, %v490, %v494
      %v496 = vshrl.u32 %v409, 16
      %v498 = vor.u32 %v496, %v494
      %v500 = vshll.u32 %v410, 16
      %v502 = vrot.slane %v500, 1
      %v503 = vsel %vm419, %v498, %v502
      %v504 = vshrl.u32 %v410, 16
      %v506 = vor.u32 %v504, %v502
      %v508 = vshll.u32 %v411, 16
      %v510 = vrot.slane %v508, 1
      %v511 = vsel %vm419, %v506, %v510
      %v512 = vshrl.u32 %v411, 16
      %v514 = vor.u32 %v512, %v510
      %v516 = vshll.u32 %v412, 16
      %v518 = vrot.slane %v516, 1
      %v519 = vsel %vm419, %v514, %v518
      %v520 = vshrl.u32 %v412, 16
      %v522 = vor.u32 %v520, %v518
      %v524 = vshll.u32 %v413, 16
      %v526 = vrot.slane %v524, 1
      %v527 = vsel %vm419, %v522, %v526
      %v528 = vshrl.u32 %v413, 16
      %v530 = vor.u32 %v528, %v526
      %v532 = vshll.u32 %v414, 16
      %v534 = vrot.slane %v532, 1
      %v535 = vsel %vm419, %v530, %v534
      %v536 = vshrl.u32 %v414, 16
      %v538 = vor.u32 %v536, %v534
      %v540 = vshll.u32 %v415, 16
      %v542 = vrot.slane %v540, 1
      %v543 = vsel %vm419, %v538, %v542
      %v544 = vshrl.u32 %v415, 16
      %v546 = vor.u32 %v544, %v542
      %v548 = vshll.u32 %v416, 16
      %v550 = vrot.slane %v548, 1
      %v551 = vsel %vm419, %v546, %v550
      %v552 = vshrl.u32 %v416, 16
      %v554 = vor.u32 %v552, %v550
      %v556 = vshll.u32 %v417, 16
      %v558 = vrot.slane %v556, 1
      %v559 = vsel %vm419, %v554, %v558
      %v560 = vshrl.u32 %v417, 16
      %v562 = vor.u32 %v560, %v558
      %v564 = vshll.u32 %v418, 16
      %v566 = vrot.slane %v564, 1
      %v567 = vsel %vm419, %v562, %v566
      %v602 = vunpack.c.l.b16 %v310
      %v603 = vunpack.c.l.b16 %v311
      %v604 = vunpack.c.l.b16 %v312
      %v605 = vunpack.c.l.b16 %v313
      %v606 = vunpack.c.l.b16 %v314
      %v607 = vunpack.c.l.b16 %v315
      %v608 = vunpack.c.l.b16 %v316
      %v609 = vunpack.c.l.b16 %v317
      %v610 = vunpack.c.l.b16 %v318
      %v611 = vunpack.c.l.b16 %v319
      %v612 = vunpack.c.l.b16 %v320
      %v613 = vunpack.c.l.b16 %v321
      %v614 = vunpack.c.l.b16 %v322
      %v615 = vunpack.c.l.b16 %v323
      %v616 = vunpack.c.l.b16 %v324
      %v617 = vunpack.c.l.b16 %v325
      %v618 = vpack.c.b16 %v603, %v602
      %v619 = vpack.c.b16 %v605, %v604
      %v620 = vpack.c.b16 %v607, %v606
      %v621 = vpack.c.b16 %v609, %v608
      %v622 = vpack.c.b16 %v611, %v610
      %v623 = vpack.c.b16 %v613, %v612
      %v624 = vpack.c.b16 %v615, %v614
      %v625 = vpack.c.b16 %v617, %v616
      %634 = vmatpush.bf16.msra.mxu0 %v625
      %635 = vmatpush.bf16.msra.mxu0 %v624
      %636 = vmatpush.bf16.msra.mxu0 %v623
      %637 = vmatpush.bf16.msra.mxu0 %v622
      %638 = vmatpush.bf16.msra.mxu0 %v621
      %639 = vmatpush.bf16.msra.mxu0 %v620
      %640 = vmatpush.bf16.msra.mxu0 %v619
      %641 = vmatpush.bf16.msra.mxu0 %v618
      %642 = vmatmul.bf16.gmra.mxu0 %v431
      %v643 = vpop.f32.mrf.mxu0
      %v644 = vadd.f32 0.0, %v643
      %v645 = vpop.f32.mrf.mxu0
      %v646 = vadd.f32 0.0, %v645
      %647 = vmatmul.bf16.gmra.mxu0 %v439
      %v648 = vpop.f32.mrf.mxu0
      %v649 = vadd.f32 0.0, %v648
      %v650 = vpop.f32.mrf.mxu0
      %v651 = vadd.f32 0.0, %v650
      %652 = vmatmul.bf16.gmra.mxu0 %v447
      %v653 = vpop.f32.mrf.mxu0
      %v654 = vadd.f32 0.0, %v653
      %v655 = vpop.f32.mrf.mxu0
      %v656 = vadd.f32 0.0, %v655
      %657 = vmatmul.bf16.gmra.mxu0 %v455
      %v658 = vpop.f32.mrf.mxu0
      %v659 = vadd.f32 0.0, %v658
      %v660 = vpop.f32.mrf.mxu0
      %v661 = vadd.f32 0.0, %v660
      %662 = vmatmul.bf16.gmra.mxu0 %v463
      %v663 = vpop.f32.mrf.mxu0
      %v664 = vadd.f32 0.0, %v663
      %v665 = vpop.f32.mrf.mxu0
      %v666 = vadd.f32 0.0, %v665
      %667 = vmatmul.bf16.gmra.mxu0 %v471
      %v668 = vpop.f32.mrf.mxu0
      %v669 = vadd.f32 0.0, %v668
      %v670 = vpop.f32.mrf.mxu0
      %v671 = vadd.f32 0.0, %v670
      %672 = vmatmul.bf16.gmra.mxu0 %v479
      %v673 = vpop.f32.mrf.mxu0
      %v674 = vadd.f32 0.0, %v673
      %v675 = vpop.f32.mrf.mxu0
      %v676 = vadd.f32 0.0, %v675
      %677 = vmatmul.bf16.gmra.mxu0 %v487
      %v678 = vpop.f32.mrf.mxu0
      %v679 = vadd.f32 0.0, %v678
      %v680 = vpop.f32.mrf.mxu0
      %v681 = vadd.f32 0.0, %v680
      %682 = vmatmul.bf16.gmra.mxu0 %v495
      %v683 = vpop.f32.mrf.mxu0
      %v684 = vadd.f32 0.0, %v683
      %v685 = vpop.f32.mrf.mxu0
      %v686 = vadd.f32 0.0, %v685
      %687 = vmatmul.bf16.gmra.mxu0 %v503
      %v688 = vpop.f32.mrf.mxu0
      %v689 = vadd.f32 0.0, %v688
      %v690 = vpop.f32.mrf.mxu0
      %v691 = vadd.f32 0.0, %v690
      %692 = vmatmul.bf16.gmra.mxu0 %v511
      %v693 = vpop.f32.mrf.mxu0
      %v694 = vadd.f32 0.0, %v693
      %v695 = vpop.f32.mrf.mxu0
      %v696 = vadd.f32 0.0, %v695
      %697 = vmatmul.bf16.gmra.mxu0 %v519
      %v698 = vpop.f32.mrf.mxu0
      %v699 = vadd.f32 0.0, %v698
      %v700 = vpop.f32.mrf.mxu0
      %v701 = vadd.f32 0.0, %v700
      %702 = vmatmul.bf16.gmra.mxu0 %v527
      %v703 = vpop.f32.mrf.mxu0
      %v704 = vadd.f32 0.0, %v703
      %v705 = vpop.f32.mrf.mxu0
      %v706 = vadd.f32 0.0, %v705
      %707 = vmatmul.bf16.gmra.mxu0 %v535
      %v708 = vpop.f32.mrf.mxu0
      %v709 = vadd.f32 0.0, %v708
      %v710 = vpop.f32.mrf.mxu0
      %v711 = vadd.f32 0.0, %v710
      %712 = vmatmul.bf16.gmra.mxu0 %v543
      %v713 = vpop.f32.mrf.mxu0
      %v714 = vadd.f32 0.0, %v713
      %v715 = vpop.f32.mrf.mxu0
      %v716 = vadd.f32 0.0, %v715
      %717 = vmatmul.bf16.gmra.mxu0 %v551
      %v718 = vpop.f32.mrf.mxu0
      %v719 = vadd.f32 0.0, %v718
      %v720 = vpop.f32.mrf.mxu0
      %v721 = vadd.f32 0.0, %v720
      %722 = vmatmul.bf16.gmra.mxu0 %v559
      %v723 = vpop.f32.mrf.mxu0
      %v724 = vadd.f32 0.0, %v723
      %v725 = vpop.f32.mrf.mxu0
      %v726 = vadd.f32 0.0, %v725
      %727 = vmatmul.bf16.gmra.mxu0 %v567
      %v728 = vpop.f32.mrf.mxu0
      %v729 = vadd.f32 0.0, %v728
      %v730 = vpop.f32.mrf.mxu0
      %v731 = vadd.f32 0.0, %v730
      %732 = vdwg.mxu0
      %v767 = vunpack.c.l.b16 %v292
      %v768 = vunpack.c.l.b16 %v293
      %v769 = vunpack.c.l.b16 %v294
      %v770 = vunpack.c.l.b16 %v295
      %v771 = vunpack.c.l.b16 %v296
      %v772 = vunpack.c.l.b16 %v297
      %v773 = vunpack.c.l.b16 %v298
      %v774 = vunpack.c.l.b16 %v299
      %v775 = vunpack.c.l.b16 %v300
      %v776 = vunpack.c.l.b16 %v301
      %v777 = vunpack.c.l.b16 %v302
      %v778 = vunpack.c.l.b16 %v303
      %v779 = vunpack.c.l.b16 %v304
      %v780 = vunpack.c.l.b16 %v305
      %v781 = vunpack.c.l.b16 %v306
      %v782 = vunpack.c.l.b16 %v307
      %v783 = vpack.c.b16 %v768, %v767
      %v784 = vpack.c.b16 %v770, %v769
      %v785 = vpack.c.b16 %v772, %v771
      %v786 = vpack.c.b16 %v774, %v773
      %v787 = vpack.c.b16 %v776, %v775
      %v788 = vpack.c.b16 %v778, %v777
      %v789 = vpack.c.b16 %v780, %v779
      %v790 = vpack.c.b16 %v782, %v781
      %799 = vmatpush.bf16.msra.mxu0 %v790
      %800 = vmatpush.bf16.msra.mxu0 %v789
      %801 = vmatpush.bf16.msra.mxu0 %v788
      %802 = vmatpush.bf16.msra.mxu0 %v787
      %803 = vmatpush.bf16.msra.mxu0 %v786
      %804 = vmatpush.bf16.msra.mxu0 %v785
      %805 = vmatpush.bf16.msra.mxu0 %v784
      %806 = vmatpush.bf16.msra.mxu0 %v783
      %807 = vmatmul.bf16.gmra.mxu0 %v400
      %v808 = vpop.f32.mrf.mxu0
      %v809 = vadd.f32 %v644, %v808
      %v810 = vpop.f32.mrf.mxu0
      %v811 = vadd.f32 %v646, %v810
      %812 = vmatmul.bf16.gmra.mxu0 %v401
      %v813 = vpop.f32.mrf.mxu0
      %v814 = vadd.f32 %v649, %v813
      %v815 = vpop.f32.mrf.mxu0
      %v816 = vadd.f32 %v651, %v815
      %817 = vmatmul.bf16.gmra.mxu0 %v402
      %v818 = vpop.f32.mrf.mxu0
      %v819 = vadd.f32 %v654, %v818
      %v820 = vpop.f32.mrf.mxu0
      %v821 = vadd.f32 %v656, %v820
      %822 = vmatmul.bf16.gmra.mxu0 %v403
      %v823 = vpop.f32.mrf.mxu0
      %v824 = vadd.f32 %v659, %v823
      %v825 = vpop.f32.mrf.mxu0
      %v826 = vadd.f32 %v661, %v825
      %827 = vmatmul.bf16.gmra.mxu0 %v404
      %v828 = vpop.f32.mrf.mxu0
      %v829 = vadd.f32 %v664, %v828
      %v830 = vpop.f32.mrf.mxu0
      %v831 = vadd.f32 %v666, %v830
      %832 = vmatmul.bf16.gmra.mxu0 %v405
      %v833 = vpop.f32.mrf.mxu0
      %v834 = vadd.f32 %v669, %v833
      %v835 = vpop.f32.mrf.mxu0
      %v836 = vadd.f32 %v671, %v835
      %837 = vmatmul.bf16.gmra.mxu0 %v406
      %v838 = vpop.f32.mrf.mxu0
      %v839 = vadd.f32 %v674, %v838
      %v840 = vpop.f32.mrf.mxu0
      %v841 = vadd.f32 %v676, %v840
      %842 = vmatmul.bf16.gmra.mxu0 %v407
      %v843 = vpop.f32.mrf.mxu0
      %v844 = vadd.f32 %v679, %v843
      %v845 = vpop.f32.mrf.mxu0
      %v846 = vadd.f32 %v681, %v845
      %847 = vmatmul.bf16.gmra.mxu0 %v408
      %v848 = vpop.f32.mrf.mxu0
      %v849 = vadd.f32 %v684, %v848
      %v850 = vpop.f32.mrf.mxu0
      %v851 = vadd.f32 %v686, %v850
      %852 = vmatmul.bf16.gmra.mxu0 %v409
      %v853 = vpop.f32.mrf.mxu0
      %v854 = vadd.f32 %v689, %v853
      %v855 = vpop.f32.mrf.mxu0
      %v856 = vadd.f32 %v691, %v855
      %857 = vmatmul.bf16.gmra.mxu0 %v410
      %v858 = vpop.f32.mrf.mxu0
      %v859 = vadd.f32 %v694, %v858
      %v860 = vpop.f32.mrf.mxu0
      %v861 = vadd.f32 %v696, %v860
      %862 = vmatmul.bf16.gmra.mxu0 %v411
      %v863 = vpop.f32.mrf.mxu0
      %v864 = vadd.f32 %v699, %v863
      %v865 = vpop.f32.mrf.mxu0
      %v866 = vadd.f32 %v701, %v865
      %867 = vmatmul.bf16.gmra.mxu0 %v412
      %v868 = vpop.f32.mrf.mxu0
      %v869 = vadd.f32 %v704, %v868
      %v870 = vpop.f32.mrf.mxu0
      %v871 = vadd.f32 %v706, %v870
      %872 = vmatmul.bf16.gmra.mxu0 %v413
      %v873 = vpop.f32.mrf.mxu0
      %v874 = vadd.f32 %v709, %v873
      %v875 = vpop.f32.mrf.mxu0
      %v876 = vadd.f32 %v711, %v875
      %877 = vmatmul.bf16.gmra.mxu0 %v414
      %v878 = vpop.f32.mrf.mxu0
      %v879 = vadd.f32 %v714, %v878
      %v880 = vpop.f32.mrf.mxu0
      %v881 = vadd.f32 %v716, %v880
      %882 = vmatmul.bf16.gmra.mxu0 %v415
      %v883 = vpop.f32.mrf.mxu0
      %v884 = vadd.f32 %v719, %v883
      %v885 = vpop.f32.mrf.mxu0
      %v886 = vadd.f32 %v721, %v885
      %887 = vmatmul.bf16.gmra.mxu0 %v416
      %v888 = vpop.f32.mrf.mxu0
      %v889 = vadd.f32 %v724, %v888
      %v890 = vpop.f32.mrf.mxu0
      %v891 = vadd.f32 %v726, %v890
      %892 = vmatmul.bf16.gmra.mxu0 %v417
      %v893 = vpop.f32.mrf.mxu0
      %v894 = vadd.f32 %v729, %v893
      %v895 = vpop.f32.mrf.mxu0
      %v896 = vadd.f32 %v731, %v895
      %897 = vdwg.mxu0
      %v898 = vld [vmem:[%s237] sm:$0xe]
      %s899 = scalar_lea.vmem %s1, 128
      %v900 = vld [vmem:[%s899] sm:$0xf]
      %v901 = vld [vmem:[%s899 + $0x4] sm:$0xf]
      %v902 = vld [vmem:[%s899 + $0x8] sm:$0xf]
      %v903 = vld [vmem:[%s899 + $0xc] sm:$0xf]
      %v904 = vld [vmem:[%s899 + $0x10] sm:$0xf]
      %v905 = vld [vmem:[%s899 + $0x14] sm:$0xf]
      %v906 = vld [vmem:[%s899 + $0x18] sm:$0xf]
      %v907 = vld [vmem:[%s899 + $0x1c] sm:$0xf]
      %v908 = vld [vmem:[%s899 + $0x20] sm:$0xf]
      %v909 = vld [vmem:[%s899 + $0x24] sm:$0xf]
      %v910 = vld [vmem:[%s899 + $0x28] sm:$0xf]
      %v911 = vld [vmem:[%s899 + $0x2c] sm:$0xf]
      %v912 = vld [vmem:[%s899 + $0x30] sm:$0xf]
      %v913 = vld [vmem:[%s899 + $0x34] sm:$0xf]
      %v914 = vld [vmem:[%s899 + $0x38] sm:$0xf]
      %v915 = vld [vmem:[%s899 + $0x3c] sm:$0xf]
      %v917 = vunpack.c.l.b16 %v898
      %v918 = vpack.c.b16 %v364, %v917
      %vm919 = vcmask 1046528
      %v920 = vrot.slane %v918, 1
      %v921 = vrot.slane %v401, 1
      %v922 = vsel %vm919, %v920, %v921
      %v923 = vrot.slane %v402, 1
      %v924 = vsel %vm919, %v921, %v923
      %v925 = vrot.slane %v403, 1
      %v926 = vsel %vm919, %v923, %v925
      %v927 = vrot.slane %v404, 1
      %v928 = vsel %vm919, %v925, %v927
      %v929 = vrot.slane %v405, 1
      %v930 = vsel %vm919, %v927, %v929
      %v931 = vrot.slane %v406, 1
      %v932 = vsel %vm919, %v929, %v931
      %v933 = vrot.slane %v407, 1
      %v934 = vsel %vm919, %v931, %v933
      %v935 = vrot.slane %v408, 1
      %v936 = vsel %vm919, %v933, %v935
      %v937 = vrot.slane %v409, 1
      %v938 = vsel %vm919, %v935, %v937
      %v939 = vrot.slane %v410, 1
      %v940 = vsel %vm919, %v937, %v939
      %v941 = vrot.slane %v411, 1
      %v942 = vsel %vm919, %v939, %v941
      %v943 = vrot.slane %v412, 1
      %v944 = vsel %vm919, %v941, %v943
      %v945 = vrot.slane %v413, 1
      %v946 = vsel %vm919, %v943, %v945
      %v947 = vrot.slane %v414, 1
      %v948 = vsel %vm919, %v945, %v947
      %v949 = vrot.slane %v415, 1
      %v950 = vsel %vm919, %v947, %v949
      %v951 = vrot.slane %v416, 1
      %v952 = vsel %vm919, %v949, %v951
      %v953 = vrot.slane %v417, 1
      %v954 = vsel %vm919, %v951, %v953
      %v955 = vrot.slane %v418, 1
      %v956 = vsel %vm919, %v953, %v955
      %v991 = vunpack.c.l.b16 %v900
      %v992 = vunpack.c.l.b16 %v901
      %v993 = vunpack.c.l.b16 %v902
      %v994 = vunpack.c.l.b16 %v903
      %v995 = vunpack.c.l.b16 %v904
      %v996 = vunpack.c.l.b16 %v905
      %v997 = vunpack.c.l.b16 %v906
      %v998 = vunpack.c.l.b16 %v907
      %v999 = vunpack.c.l.b16 %v908
      %v1000 = vunpack.c.l.b16 %v909
      %v1001 = vunpack.c.l.b16 %v910
      %v1002 = vunpack.c.l.b16 %v911
      %v1003 = vunpack.c.l.b16 %v912
      %v1004 = vunpack.c.l.b16 %v913
      %v1005 = vunpack.c.l.b16 %v914
      %v1006 = vunpack.c.l.b16 %v915
      %v1007 = vpack.c.b16 %v992, %v991
      %v1008 = vpack.c.b16 %v994, %v993
      %v1009 = vpack.c.b16 %v996, %v995
      %v1010 = vpack.c.b16 %v998, %v997
      %v1011 = vpack.c.b16 %v1000, %v999
      %v1012 = vpack.c.b16 %v1002, %v1001
      %v1013 = vpack.c.b16 %v1004, %v1003
      %v1014 = vpack.c.b16 %v1006, %v1005
      %1023 = vmatpush.bf16.msra.mxu0 %v1014
      %1024 = vmatpush.bf16.msra.mxu0 %v1013
      %1025 = vmatpush.bf16.msra.mxu0 %v1012
      %1026 = vmatpush.bf16.msra.mxu0 %v1011
      %1027 = vmatpush.bf16.msra.mxu0 %v1010
      %1028 = vmatpush.bf16.msra.mxu0 %v1009
      %1029 = vmatpush.bf16.msra.mxu0 %v1008
      %1030 = vmatpush.bf16.msra.mxu0 %v1007
      %1031 = vmatmul.bf16.gmra.mxu0 %v922
      %v1032 = vpop.f32.mrf.mxu0
      %v1033 = vadd.f32 0.0, %v1032
      %v1034 = vpop.f32.mrf.mxu0
      %v1035 = vadd.f32 0.0, %v1034
      %1036 = vmatmul.bf16.gmra.mxu0 %v924
      %v1037 = vpop.f32.mrf.mxu0
      %v1038 = vadd.f32 0.0, %v1037
      %v1039 = vpop.f32.mrf.mxu0
      %v1040 = vadd.f32 0.0, %v1039
      %1041 = vmatmul.bf16.gmra.mxu0 %v926
      %v1042 = vpop.f32.mrf.mxu0
      %v1043 = vadd.f32 0.0, %v1042
      %v1044 = vpop.f32.mrf.mxu0
      %v1045 = vadd.f32 0.0, %v1044
      %1046 = vmatmul.bf16.gmra.mxu0 %v928
      %v1047 = vpop.f32.mrf.mxu0
      %v1048 = vadd.f32 0.0, %v1047
      %v1049 = vpop.f32.mrf.mxu0
      %v1050 = vadd.f32 0.0, %v1049
      %1051 = vmatmul.bf16.gmra.mxu0 %v930
      %v1052 = vpop.f32.mrf.mxu0
      %v1053 = vadd.f32 0.0, %v1052
      %v1054 = vpop.f32.mrf.mxu0
      %v1055 = vadd.f32 0.0, %v1054
      %1056 = vmatmul.bf16.gmra.mxu0 %v932
      %v1057 = vpop.f32.mrf.mxu0
      %v1058 = vadd.f32 0.0, %v1057
      %v1059 = vpop.f32.mrf.mxu0
      %v1060 = vadd.f32 0.0, %v1059
      %1061 = vmatmul.bf16.gmra.mxu0 %v934
      %v1062 = vpop.f32.mrf.mxu0
      %v1063 = vadd.f32 0.0, %v1062
      %v1064 = vpop.f32.mrf.mxu0
      %v1065 = vadd.f32 0.0, %v1064
      %1066 = vmatmul.bf16.gmra.mxu0 %v936
      %v1067 = vpop.f32.mrf.mxu0
      %v1068 = vadd.f32 0.0, %v1067
      %v1069 = vpop.f32.mrf.mxu0
      %v1070 = vadd.f32 0.0, %v1069
      %1071 = vmatmul.bf16.gmra.mxu0 %v938
      %v1072 = vpop.f32.mrf.mxu0
      %v1073 = vadd.f32 0.0, %v1072
      %v1074 = vpop.f32.mrf.mxu0
      %v1075 = vadd.f32 0.0, %v1074
      %1076 = vmatmul.bf16.gmra.mxu0 %v940
      %v1077 = vpop.f32.mrf.mxu0
      %v1078 = vadd.f32 0.0, %v1077
      %v1079 = vpop.f32.mrf.mxu0
      %v1080 = vadd.f32 0.0, %v1079
      %1081 = vmatmul.bf16.gmra.mxu0 %v942
      %v1082 = vpop.f32.mrf.mxu0
      %v1083 = vadd.f32 0.0, %v1082
      %v1084 = vpop.f32.mrf.mxu0
      %v1085 = vadd.f32 0.0, %v1084
      %1086 = vmatmul.bf16.gmra.mxu0 %v944
      %v1087 = vpop.f32.mrf.mxu0
      %v1088 = vadd.f32 0.0, %v1087
      %v1089 = vpop.f32.mrf.mxu0
      %v1090 = vadd.f32 0.0, %v1089
      %1091 = vmatmul.bf16.gmra.mxu0 %v946
      %v1092 = vpop.f32.mrf.mxu0
      %v1093 = vadd.f32 0.0, %v1092
      %v1094 = vpop.f32.mrf.mxu0
      %v1095 = vadd.f32 0.0, %v1094
      %1096 = vmatmul.bf16.gmra.mxu0 %v948
      %v1097 = vpop.f32.mrf.mxu0
      %v1098 = vadd.f32 0.0, %v1097
      %v1099 = vpop.f32.mrf.mxu0
      %v1100 = vadd.f32 0.0, %v1099
      %1101 = vmatmul.bf16.gmra.mxu0 %v950
      %v1102 = vpop.f32.mrf.mxu0
      %v1103 = vadd.f32 0.0, %v1102
      %v1104 = vpop.f32.mrf.mxu0
      %v1105 = vadd.f32 0.0, %v1104
      %1106 = vmatmul.bf16.gmra.mxu0 %v952
      %v1107 = vpop.f32.mrf.mxu0
      %v1108 = vadd.f32 0.0, %v1107
      %v1109 = vpop.f32.mrf.mxu0
      %v1110 = vadd.f32 0.0, %v1109
      %1111 = vmatmul.bf16.gmra.mxu0 %v954
      %v1112 = vpop.f32.mrf.mxu0
      %v1113 = vadd.f32 0.0, %v1112
      %v1114 = vpop.f32.mrf.mxu0
      %v1115 = vadd.f32 0.0, %v1114
      %1116 = vmatmul.bf16.gmra.mxu0 %v956
      %v1117 = vpop.f32.mrf.mxu0
      %v1118 = vadd.f32 0.0, %v1117
      %v1119 = vpop.f32.mrf.mxu0
      %v1120 = vadd.f32 0.0, %v1119
      %1121 = vdwg.mxu0
      %v1122 = vadd.f32 %v809, %v1033
      %v1123 = vadd.f32 %v811, %v1035
      %v1124 = vadd.f32 %v814, %v1038
      %v1125 = vadd.f32 %v816, %v1040
      %v1126 = vadd.f32 %v819, %v1043
      %v1127 = vadd.f32 %v821, %v1045
      %v1128 = vadd.f32 %v824, %v1048
      %v1129 = vadd.f32 %v826, %v1050
      %v1130 = vadd.f32 %v829, %v1053
      %v1131 = vadd.f32 %v831, %v1055
      %v1132 = vadd.f32 %v834, %v1058
      %v1133 = vadd.f32 %v836, %v1060
      %v1134 = vadd.f32 %v839, %v1063
      %v1135 = vadd.f32 %v841, %v1065
      %v1136 = vadd.f32 %v844, %v1068
      %v1137 = vadd.f32 %v846, %v1070
      %v1138 = vadd.f32 %v849, %v1073
      %v1139 = vadd.f32 %v851, %v1075
      %v1140 = vadd.f32 %v854, %v1078
      %v1141 = vadd.f32 %v856, %v1080
      %v1142 = vadd.f32 %v859, %v1083
      %v1143 = vadd.f32 %v861, %v1085
      %v1144 = vadd.f32 %v864, %v1088
      %v1145 = vadd.f32 %v866, %v1090
      %v1146 = vadd.f32 %v869, %v1093
      %v1147 = vadd.f32 %v871, %v1095
      %v1148 = vadd.f32 %v874, %v1098
      %v1149 = vadd.f32 %v876, %v1100
      %v1150 = vadd.f32 %v879, %v1103
      %v1151 = vadd.f32 %v881, %v1105
      %v1152 = vadd.f32 %v884, %v1108
      %v1153 = vadd.f32 %v886, %v1110
      %v1154 = vadd.f32 %v889, %v1113
      %v1155 = vadd.f32 %v891, %v1115
      %v1156 = vadd.f32 %v894, %v1118
      %v1157 = vadd.f32 %v896, %v1120
      %v1158 = vld [vmem:[%s237 + $0x8] sm:$0xe]
      %v1159 = vld [vmem:[%s237 + $0xc] sm:$0xf]
      %v1160 = vld [vmem:[%s237 + $0x10] sm:$0xf]
      %v1161 = vld [vmem:[%s237 + $0x14] sm:$0xf]
      %v1162 = vld [vmem:[%s237 + $0x18] sm:$0xf]
      %v1163 = vld [vmem:[%s237 + $0x1c] sm:$0xf]
      %v1164 = vld [vmem:[%s237 + $0x20] sm:$0xf]
      %v1165 = vld [vmem:[%s237 + $0x24] sm:$0xf]
      %v1166 = vld [vmem:[%s237 + $0x28] sm:$0xf]
      %v1167 = vld [vmem:[%s237 + $0x2c] sm:$0xf]
      %v1168 = vld [vmem:[%s237 + $0x30] sm:$0xf]
      %v1169 = vld [vmem:[%s237 + $0x34] sm:$0xf]
      %v1170 = vld [vmem:[%s237 + $0x38] sm:$0xf]
      %v1171 = vld [vmem:[%s237 + $0x3c] sm:$0xf]
      %v1172 = vld [vmem:[%s237 + $0x40] sm:$0xf]
      %v1173 = vld [vmem:[%s237 + $0x44] sm:$0xf]
      %v1174 = vld [vmem:[%s237 + $0x48] sm:$0xf]
      %v1175 = vld [vmem:[%s237 + $0x4c] sm:$0xf]
      %v1176 = vld [vmem:[%s237 + $0x50] sm:$0xf]
      %v1177 = vld [vmem:[%s237 + $0x54] sm:$0xf]
      %v1178 = vld [vmem:[%s237 + $0x58] sm:$0xf]
      %v1179 = vld [vmem:[%s237 + $0x5c] sm:$0xf]
      %v1180 = vld [vmem:[%s237 + $0x60] sm:$0xf]
      %v1181 = vld [vmem:[%s237 + $0x64] sm:$0xf]
      %v1182 = vld [vmem:[%s237 + $0x68] sm:$0xf]
      %v1183 = vld [vmem:[%s237 + $0x6c] sm:$0xf]
      %v1184 = vld [vmem:[%s237 + $0x70] sm:$0xf]
      %v1185 = vld [vmem:[%s237 + $0x74] sm:$0xf]
      %v1186 = vld [vmem:[%s237 + $0x78] sm:$0xf]
      %v1187 = vld [vmem:[%s237 + $0x7c] sm:$0xf]
      %v1188 = vld [vmem:[%s237 + $0x80] sm:$0xf]
      %v1189 = vld [vmem:[%s237 + $0x84] sm:$0xf]
      %v1190 = vld [vmem:[%s237 + $0x88] sm:$0xf]
      %v1191 = vld [vmem:[%s237 + $0x8c] sm:$0xf]
      %v1192 = vld [vmem:[%s237 + $0x90] sm:$0xf]
      %v1193 = vld [vmem:[%s237 + $0x94] sm:$0xf]
      %v1194 = vld [vmem:[%s237 + $0x98] sm:$0x1]
      %s1195 = scalar_lea.vmem %s1, 192
      %v1196 = vld [vmem:[%s1195] sm:$0xf]
      %v1197 = vld [vmem:[%s1195 + $0x4] sm:$0xf]
      %v1198 = vld [vmem:[%s1195 + $0x8] sm:$0xf]
      %v1199 = vld [vmem:[%s1195 + $0xc] sm:$0xf]
      %v1200 = vld [vmem:[%s1195 + $0x10] sm:$0xf]
      %v1201 = vld [vmem:[%s1195 + $0x14] sm:$0xf]
      %v1202 = vld [vmem:[%s1195 + $0x18] sm:$0xf]
      %v1203 = vld [vmem:[%s1195 + $0x1c] sm:$0xf]
      %v1204 = vld [vmem:[%s1195 + $0x20] sm:$0xf]
      %v1205 = vld [vmem:[%s1195 + $0x24] sm:$0xf]
      %v1206 = vld [vmem:[%s1195 + $0x28] sm:$0xf]
      %v1207 = vld [vmem:[%s1195 + $0x2c] sm:$0xf]
      %v1208 = vld [vmem:[%s1195 + $0x30] sm:$0xf]
      %v1209 = vld [vmem:[%s1195 + $0x34] sm:$0xf]
      %v1210 = vld [vmem:[%s1195 + $0x38] sm:$0xf]
      %v1211 = vld [vmem:[%s1195 + $0x3c] sm:$0xf]
      %v1249 = vunpack.c.l.b16 %v1158
      %v1250 = vunpack.c.l.b16 %v1159
      %v1251 = vunpack.c.l.b16 %v1160
      %v1252 = vunpack.c.l.b16 %v1161
      %v1253 = vunpack.c.l.b16 %v1162
      %v1254 = vunpack.c.l.b16 %v1163
      %v1255 = vunpack.c.l.b16 %v1164
      %v1256 = vunpack.c.l.b16 %v1165
      %v1257 = vunpack.c.l.b16 %v1166
      %v1258 = vunpack.c.l.b16 %v1167
      %v1259 = vunpack.c.l.b16 %v1168
      %v1260 = vunpack.c.l.b16 %v1169
      %v1261 = vunpack.c.l.b16 %v1170
      %v1262 = vunpack.c.l.b16 %v1171
      %v1263 = vunpack.c.l.b16 %v1172
      %v1264 = vunpack.c.l.b16 %v1173
      %v1265 = vunpack.c.l.b16 %v1174
      %v1266 = vunpack.c.l.b16 %v1175
      %v1267 = vunpack.c.l.b16 %v1176
      %v1268 = vunpack.c.l.b16 %v1177
      %v1269 = vunpack.c.l.b16 %v1178
      %v1270 = vunpack.c.l.b16 %v1179
      %v1271 = vunpack.c.l.b16 %v1180
      %v1272 = vunpack.c.l.b16 %v1181
      %v1273 = vunpack.c.l.b16 %v1182
      %v1274 = vunpack.c.l.b16 %v1183
      %v1275 = vunpack.c.l.b16 %v1184
      %v1276 = vunpack.c.l.b16 %v1185
      %v1277 = vunpack.c.l.b16 %v1186
      %v1278 = vunpack.c.l.b16 %v1187
      %v1279 = vunpack.c.l.b16 %v1188
      %v1280 = vunpack.c.l.b16 %v1189
      %v1281 = vunpack.c.l.b16 %v1190
      %v1282 = vunpack.c.l.b16 %v1191
      %v1283 = vunpack.c.l.b16 %v1192
      %v1284 = vunpack.c.l.b16 %v1193
      %v1285 = vunpack.c.l.b16 %v1194
      %v1286 = vpack.c.b16 %v1250, %v1249
      %v1287 = vpack.c.b16 %v1252, %v1251
      %v1288 = vpack.c.b16 %v1254, %v1253
      %v1289 = vpack.c.b16 %v1256, %v1255
      %v1290 = vpack.c.b16 %v1258, %v1257
      %v1291 = vpack.c.b16 %v1260, %v1259
      %v1292 = vpack.c.b16 %v1262, %v1261
      %v1293 = vpack.c.b16 %v1264, %v1263
      %v1294 = vpack.c.b16 %v1266, %v1265
      %v1295 = vpack.c.b16 %v1268, %v1267
      %v1296 = vpack.c.b16 %v1270, %v1269
      %v1297 = vpack.c.b16 %v1272, %v1271
      %v1298 = vpack.c.b16 %v1274, %v1273
      %v1299 = vpack.c.b16 %v1276, %v1275
      %v1300 = vpack.c.b16 %v1278, %v1277
      %v1301 = vpack.c.b16 %v1280, %v1279
      %v1302 = vpack.c.b16 %v1282, %v1281
      %v1303 = vpack.c.b16 %v1284, %v1283
      %v1304 = vpack.c.b16 %v1285, %v1285
      %v1305 = vrot.slane %v1286, 1
      %v1306 = vrot.slane %v1287, 1
      %v1307 = vsel %vm919, %v1305, %v1306
      %v1308 = vrot.slane %v1288, 1
      %v1309 = vsel %vm919, %v1306, %v1308
      %v1310 = vrot.slane %v1289, 1
      %v1311 = vsel %vm919, %v1308, %v1310
      %v1312 = vrot.slane %v1290, 1
      %v1313 = vsel %vm919, %v1310, %v1312
      %v1314 = vrot.slane %v1291, 1
      %v1315 = vsel %vm919, %v1312, %v1314
      %v1316 = vrot.slane %v1292, 1
      %v1317 = vsel %vm919, %v1314, %v1316
      %v1318 = vrot.slane %v1293, 1
      %v1319 = vsel %vm919, %v1316, %v1318
      %v1320 = vrot.slane %v1294, 1
      %v1321 = vsel %vm919, %v1318, %v1320
      %v1322 = vrot.slane %v1295, 1
      %v1323 = vsel %vm919, %v1320, %v1322
      %v1324 = vrot.slane %v1296, 1
      %v1325 = vsel %vm919, %v1322, %v1324
      %v1326 = vrot.slane %v1297, 1
      %v1327 = vsel %vm919, %v1324, %v1326
      %v1328 = vrot.slane %v1298, 1
      %v1329 = vsel %vm919, %v1326, %v1328
      %v1330 = vrot.slane %v1299, 1
      %v1331 = vsel %vm919, %v1328, %v1330
      %v1332 = vrot.slane %v1300, 1
      %v1333 = vsel %vm919, %v1330, %v1332
      %v1334 = vrot.slane %v1301, 1
      %v1335 = vsel %vm919, %v1332, %v1334
      %v1336 = vrot.slane %v1302, 1
      %v1337 = vsel %vm919, %v1334, %v1336
      %v1338 = vrot.slane %v1303, 1
      %v1339 = vsel %vm919, %v1336, %v1338
      %v1340 = vrot.slane %v1304, 1
      %v1341 = vsel %vm919, %v1338, %v1340
      %v1376 = vunpack.c.l.b16 %v1196
      %v1377 = vunpack.c.l.b16 %v1197
      %v1378 = vunpack.c.l.b16 %v1198
      %v1379 = vunpack.c.l.b16 %v1199
      %v1380 = vunpack.c.l.b16 %v1200
      %v1381 = vunpack.c.l.b16 %v1201
      %v1382 = vunpack.c.l.b16 %v1202
      %v1383 = vunpack.c.l.b16 %v1203
      %v1384 = vunpack.c.l.b16 %v1204
      %v1385 = vunpack.c.l.b16 %v1205
      %v1386 = vunpack.c.l.b16 %v1206
      %v1387 = vunpack.c.l.b16 %v1207
      %v1388 = vunpack.c.l.b16 %v1208
      %v1389 = vunpack.c.l.b16 %v1209
      %v1390 = vunpack.c.l.b16 %v1210
      %v1391 = vunpack.c.l.b16 %v1211
      %v1392 = vpack.c.b16 %v1377, %v1376
      %v1393 = vpack.c.b16 %v1379, %v1378
      %v1394 = vpack.c.b16 %v1381, %v1380
      %v1395 = vpack.c.b16 %v1383, %v1382
      %v1396 = vpack.c.b16 %v1385, %v1384
      %v1397 = vpack.c.b16 %v1387, %v1386
      %v1398 = vpack.c.b16 %v1389, %v1388
      %v1399 = vpack.c.b16 %v1391, %v1390
      %1408 = vmatpush.bf16.msra.mxu0 %v1399
      %1409 = vmatpush.bf16.msra.mxu0 %v1398
      %1410 = vmatpush.bf16.msra.mxu0 %v1397
      %1411 = vmatpush.bf16.msra.mxu0 %v1396
      %1412 = vmatpush.bf16.msra.mxu0 %v1395
      %1413 = vmatpush.bf16.msra.mxu0 %v1394
      %1414 = vmatpush.bf16.msra.mxu0 %v1393
      %1415 = vmatpush.bf16.msra.mxu0 %v1392
      %1416 = vmatmul.bf16.gmra.mxu0 %v1307
      %v1417 = vpop.f32.mrf.mxu0
      %v1418 = vadd.f32 0.0, %v1417
      %v1419 = vpop.f32.mrf.mxu0
      %v1420 = vadd.f32 0.0, %v1419
      %1421 = vmatmul.bf16.gmra.mxu0 %v1309
      %v1422 = vpop.f32.mrf.mxu0
      %v1423 = vadd.f32 0.0, %v1422
      %v1424 = vpop.f32.mrf.mxu0
      %v1425 = vadd.f32 0.0, %v1424
      %1426 = vmatmul.bf16.gmra.mxu0 %v1311
      %v1427 = vpop.f32.mrf.mxu0
      %v1428 = vadd.f32 0.0, %v1427
      %v1429 = vpop.f32.mrf.mxu0
      %v1430 = vadd.f32 0.0, %v1429
      %1431 = vmatmul.bf16.gmra.mxu0 %v1313
      %v1432 = vpop.f32.mrf.mxu0
      %v1433 = vadd.f32 0.0, %v1432
      %v1434 = vpop.f32.mrf.mxu0
      %v1435 = vadd.f32 0.0, %v1434
      %1436 = vmatmul.bf16.gmra.mxu0 %v1315
      %v1437 = vpop.f32.mrf.mxu0
      %v1438 = vadd.f32 0.0, %v1437
      %v1439 = vpop.f32.mrf.mxu0
      %v1440 = vadd.f32 0.0, %v1439
      %1441 = vmatmul.bf16.gmra.mxu0 %v1317
      %v1442 = vpop.f32.mrf.mxu0
      %v1443 = vadd.f32 0.0, %v1442
      %v1444 = vpop.f32.mrf.mxu0
      %v1445 = vadd.f32 0.0, %v1444
      %1446 = vmatmul.bf16.gmra.mxu0 %v1319
      %v1447 = vpop.f32.mrf.mxu0
      %v1448 = vadd.f32 0.0, %v1447
      %v1449 = vpop.f32.mrf.mxu0
      %v1450 = vadd.f32 0.0, %v1449
      %1451 = vmatmul.bf16.gmra.mxu0 %v1321
      %v1452 = vpop.f32.mrf.mxu0
      %v1453 = vadd.f32 0.0, %v1452
      %v1454 = vpop.f32.mrf.mxu0
      %v1455 = vadd.f32 0.0, %v1454
      %1456 = vmatmul.bf16.gmra.mxu0 %v1323
      %v1457 = vpop.f32.mrf.mxu0
      %v1458 = vadd.f32 0.0, %v1457
      %v1459 = vpop.f32.mrf.mxu0
      %v1460 = vadd.f32 0.0, %v1459
      %1461 = vmatmul.bf16.gmra.mxu0 %v1325
      %v1462 = vpop.f32.mrf.mxu0
      %v1463 = vadd.f32 0.0, %v1462
      %v1464 = vpop.f32.mrf.mxu0
      %v1465 = vadd.f32 0.0, %v1464
      %1466 = vmatmul.bf16.gmra.mxu0 %v1327
      %v1467 = vpop.f32.mrf.mxu0
      %v1468 = vadd.f32 0.0, %v1467
      %v1469 = vpop.f32.mrf.mxu0
      %v1470 = vadd.f32 0.0, %v1469
      %1471 = vmatmul.bf16.gmra.mxu0 %v1329
      %v1472 = vpop.f32.mrf.mxu0
      %v1473 = vadd.f32 0.0, %v1472
      %v1474 = vpop.f32.mrf.mxu0
      %v1475 = vadd.f32 0.0, %v1474
      %1476 = vmatmul.bf16.gmra.mxu0 %v1331
      %v1477 = vpop.f32.mrf.mxu0
      %v1478 = vadd.f32 0.0, %v1477
      %v1479 = vpop.f32.mrf.mxu0
      %v1480 = vadd.f32 0.0, %v1479
      %1481 = vmatmul.bf16.gmra.mxu0 %v1333
      %v1482 = vpop.f32.mrf.mxu0
      %v1483 = vadd.f32 0.0, %v1482
      %v1484 = vpop.f32.mrf.mxu0
      %v1485 = vadd.f32 0.0, %v1484
      %1486 = vmatmul.bf16.gmra.mxu0 %v1335
      %v1487 = vpop.f32.mrf.mxu0
      %v1488 = vadd.f32 0.0, %v1487
      %v1489 = vpop.f32.mrf.mxu0
      %v1490 = vadd.f32 0.0, %v1489
      %1491 = vmatmul.bf16.gmra.mxu0 %v1337
      %v1492 = vpop.f32.mrf.mxu0
      %v1493 = vadd.f32 0.0, %v1492
      %v1494 = vpop.f32.mrf.mxu0
      %v1495 = vadd.f32 0.0, %v1494
      %1496 = vmatmul.bf16.gmra.mxu0 %v1339
      %v1497 = vpop.f32.mrf.mxu0
      %v1498 = vadd.f32 0.0, %v1497
      %v1499 = vpop.f32.mrf.mxu0
      %v1500 = vadd.f32 0.0, %v1499
      %1501 = vmatmul.bf16.gmra.mxu0 %v1341
      %v1502 = vpop.f32.mrf.mxu0
      %v1503 = vadd.f32 0.0, %v1502
      %v1504 = vpop.f32.mrf.mxu0
      %v1505 = vadd.f32 0.0, %v1504
      %1506 = vdwg.mxu0
      %v1507 = vadd.f32 %v1122, %v1418
      %v1508 = vadd.f32 %v1123, %v1420
      %v1509 = vadd.f32 %v1124, %v1423
      %v1510 = vadd.f32 %v1125, %v1425
      %v1511 = vadd.f32 %v1126, %v1428
      %v1512 = vadd.f32 %v1127, %v1430
      %v1513 = vadd.f32 %v1128, %v1433
      %v1514 = vadd.f32 %v1129, %v1435
      %v1515 = vadd.f32 %v1130, %v1438
      %v1516 = vadd.f32 %v1131, %v1440
      %v1517 = vadd.f32 %v1132, %v1443
      %v1518 = vadd.f32 %v1133, %v1445
      %v1519 = vadd.f32 %v1134, %v1448
      %v1520 = vadd.f32 %v1135, %v1450
      %v1521 = vadd.f32 %v1136, %v1453
      %v1522 = vadd.f32 %v1137, %v1455
      %v1523 = vadd.f32 %v1138, %v1458
      %v1524 = vadd.f32 %v1139, %v1460
      %v1525 = vadd.f32 %v1140, %v1463
      %v1526 = vadd.f32 %v1141, %v1465
      %v1527 = vadd.f32 %v1142, %v1468
      %v1528 = vadd.f32 %v1143, %v1470
      %v1529 = vadd.f32 %v1144, %v1473
      %v1530 = vadd.f32 %v1145, %v1475
      %v1531 = vadd.f32 %v1146, %v1478
      %v1532 = vadd.f32 %v1147, %v1480
      %v1533 = vadd.f32 %v1148, %v1483
      %v1534 = vadd.f32 %v1149, %v1485
      %v1535 = vadd.f32 %v1150, %v1488
      %v1536 = vadd.f32 %v1151, %v1490
      %v1537 = vadd.f32 %v1152, %v1493
      %v1538 = vadd.f32 %v1153, %v1495
      %v1539 = vadd.f32 %v1154, %v1498
      %v1540 = vadd.f32 %v1155, %v1500
      %v1541 = vadd.f32 %v1156, %v1503
      %v1542 = vadd.f32 %v1157, %v1505
      %v1543 = vld [vmem:[%s237 + $0x98] sm:$0x3]
      %s1544 = scalar_lea.vmem %s1, 256
      %v1545 = vld [vmem:[%s1544] sm:$0xf]
      %v1546 = vld [vmem:[%s1544 + $0x4] sm:$0xf]
      %v1547 = vld [vmem:[%s1544 + $0x8] sm:$0xf]
      %v1548 = vld [vmem:[%s1544 + $0xc] sm:$0xf]
      %v1549 = vld [vmem:[%s1544 + $0x10] sm:$0xf]
      %v1550 = vld [vmem:[%s1544 + $0x14] sm:$0xf]
      %v1551 = vld [vmem:[%s1544 + $0x18] sm:$0xf]
      %v1552 = vld [vmem:[%s1544 + $0x1c] sm:$0xf]
      %v1553 = vld [vmem:[%s1544 + $0x20] sm:$0xf]
      %v1554 = vld [vmem:[%s1544 + $0x24] sm:$0xf]
      %v1555 = vld [vmem:[%s1544 + $0x28] sm:$0xf]
      %v1556 = vld [vmem:[%s1544 + $0x2c] sm:$0xf]
      %v1557 = vld [vmem:[%s1544 + $0x30] sm:$0xf]
      %v1558 = vld [vmem:[%s1544 + $0x34] sm:$0xf]
      %v1559 = vld [vmem:[%s1544 + $0x38] sm:$0xf]
      %v1560 = vld [vmem:[%s1544 + $0x3c] sm:$0xf]
      %v1562 = vunpack.c.l.b16 %v1543
      %v1563 = vpack.c.b16 %v1562, %v1562
      %vm1564 = vsmask.f32 6400
      %v1566 = vshrl.u32 %v1286, 16
      %v1568 = vrot.slane %v1566, 1
      %v1569 = vshll.u32 %v1286, 16
      %v1571 = vrot.slane %v1569, 2
      %v1572 = vor.u32 %v1568, %v1571
      %v1574 = vshrl.u32 %v1287, 16
      %v1576 = vrot.slane %v1574, 1
      %v1577 = vshll.u32 %v1287, 16
      %v1579 = vrot.slane %v1577, 2
      %v1580 = vor.u32 %v1576, %v1579
      %v1581 = vsel %vm1564, %v1572, %v1580
      %v1583 = vshrl.u32 %v1288, 16
      %v1585 = vrot.slane %v1583, 1
      %v1586 = vshll.u32 %v1288, 16
      %v1588 = vrot.slane %v1586, 2
      %v1589 = vor.u32 %v1585, %v1588
      %v1590 = vsel %vm1564, %v1580, %v1589
      %v1592 = vshrl.u32 %v1289, 16
      %v1594 = vrot.slane %v1592, 1
      %v1595 = vshll.u32 %v1289, 16
      %v1597 = vrot.slane %v1595, 2
      %v1598 = vor.u32 %v1594, %v1597
      %v1599 = vsel %vm1564, %v1589, %v1598
      %v1601 = vshrl.u32 %v1290, 16
      %v1603 = vrot.slane %v1601, 1
      %v1604 = vshll.u32 %v1290, 16
      %v1606 = vrot.slane %v1604, 2
      %v1607 = vor.u32 %v1603, %v1606
      %v1608 = vsel %vm1564, %v1598, %v1607
      %v1610 = vshrl.u32 %v1291, 16
      %v1612 = vrot.slane %v1610, 1
      %v1613 = vshll.u32 %v1291, 16
      %v1615 = vrot.slane %v1613, 2
      %v1616 = vor.u32 %v1612, %v1615
      %v1617 = vsel %vm1564, %v1607, %v1616
      %v1619 = vshrl.u32 %v1292, 16
      %v1621 = vrot.slane %v1619, 1
      %v1622 = vshll.u32 %v1292, 16
      %v1624 = vrot.slane %v1622, 2
      %v1625 = vor.u32 %v1621, %v1624
      %v1626 = vsel %vm1564, %v1616, %v1625
      %v1628 = vshrl.u32 %v1293, 16
      %v1630 = vrot.slane %v1628, 1
      %v1631 = vshll.u32 %v1293, 16
      %v1633 = vrot.slane %v1631, 2
      %v1634 = vor.u32 %v1630, %v1633
      %v1635 = vsel %vm1564, %v1625, %v1634
      %v1637 = vshrl.u32 %v1294, 16
      %v1639 = vrot.slane %v1637, 1
      %v1640 = vshll.u32 %v1294, 16
      %v1642 = vrot.slane %v1640, 2
      %v1643 = vor.u32 %v1639, %v1642
      %v1644 = vsel %vm1564, %v1634, %v1643
      %v1646 = vshrl.u32 %v1295, 16
      %v1648 = vrot.slane %v1646, 1
      %v1649 = vshll.u32 %v1295, 16
      %v1651 = vrot.slane %v1649, 2
      %v1652 = vor.u32 %v1648, %v1651
      %v1653 = vsel %vm1564, %v1643, %v1652
      %v1655 = vshrl.u32 %v1296, 16
      %v1657 = vrot.slane %v1655, 1
      %v1658 = vshll.u32 %v1296, 16
      %v1660 = vrot.slane %v1658, 2
      %v1661 = vor.u32 %v1657, %v1660
      %v1662 = vsel %vm1564, %v1652, %v1661
      %v1664 = vshrl.u32 %v1297, 16
      %v1666 = vrot.slane %v1664, 1
      %v1667 = vshll.u32 %v1297, 16
      %v1669 = vrot.slane %v1667, 2
      %v1670 = vor.u32 %v1666, %v1669
      %v1671 = vsel %vm1564, %v1661, %v1670
      %v1673 = vshrl.u32 %v1298, 16
      %v1675 = vrot.slane %v1673, 1
      %v1676 = vshll.u32 %v1298, 16
      %v1678 = vrot.slane %v1676, 2
      %v1679 = vor.u32 %v1675, %v1678
      %v1680 = vsel %vm1564, %v1670, %v1679
      %v1682 = vshrl.u32 %v1299, 16
      %v1684 = vrot.slane %v1682, 1
      %v1685 = vshll.u32 %v1299, 16
      %v1687 = vrot.slane %v1685, 2
      %v1688 = vor.u32 %v1684, %v1687
      %v1689 = vsel %vm1564, %v1679, %v1688
      %v1691 = vshrl.u32 %v1300, 16
      %v1693 = vrot.slane %v1691, 1
      %v1694 = vshll.u32 %v1300, 16
      %v1696 = vrot.slane %v1694, 2
      %v1697 = vor.u32 %v1693, %v1696
      %v1698 = vsel %vm1564, %v1688, %v1697
      %v1700 = vshrl.u32 %v1301, 16
      %v1702 = vrot.slane %v1700, 1
      %v1703 = vshll.u32 %v1301, 16
      %v1705 = vrot.slane %v1703, 2
      %v1706 = vor.u32 %v1702, %v1705
      %v1707 = vsel %vm1564, %v1697, %v1706
      %v1709 = vshrl.u32 %v1302, 16
      %v1711 = vrot.slane %v1709, 1
      %v1712 = vshll.u32 %v1302, 16
      %v1714 = vrot.slane %v1712, 2
      %v1715 = vor.u32 %v1711, %v1714
      %v1716 = vsel %vm1564, %v1706, %v1715
      %v1718 = vshrl.u32 %v1303, 16
      %v1720 = vrot.slane %v1718, 1
      %v1721 = vshll.u32 %v1303, 16
      %v1723 = vrot.slane %v1721, 2
      %v1724 = vor.u32 %v1720, %v1723
      %v1725 = vsel %vm1564, %v1715, %v1724
      %v1727 = vshrl.u32 %v1563, 16
      %v1729 = vrot.slane %v1727, 1
      %v1730 = vshll.u32 %v1563, 16
      %v1732 = vrot.slane %v1730, 2
      %v1733 = vor.u32 %v1729, %v1732
      %v1734 = vsel %vm1564, %v1724, %v1733
      %v1769 = vunpack.c.l.b16 %v1545
      %v1770 = vunpack.c.l.b16 %v1546
      %v1771 = vunpack.c.l.b16 %v1547
      %v1772 = vunpack.c.l.b16 %v1548
      %v1773 = vunpack.c.l.b16 %v1549
      %v1774 = vunpack.c.l.b16 %v1550
      %v1775 = vunpack.c.l.b16 %v1551
      %v1776 = vunpack.c.l.b16 %v1552
      %v1777 = vunpack.c.l.b16 %v1553
      %v1778 = vunpack.c.l.b16 %v1554
      %v1779 = vunpack.c.l.b16 %v1555
      %v1780 = vunpack.c.l.b16 %v1556
      %v1781 = vunpack.c.l.b16 %v1557
      %v1782 = vunpack.c.l.b16 %v1558
      %v1783 = vunpack.c.l.b16 %v1559
      %v1784 = vunpack.c.l.b16 %v1560
      %v1785 = vpack.c.b16 %v1770, %v1769
      %v1786 = vpack.c.b16 %v1772, %v1771
      %v1787 = vpack.c.b16 %v1774, %v1773
      %v1788 = vpack.c.b16 %v1776, %v1775
      %v1789 = vpack.c.b16 %v1778, %v1777
      %v1790 = vpack.c.b16 %v1780, %v1779
      %v1791 = vpack.c.b16 %v1782, %v1781
      %v1792 = vpack.c.b16 %v1784, %v1783
      %1801 = vmatpush.bf16.msra.mxu0 %v1792
      %1802 = vmatpush.bf16.msra.mxu0 %v1791
      %1803 = vmatpush.bf16.msra.mxu0 %v1790
      %1804 = vmatpush.bf16.msra.mxu0 %v1789
      %1805 = vmatpush.bf16.msra.mxu0 %v1788
      %1806 = vmatpush.bf16.msra.mxu0 %v1787
      %1807 = vmatpush.bf16.msra.mxu0 %v1786
      %1808 = vmatpush.bf16.msra.mxu0 %v1785
      %1809 = vmatmul.bf16.gmra.mxu0 %v1581
      %v1810 = vpop.f32.mrf.mxu0
      %v1811 = vadd.f32 0.0, %v1810
      %v1812 = vpop.f32.mrf.mxu0
      %v1813 = vadd.f32 0.0, %v1812
      %1814 = vmatmul.bf16.gmra.mxu0 %v1590
      %v1815 = vpop.f32.mrf.mxu0
      %v1816 = vadd.f32 0.0, %v1815
      %v1817 = vpop.f32.mrf.mxu0
      %v1818 = vadd.f32 0.0, %v1817
      %1819 = vmatmul.bf16.gmra.mxu0 %v1599
      %v1820 = vpop.f32.mrf.mxu0
      %v1821 = vadd.f32 0.0, %v1820
      %v1822 = vpop.f32.mrf.mxu0
      %v1823 = vadd.f32 0.0, %v1822
      %1824 = vmatmul.bf16.gmra.mxu0 %v1608
      %v1825 = vpop.f32.mrf.mxu0
      %v1826 = vadd.f32 0.0, %v1825
      %v1827 = vpop.f32.mrf.mxu0
      %v1828 = vadd.f32 0.0, %v1827
      %1829 = vmatmul.bf16.gmra.mxu0 %v1617
      %v1830 = vpop.f32.mrf.mxu0
      %v1831 = vadd.f32 0.0, %v1830
      %v1832 = vpop.f32.mrf.mxu0
      %v1833 = vadd.f32 0.0, %v1832
      %1834 = vmatmul.bf16.gmra.mxu0 %v1626
      %v1835 = vpop.f32.mrf.mxu0
      %v1836 = vadd.f32 0.0, %v1835
      %v1837 = vpop.f32.mrf.mxu0
      %v1838 = vadd.f32 0.0, %v1837
      %1839 = vmatmul.bf16.gmra.mxu0 %v1635
      %v1840 = vpop.f32.mrf.mxu0
      %v1841 = vadd.f32 0.0, %v1840
      %v1842 = vpop.f32.mrf.mxu0
      %v1843 = vadd.f32 0.0, %v1842
      %1844 = vmatmul.bf16.gmra.mxu0 %v1644
      %v1845 = vpop.f32.mrf.mxu0
      %v1846 = vadd.f32 0.0, %v1845
      %v1847 = vpop.f32.mrf.mxu0
      %v1848 = vadd.f32 0.0, %v1847
      %1849 = vmatmul.bf16.gmra.mxu0 %v1653
      %v1850 = vpop.f32.mrf.mxu0
      %v1851 = vadd.f32 0.0, %v1850
      %v1852 = vpop.f32.mrf.mxu0
      %v1853 = vadd.f32 0.0, %v1852
      %1854 = vmatmul.bf16.gmra.mxu0 %v1662
      %v1855 = vpop.f32.mrf.mxu0
      %v1856 = vadd.f32 0.0, %v1855
      %v1857 = vpop.f32.mrf.mxu0
      %v1858 = vadd.f32 0.0, %v1857
      %1859 = vmatmul.bf16.gmra.mxu0 %v1671
      %v1860 = vpop.f32.mrf.mxu0
      %v1861 = vadd.f32 0.0, %v1860
      %v1862 = vpop.f32.mrf.mxu0
      %v1863 = vadd.f32 0.0, %v1862
      %1864 = vmatmul.bf16.gmra.mxu0 %v1680
      %v1865 = vpop.f32.mrf.mxu0
      %v1866 = vadd.f32 0.0, %v1865
      %v1867 = vpop.f32.mrf.mxu0
      %v1868 = vadd.f32 0.0, %v1867
      %1869 = vmatmul.bf16.gmra.mxu0 %v1689
      %v1870 = vpop.f32.mrf.mxu0
      %v1871 = vadd.f32 0.0, %v1870
      %v1872 = vpop.f32.mrf.mxu0
      %v1873 = vadd.f32 0.0, %v1872
      %1874 = vmatmul.bf16.gmra.mxu0 %v1698
      %v1875 = vpop.f32.mrf.mxu0
      %v1876 = vadd.f32 0.0, %v1875
      %v1877 = vpop.f32.mrf.mxu0
      %v1878 = vadd.f32 0.0, %v1877
      %1879 = vmatmul.bf16.gmra.mxu0 %v1707
      %v1880 = vpop.f32.mrf.mxu0
      %v1881 = vadd.f32 0.0, %v1880
      %v1882 = vpop.f32.mrf.mxu0
      %v1883 = vadd.f32 0.0, %v1882
      %1884 = vmatmul.bf16.gmra.mxu0 %v1716
      %v1885 = vpop.f32.mrf.mxu0
      %v1886 = vadd.f32 0.0, %v1885
      %v1887 = vpop.f32.mrf.mxu0
      %v1888 = vadd.f32 0.0, %v1887
      %1889 = vmatmul.bf16.gmra.mxu0 %v1725
      %v1890 = vpop.f32.mrf.mxu0
      %v1891 = vadd.f32 0.0, %v1890
      %v1892 = vpop.f32.mrf.mxu0
      %v1893 = vadd.f32 0.0, %v1892
      %1894 = vmatmul.bf16.gmra.mxu0 %v1734
      %v1895 = vpop.f32.mrf.mxu0
      %v1896 = vadd.f32 0.0, %v1895
      %v1897 = vpop.f32.mrf.mxu0
      %v1898 = vadd.f32 0.0, %v1897
      %1899 = vdwg.mxu0
      %v1900 = vadd.f32 %v1507, %v1811
      %v1901 = vadd.f32 %v1508, %v1813
      %v1902 = vadd.f32 %v1509, %v1816
      %v1903 = vadd.f32 %v1510, %v1818
      %v1904 = vadd.f32 %v1511, %v1821
      %v1905 = vadd.f32 %v1512, %v1823
      %v1906 = vadd.f32 %v1513, %v1826
      %v1907 = vadd.f32 %v1514, %v1828
      %v1908 = vadd.f32 %v1515, %v1831
      %v1909 = vadd.f32 %v1516, %v1833
      %v1910 = vadd.f32 %v1517, %v1836
      %v1911 = vadd.f32 %v1518, %v1838
      %v1912 = vadd.f32 %v1519, %v1841
      %v1913 = vadd.f32 %v1520, %v1843
      %v1914 = vadd.f32 %v1521, %v1846
      %v1915 = vadd.f32 %v1522, %v1848
      %v1916 = vadd.f32 %v1523, %v1851
      %v1917 = vadd.f32 %v1524, %v1853
      %v1918 = vadd.f32 %v1525, %v1856
      %v1919 = vadd.f32 %v1526, %v1858
      %v1920 = vadd.f32 %v1527, %v1861
      %v1921 = vadd.f32 %v1528, %v1863
      %v1922 = vadd.f32 %v1529, %v1866
      %v1923 = vadd.f32 %v1530, %v1868
      %v1924 = vadd.f32 %v1531, %v1871
      %v1925 = vadd.f32 %v1532, %v1873
      %v1926 = vadd.f32 %v1533, %v1876
      %v1927 = vadd.f32 %v1534, %v1878
      %v1928 = vadd.f32 %v1535, %v1881
      %v1929 = vadd.f32 %v1536, %v1883
      %v1930 = vadd.f32 %v1537, %v1886
      %v1931 = vadd.f32 %v1538, %v1888
      %v1932 = vadd.f32 %v1539, %v1891
      %v1933 = vadd.f32 %v1540, %v1893
      %v1934 = vadd.f32 %v1541, %v1896
      %v1935 = vadd.f32 %v1542, %v1898
      %v1936 = vld [vmem:[%s237 + $0x8] sm:$0xc]
      %s1937 = scalar_lea.vmem %s1, 320
      %v1938 = vld [vmem:[%s1937] sm:$0xf]
      %v1939 = vld [vmem:[%s1937 + $0x4] sm:$0xf]
      %v1940 = vld [vmem:[%s1937 + $0x8] sm:$0xf]
      %v1941 = vld [vmem:[%s1937 + $0xc] sm:$0xf]
      %v1942 = vld [vmem:[%s1937 + $0x10] sm:$0xf]
      %v1943 = vld [vmem:[%s1937 + $0x14] sm:$0xf]
      %v1944 = vld [vmem:[%s1937 + $0x18] sm:$0xf]
      %v1945 = vld [vmem:[%s1937 + $0x1c] sm:$0xf]
      %v1946 = vld [vmem:[%s1937 + $0x20] sm:$0xf]
      %v1947 = vld [vmem:[%s1937 + $0x24] sm:$0xf]
      %v1948 = vld [vmem:[%s1937 + $0x28] sm:$0xf]
      %v1949 = vld [vmem:[%s1937 + $0x2c] sm:$0xf]
      %v1950 = vld [vmem:[%s1937 + $0x30] sm:$0xf]
      %v1951 = vld [vmem:[%s1937 + $0x34] sm:$0xf]
      %v1952 = vld [vmem:[%s1937 + $0x38] sm:$0xf]
      %v1953 = vld [vmem:[%s1937 + $0x3c] sm:$0xf]
      %v1955 = vunpack.c.l.b16 %v1936
      %v1956 = vpack.c.b16 %v1250, %v1955
      %vm1957 = vcmask 1045504
      %v1958 = vrot.slane %v1956, 2
      %v1959 = vrot.slane %v1287, 2
      %v1960 = vsel %vm1957, %v1958, %v1959
      %v1961 = vrot.slane %v1288, 2
      %v1962 = vsel %vm1957, %v1959, %v1961
      %v1963 = vrot.slane %v1289, 2
      %v1964 = vsel %vm1957, %v1961, %v1963
      %v1965 = vrot.slane %v1290, 2
      %v1966 = vsel %vm1957, %v1963, %v1965
      %v1967 = vrot.slane %v1291, 2
      %v1968 = vsel %vm1957, %v1965, %v1967
      %v1969 = vrot.slane %v1292, 2
      %v1970 = vsel %vm1957, %v1967, %v1969
      %v1971 = vrot.slane %v1293, 2
      %v1972 = vsel %vm1957, %v1969, %v1971
      %v1973 = vrot.slane %v1294, 2
      %v1974 = vsel %vm1957, %v1971, %v1973
      %v1975 = vrot.slane %v1295, 2
      %v1976 = vsel %vm1957, %v1973, %v1975
      %v1977 = vrot.slane %v1296, 2
      %v1978 = vsel %vm1957, %v1975, %v1977
      %v1979 = vrot.slane %v1297, 2
      %v1980 = vsel %vm1957, %v1977, %v1979
      %v1981 = vrot.slane %v1298, 2
      %v1982 = vsel %vm1957, %v1979, %v1981
      %v1983 = vrot.slane %v1299, 2
      %v1984 = vsel %vm1957, %v1981, %v1983
      %v1985 = vrot.slane %v1300, 2
      %v1986 = vsel %vm1957, %v1983, %v1985
      %v1987 = vrot.slane %v1301, 2
      %v1988 = vsel %vm1957, %v1985, %v1987
      %v1989 = vrot.slane %v1302, 2
      %v1990 = vsel %vm1957, %v1987, %v1989
      %v1991 = vrot.slane %v1303, 2
      %v1992 = vsel %vm1957, %v1989, %v1991
      %v1993 = vrot.slane %v1563, 2
      %v1994 = vsel %vm1957, %v1991, %v1993
      %v2029 = vunpack.c.l.b16 %v1938
      %v2030 = vunpack.c.l.b16 %v1939
      %v2031 = vunpack.c.l.b16 %v1940
      %v2032 = vunpack.c.l.b16 %v1941
      %v2033 = vunpack.c.l.b16 %v1942
      %v2034 = vunpack.c.l.b16 %v1943
      %v2035 = vunpack.c.l.b16 %v1944
      %v2036 = vunpack.c.l.b16 %v1945
      %v2037 = vunpack.c.l.b16 %v1946
      %v2038 = vunpack.c.l.b16 %v1947
      %v2039 = vunpack.c.l.b16 %v1948
      %v2040 = vunpack.c.l.b16 %v1949
      %v2041 = vunpack.c.l.b16 %v1950
      %v2042 = vunpack.c.l.b16 %v1951
      %v2043 = vunpack.c.l.b16 %v1952
      %v2044 = vunpack.c.l.b16 %v1953
      %v2045 = vpack.c.b16 %v2030, %v2029
      %v2046 = vpack.c.b16 %v2032, %v2031
      %v2047 = vpack.c.b16 %v2034, %v2033
      %v2048 = vpack.c.b16 %v2036, %v2035
      %v2049 = vpack.c.b16 %v2038, %v2037
      %v2050 = vpack.c.b16 %v2040, %v2039
      %v2051 = vpack.c.b16 %v2042, %v2041
      %v2052 = vpack.c.b16 %v2044, %v2043
      %2061 = vmatpush.bf16.msra.mxu0 %v2052
      %2062 = vmatpush.bf16.msra.mxu0 %v2051
      %2063 = vmatpush.bf16.msra.mxu0 %v2050
      %2064 = vmatpush.bf16.msra.mxu0 %v2049
      %2065 = vmatpush.bf16.msra.mxu0 %v2048
      %2066 = vmatpush.bf16.msra.mxu0 %v2047
      %2067 = vmatpush.bf16.msra.mxu0 %v2046
      %2068 = vmatpush.bf16.msra.mxu0 %v2045
      %2069 = vmatmul.bf16.gmra.mxu0 %v1960
      %v2070 = vpop.f32.mrf.mxu0
      %v2071 = vadd.f32 0.0, %v2070
      %v2072 = vpop.f32.mrf.mxu0
      %v2073 = vadd.f32 0.0, %v2072
      %2074 = vmatmul.bf16.gmra.mxu0 %v1962
      %v2075 = vpop.f32.mrf.mxu0
      %v2076 = vadd.f32 0.0, %v2075
      %v2077 = vpop.f32.mrf.mxu0
      %v2078 = vadd.f32 0.0, %v2077
      %2079 = vmatmul.bf16.gmra.mxu0 %v1964
      %v2080 = vpop.f32.mrf.mxu0
      %v2081 = vadd.f32 0.0, %v2080
      %v2082 = vpop.f32.mrf.mxu0
      %v2083 = vadd.f32 0.0, %v2082
      %2084 = vmatmul.bf16.gmra.mxu0 %v1966
      %v2085 = vpop.f32.mrf.mxu0
      %v2086 = vadd.f32 0.0, %v2085
      %v2087 = vpop.f32.mrf.mxu0
      %v2088 = vadd.f32 0.0, %v2087
      %2089 = vmatmul.bf16.gmra.mxu0 %v1968
      %v2090 = vpop.f32.mrf.mxu0
      %v2091 = vadd.f32 0.0, %v2090
      %v2092 = vpop.f32.mrf.mxu0
      %v2093 = vadd.f32 0.0, %v2092
      %2094 = vmatmul.bf16.gmra.mxu0 %v1970
      %v2095 = vpop.f32.mrf.mxu0
      %v2096 = vadd.f32 0.0, %v2095
      %v2097 = vpop.f32.mrf.mxu0
      %v2098 = vadd.f32 0.0, %v2097
      %2099 = vmatmul.bf16.gmra.mxu0 %v1972
      %v2100 = vpop.f32.mrf.mxu0
      %v2101 = vadd.f32 0.0, %v2100
      %v2102 = vpop.f32.mrf.mxu0
      %v2103 = vadd.f32 0.0, %v2102
      %2104 = vmatmul.bf16.gmra.mxu0 %v1974
      %v2105 = vpop.f32.mrf.mxu0
      %v2106 = vadd.f32 0.0, %v2105
      %v2107 = vpop.f32.mrf.mxu0
      %v2108 = vadd.f32 0.0, %v2107
      %2109 = vmatmul.bf16.gmra.mxu0 %v1976
      %v2110 = vpop.f32.mrf.mxu0
      %v2111 = vadd.f32 0.0, %v2110
      %v2112 = vpop.f32.mrf.mxu0
      %v2113 = vadd.f32 0.0, %v2112
      %2114 = vmatmul.bf16.gmra.mxu0 %v1978
      %v2115 = vpop.f32.mrf.mxu0
      %v2116 = vadd.f32 0.0, %v2115
      %v2117 = vpop.f32.mrf.mxu0
      %v2118 = vadd.f32 0.0, %v2117
      %2119 = vmatmul.bf16.gmra.mxu0 %v1980
      %v2120 = vpop.f32.mrf.mxu0
      %v2121 = vadd.f32 0.0, %v2120
      %v2122 = vpop.f32.mrf.mxu0
      %v2123 = vadd.f32 0.0, %v2122
      %2124 = vmatmul.bf16.gmra.mxu0 %v1982
      %v2125 = vpop.f32.mrf.mxu0
      %v2126 = vadd.f32 0.0, %v2125
      %v2127 = vpop.f32.mrf.mxu0
      %v2128 = vadd.f32 0.0, %v2127
      %2129 = vmatmul.bf16.gmra.mxu0 %v1984
      %v2130 = vpop.f32.mrf.mxu0
      %v2131 = vadd.f32 0.0, %v2130
      %v2132 = vpop.f32.mrf.mxu0
      %v2133 = vadd.f32 0.0, %v2132
      %2134 = vmatmul.bf16.gmra.mxu0 %v1986
      %v2135 = vpop.f32.mrf.mxu0
      %v2136 = vadd.f32 0.0, %v2135
      %v2137 = vpop.f32.mrf.mxu0
      %v2138 = vadd.f32 0.0, %v2137
      %2139 = vmatmul.bf16.gmra.mxu0 %v1988
      %v2140 = vpop.f32.mrf.mxu0
      %v2141 = vadd.f32 0.0, %v2140
      %v2142 = vpop.f32.mrf.mxu0
      %v2143 = vadd.f32 0.0, %v2142
      %2144 = vmatmul.bf16.gmra.mxu0 %v1990
      %v2145 = vpop.f32.mrf.mxu0
      %v2146 = vadd.f32 0.0, %v2145
      %v2147 = vpop.f32.mrf.mxu0
      %v2148 = vadd.f32 0.0, %v2147
      %2149 = vmatmul.bf16.gmra.mxu0 %v1992
      %v2150 = vpop.f32.mrf.mxu0
      %v2151 = vadd.f32 0.0, %v2150
      %v2152 = vpop.f32.mrf.mxu0
      %v2153 = vadd.f32 0.0, %v2152
      %2154 = vmatmul.bf16.gmra.mxu0 %v1994
      %v2155 = vpop.f32.mrf.mxu0
      %v2156 = vadd.f32 0.0, %v2155
      %v2157 = vpop.f32.mrf.mxu0
      %v2158 = vadd.f32 0.0, %v2157
      %2159 = vdwg.mxu0
      %v2160 = vadd.f32 %v1900, %v2071
      %v2161 = vadd.f32 %v1901, %v2073
      %v2162 = vadd.f32 %v1902, %v2076
      %v2163 = vadd.f32 %v1903, %v2078
      %v2164 = vadd.f32 %v1904, %v2081
      %v2165 = vadd.f32 %v1905, %v2083
      %v2166 = vadd.f32 %v1906, %v2086
      %v2167 = vadd.f32 %v1907, %v2088
      %v2168 = vadd.f32 %v1908, %v2091
      %v2169 = vadd.f32 %v1909, %v2093
      %v2170 = vadd.f32 %v1910, %v2096
      %v2171 = vadd.f32 %v1911, %v2098
      %v2172 = vadd.f32 %v1912, %v2101
      %v2173 = vadd.f32 %v1913, %v2103
      %v2174 = vadd.f32 %v1914, %v2106
      %v2175 = vadd.f32 %v1915, %v2108
      %v2176 = vadd.f32 %v1916, %v2111
      %v2177 = vadd.f32 %v1917, %v2113
      %v2178 = vadd.f32 %v1918, %v2116
      %v2179 = vadd.f32 %v1919, %v2118
      %v2180 = vadd.f32 %v1920, %v2121
      %v2181 = vadd.f32 %v1921, %v2123
      %v2182 = vadd.f32 %v1922, %v2126
      %v2183 = vadd.f32 %v1923, %v2128
      %v2184 = vadd.f32 %v1924, %v2131
      %v2185 = vadd.f32 %v1925, %v2133
      %v2186 = vadd.f32 %v1926, %v2136
      %v2187 = vadd.f32 %v1927, %v2138
      %v2188 = vadd.f32 %v1928, %v2141
      %v2189 = vadd.f32 %v1929, %v2143
      %v2190 = vadd.f32 %v1930, %v2146
      %v2191 = vadd.f32 %v1931, %v2148
      %v2192 = vadd.f32 %v1932, %v2151
      %v2193 = vadd.f32 %v1933, %v2153
      %v2194 = vadd.f32 %v1934, %v2156
      %v2195 = vadd.f32 %v1935, %v2158
      %v2196 = vld [vmem:[%s237 + $0x10] sm:$0xc]
      %v2197 = vld [vmem:[%s237 + $0x14] sm:$0xf]
      %v2198 = vld [vmem:[%s237 + $0x18] sm:$0xf]
      %v2199 = vld [vmem:[%s237 + $0x1c] sm:$0xf]
      %v2200 = vld [vmem:[%s237 + $0x20] sm:$0xf]
      %v2201 = vld [vmem:[%s237 + $0x24] sm:$0xf]
      %v2202 = vld [vmem:[%s237 + $0x28] sm:$0xf]
      %v2203 = vld [vmem:[%s237 + $0x2c] sm:$0xf]
      %v2204 = vld [vmem:[%s237 + $0x30] sm:$0xf]
      %v2205 = vld [vmem:[%s237 + $0x34] sm:$0xf]
      %v2206 = vld [vmem:[%s237 + $0x38] sm:$0xf]
      %v2207 = vld [vmem:[%s237 + $0x3c] sm:$0xf]
      %v2208 = vld [vmem:[%s237 + $0x40] sm:$0xf]
      %v2209 = vld [vmem:[%s237 + $0x44] sm:$0xf]
      %v2210 = vld [vmem:[%s237 + $0x48] sm:$0xf]
      %v2211 = vld [vmem:[%s237 + $0x4c] sm:$0xf]
      %v2212 = vld [vmem:[%s237 + $0x50] sm:$0xf]
      %v2213 = vld [vmem:[%s237 + $0x54] sm:$0xf]
      %v2214 = vld [vmem:[%s237 + $0x58] sm:$0xf]
      %v2215 = vld [vmem:[%s237 + $0x5c] sm:$0xf]
      %v2216 = vld [vmem:[%s237 + $0x60] sm:$0xf]
      %v2217 = vld [vmem:[%s237 + $0x64] sm:$0xf]
      %v2218 = vld [vmem:[%s237 + $0x68] sm:$0xf]
      %v2219 = vld [vmem:[%s237 + $0x6c] sm:$0xf]
      %v2220 = vld [vmem:[%s237 + $0x70] sm:$0xf]
      %v2221 = vld [vmem:[%s237 + $0x74] sm:$0xf]
      %v2222 = vld [vmem:[%s237 + $0x78] sm:$0xf]
      %v2223 = vld [vmem:[%s237 + $0x7c] sm:$0xf]
      %v2224 = vld [vmem:[%s237 + $0x80] sm:$0xf]
      %v2225 = vld [vmem:[%s237 + $0x84] sm:$0xf]
      %v2226 = vld [vmem:[%s237 + $0x88] sm:$0xf]
      %v2227 = vld [vmem:[%s237 + $0x8c] sm:$0xf]
      %v2228 = vld [vmem:[%s237 + $0x90] sm:$0xf]
      %v2229 = vld [vmem:[%s237 + $0x94] sm:$0xf]
      %v2230 = vld [vmem:[%s237 + $0x98] sm:$0xf]
      %v2231 = vld [vmem:[%s237 + $0x9c] sm:$0xf]
      %v2232 = vld [vmem:[%s237 + $0xa0] sm:$0x3]
      %s2233 = scalar_lea.vmem %s1, 384
      %v2234 = vld [vmem:[%s2233] sm:$0xf]
      %v2235 = vld [vmem:[%s2233 + $0x4] sm:$0xf]
      %v2236 = vld [vmem:[%s2233 + $0x8] sm:$0xf]
      %v2237 = vld [vmem:[%s2233 + $0xc] sm:$0xf]
      %v2238 = vld [vmem:[%s2233 + $0x10] sm:$0xf]
      %v2239 = vld [vmem:[%s2233 + $0x14] sm:$0xf]
      %v2240 = vld [vmem:[%s2233 + $0x18] sm:$0xf]
      %v2241 = vld [vmem:[%s2233 + $0x1c] sm:$0xf]
      %v2242 = vld [vmem:[%s2233 + $0x20] sm:$0xf]
      %v2243 = vld [vmem:[%s2233 + $0x24] sm:$0xf]
      %v2244 = vld [vmem:[%s2233 + $0x28] sm:$0xf]
      %v2245 = vld [vmem:[%s2233 + $0x2c] sm:$0xf]
      %v2246 = vld [vmem:[%s2233 + $0x30] sm:$0xf]
      %v2247 = vld [vmem:[%s2233 + $0x34] sm:$0xf]
      %v2248 = vld [vmem:[%s2233 + $0x38] sm:$0xf]
      %v2249 = vld [vmem:[%s2233 + $0x3c] sm:$0xf]
      %v2287 = vunpack.c.l.b16 %v2196
      %v2288 = vunpack.c.l.b16 %v2197
      %v2289 = vunpack.c.l.b16 %v2198
      %v2290 = vunpack.c.l.b16 %v2199
      %v2291 = vunpack.c.l.b16 %v2200
      %v2292 = vunpack.c.l.b16 %v2201
      %v2293 = vunpack.c.l.b16 %v2202
      %v2294 = vunpack.c.l.b16 %v2203
      %v2295 = vunpack.c.l.b16 %v2204
      %v2296 = vunpack.c.l.b16 %v2205
      %v2297 = vunpack.c.l.b16 %v2206
      %v2298 = vunpack.c.l.b16 %v2207
      %v2299 = vunpack.c.l.b16 %v2208
      %v2300 = vunpack.c.l.b16 %v2209
      %v2301 = vunpack.c.l.b16 %v2210
      %v2302 = vunpack.c.l.b16 %v2211
      %v2303 = vunpack.c.l.b16 %v2212
      %v2304 = vunpack.c.l.b16 %v2213
      %v2305 = vunpack.c.l.b16 %v2214
      %v2306 = vunpack.c.l.b16 %v2215
      %v2307 = vunpack.c.l.b16 %v2216
      %v2308 = vunpack.c.l.b16 %v2217
      %v2309 = vunpack.c.l.b16 %v2218
      %v2310 = vunpack.c.l.b16 %v2219
      %v2311 = vunpack.c.l.b16 %v2220
      %v2312 = vunpack.c.l.b16 %v2221
      %v2313 = vunpack.c.l.b16 %v2222
      %v2314 = vunpack.c.l.b16 %v2223
      %v2315 = vunpack.c.l.b16 %v2224
      %v2316 = vunpack.c.l.b16 %v2225
      %v2317 = vunpack.c.l.b16 %v2226
      %v2318 = vunpack.c.l.b16 %v2227
      %v2319 = vunpack.c.l.b16 %v2228
      %v2320 = vunpack.c.l.b16 %v2229
      %v2321 = vunpack.c.l.b16 %v2230
      %v2322 = vunpack.c.l.b16 %v2231
      %v2323 = vunpack.c.l.b16 %v2232
      %v2324 = vpack.c.b16 %v2288, %v2287
      %v2325 = vpack.c.b16 %v2290, %v2289
      %v2326 = vpack.c.b16 %v2292, %v2291
      %v2327 = vpack.c.b16 %v2294, %v2293
      %v2328 = vpack.c.b16 %v2296, %v2295
      %v2329 = vpack.c.b16 %v2298, %v2297
      %v2330 = vpack.c.b16 %v2300, %v2299
      %v2331 = vpack.c.b16 %v2302, %v2301
      %v2332 = vpack.c.b16 %v2304, %v2303
      %v2333 = vpack.c.b16 %v2306, %v2305
      %v2334 = vpack.c.b16 %v2308, %v2307
      %v2335 = vpack.c.b16 %v2310, %v2309
      %v2336 = vpack.c.b16 %v2312, %v2311
      %v2337 = vpack.c.b16 %v2314, %v2313
      %v2338 = vpack.c.b16 %v2316, %v2315
      %v2339 = vpack.c.b16 %v2318, %v2317
      %v2340 = vpack.c.b16 %v2320, %v2319
      %v2341 = vpack.c.b16 %v2322, %v2321
      %v2342 = vpack.c.b16 %v2323, %v2323
      %v2343 = vrot.slane %v2324, 2
      %v2344 = vrot.slane %v2325, 2
      %v2345 = vsel %vm1957, %v2343, %v2344
      %v2346 = vrot.slane %v2326, 2
      %v2347 = vsel %vm1957, %v2344, %v2346
      %v2348 = vrot.slane %v2327, 2
      %v2349 = vsel %vm1957, %v2346, %v2348
      %v2350 = vrot.slane %v2328, 2
      %v2351 = vsel %vm1957, %v2348, %v2350
      %v2352 = vrot.slane %v2329, 2
      %v2353 = vsel %vm1957, %v2350, %v2352
      %v2354 = vrot.slane %v2330, 2
      %v2355 = vsel %vm1957, %v2352, %v2354
      %v2356 = vrot.slane %v2331, 2
      %v2357 = vsel %vm1957, %v2354, %v2356
      %v2358 = vrot.slane %v2332, 2
      %v2359 = vsel %vm1957, %v2356, %v2358
      %v2360 = vrot.slane %v2333, 2
      %v2361 = vsel %vm1957, %v2358, %v2360
      %v2362 = vrot.slane %v2334, 2
      %v2363 = vsel %vm1957, %v2360, %v2362
      %v2364 = vrot.slane %v2335, 2
      %v2365 = vsel %vm1957, %v2362, %v2364
      %v2366 = vrot.slane %v2336, 2
      %v2367 = vsel %vm1957, %v2364, %v2366
      %v2368 = vrot.slane %v2337, 2
      %v2369 = vsel %vm1957, %v2366, %v2368
      %v2370 = vrot.slane %v2338, 2
      %v2371 = vsel %vm1957, %v2368, %v2370
      %v2372 = vrot.slane %v2339, 2
      %v2373 = vsel %vm1957, %v2370, %v2372
      %v2374 = vrot.slane %v2340, 2
      %v2375 = vsel %vm1957, %v2372, %v2374
      %v2376 = vrot.slane %v2341, 2
      %v2377 = vsel %vm1957, %v2374, %v2376
      %v2378 = vrot.slane %v2342, 2
      %v2379 = vsel %vm1957, %v2376, %v2378
      %v2414 = vunpack.c.l.b16 %v2234
      %v2415 = vunpack.c.l.b16 %v2235
      %v2416 = vunpack.c.l.b16 %v2236
      %v2417 = vunpack.c.l.b16 %v2237
      %v2418 = vunpack.c.l.b16 %v2238
      %v2419 = vunpack.c.l.b16 %v2239
      %v2420 = vunpack.c.l.b16 %v2240
      %v2421 = vunpack.c.l.b16 %v2241
      %v2422 = vunpack.c.l.b16 %v2242
      %v2423 = vunpack.c.l.b16 %v2243
      %v2424 = vunpack.c.l.b16 %v2244
      %v2425 = vunpack.c.l.b16 %v2245
      %v2426 = vunpack.c.l.b16 %v2246
      %v2427 = vunpack.c.l.b16 %v2247
      %v2428 = vunpack.c.l.b16 %v2248
      %v2429 = vunpack.c.l.b16 %v2249
      %v2430 = vpack.c.b16 %v2415, %v2414
      %v2431 = vpack.c.b16 %v2417, %v2416
      %v2432 = vpack.c.b16 %v2419, %v2418
      %v2433 = vpack.c.b16 %v2421, %v2420
      %v2434 = vpack.c.b16 %v2423, %v2422
      %v2435 = vpack.c.b16 %v2425, %v2424
      %v2436 = vpack.c.b16 %v2427, %v2426
      %v2437 = vpack.c.b16 %v2429, %v2428
      %2446 = vmatpush.bf16.msra.mxu0 %v2437
      %2447 = vmatpush.bf16.msra.mxu0 %v2436
      %2448 = vmatpush.bf16.msra.mxu0 %v2435
      %2449 = vmatpush.bf16.msra.mxu0 %v2434
      %2450 = vmatpush.bf16.msra.mxu0 %v2433
      %2451 = vmatpush.bf16.msra.mxu0 %v2432
      %2452 = vmatpush.bf16.msra.mxu0 %v2431
      %2453 = vmatpush.bf16.msra.mxu0 %v2430
      %2454 = vmatmul.bf16.gmra.mxu0 %v2345
      %v2455 = vpop.f32.mrf.mxu0
      %v2456 = vadd.f32 0.0, %v2455
      %v2457 = vpop.f32.mrf.mxu0
      %v2458 = vadd.f32 0.0, %v2457
      %2459 = vmatmul.bf16.gmra.mxu0 %v2347
      %v2460 = vpop.f32.mrf.mxu0
      %v2461 = vadd.f32 0.0, %v2460
      %v2462 = vpop.f32.mrf.mxu0
      %v2463 = vadd.f32 0.0, %v2462
      %2464 = vmatmul.bf16.gmra.mxu0 %v2349
      %v2465 = vpop.f32.mrf.mxu0
      %v2466 = vadd.f32 0.0, %v2465
      %v2467 = vpop.f32.mrf.mxu0
      %v2468 = vadd.f32 0.0, %v2467
      %2469 = vmatmul.bf16.gmra.mxu0 %v2351
      %v2470 = vpop.f32.mrf.mxu0
      %v2471 = vadd.f32 0.0, %v2470
      %v2472 = vpop.f32.mrf.mxu0
      %v2473 = vadd.f32 0.0, %v2472
      %2474 = vmatmul.bf16.gmra.mxu0 %v2353
      %v2475 = vpop.f32.mrf.mxu0
      %v2476 = vadd.f32 0.0, %v2475
      %v2477 = vpop.f32.mrf.mxu0
      %v2478 = vadd.f32 0.0, %v2477
      %2479 = vmatmul.bf16.gmra.mxu0 %v2355
      %v2480 = vpop.f32.mrf.mxu0
      %v2481 = vadd.f32 0.0, %v2480
      %v2482 = vpop.f32.mrf.mxu0
      %v2483 = vadd.f32 0.0, %v2482
      %2484 = vmatmul.bf16.gmra.mxu0 %v2357
      %v2485 = vpop.f32.mrf.mxu0
      %v2486 = vadd.f32 0.0, %v2485
      %v2487 = vpop.f32.mrf.mxu0
      %v2488 = vadd.f32 0.0, %v2487
      %2489 = vmatmul.bf16.gmra.mxu0 %v2359
      %v2490 = vpop.f32.mrf.mxu0
      %v2491 = vadd.f32 0.0, %v2490
      %v2492 = vpop.f32.mrf.mxu0
      %v2493 = vadd.f32 0.0, %v2492
      %2494 = vmatmul.bf16.gmra.mxu0 %v2361
      %v2495 = vpop.f32.mrf.mxu0
      %v2496 = vadd.f32 0.0, %v2495
      %v2497 = vpop.f32.mrf.mxu0
      %v2498 = vadd.f32 0.0, %v2497
      %2499 = vmatmul.bf16.gmra.mxu0 %v2363
      %v2500 = vpop.f32.mrf.mxu0
      %v2501 = vadd.f32 0.0, %v2500
      %v2502 = vpop.f32.mrf.mxu0
      %v2503 = vadd.f32 0.0, %v2502
      %2504 = vmatmul.bf16.gmra.mxu0 %v2365
      %v2505 = vpop.f32.mrf.mxu0
      %v2506 = vadd.f32 0.0, %v2505
      %v2507 = vpop.f32.mrf.mxu0
      %v2508 = vadd.f32 0.0, %v2507
      %2509 = vmatmul.bf16.gmra.mxu0 %v2367
      %v2510 = vpop.f32.mrf.mxu0
      %v2511 = vadd.f32 0.0, %v2510
      %v2512 = vpop.f32.mrf.mxu0
      %v2513 = vadd.f32 0.0, %v2512
      %2514 = vmatmul.bf16.gmra.mxu0 %v2369
      %v2515 = vpop.f32.mrf.mxu0
      %v2516 = vadd.f32 0.0, %v2515
      %v2517 = vpop.f32.mrf.mxu0
      %v2518 = vadd.f32 0.0, %v2517
      %2519 = vmatmul.bf16.gmra.mxu0 %v2371
      %v2520 = vpop.f32.mrf.mxu0
      %v2521 = vadd.f32 0.0, %v2520
      %v2522 = vpop.f32.mrf.mxu0
      %v2523 = vadd.f32 0.0, %v2522
      %2524 = vmatmul.bf16.gmra.mxu0 %v2373
      %v2525 = vpop.f32.mrf.mxu0
      %v2526 = vadd.f32 0.0, %v2525
      %v2527 = vpop.f32.mrf.mxu0
      %v2528 = vadd.f32 0.0, %v2527
      %2529 = vmatmul.bf16.gmra.mxu0 %v2375
      %v2530 = vpop.f32.mrf.mxu0
      %v2531 = vadd.f32 0.0, %v2530
      %v2532 = vpop.f32.mrf.mxu0
      %v2533 = vadd.f32 0.0, %v2532
      %2534 = vmatmul.bf16.gmra.mxu0 %v2377
      %v2535 = vpop.f32.mrf.mxu0
      %v2536 = vadd.f32 0.0, %v2535
      %v2537 = vpop.f32.mrf.mxu0
      %v2538 = vadd.f32 0.0, %v2537
      %2539 = vmatmul.bf16.gmra.mxu0 %v2379
      %v2540 = vpop.f32.mrf.mxu0
      %v2541 = vadd.f32 0.0, %v2540
      %v2542 = vpop.f32.mrf.mxu0
      %v2543 = vadd.f32 0.0, %v2542
      %2544 = vdwg.mxu0
      %v2545 = vadd.f32 %v2160, %v2456
      %v2546 = vadd.f32 %v2161, %v2458
      %v2547 = vadd.f32 %v2162, %v2461
      %v2548 = vadd.f32 %v2163, %v2463
      %v2549 = vadd.f32 %v2164, %v2466
      %v2550 = vadd.f32 %v2165, %v2468
      %v2551 = vadd.f32 %v2166, %v2471
      %v2552 = vadd.f32 %v2167, %v2473
      %v2553 = vadd.f32 %v2168, %v2476
      %v2554 = vadd.f32 %v2169, %v2478
      %v2555 = vadd.f32 %v2170, %v2481
      %v2556 = vadd.f32 %v2171, %v2483
      %v2557 = vadd.f32 %v2172, %v2486
      %v2558 = vadd.f32 %v2173, %v2488
      %v2559 = vadd.f32 %v2174, %v2491
      %v2560 = vadd.f32 %v2175, %v2493
      %v2561 = vadd.f32 %v2176, %v2496
      %v2562 = vadd.f32 %v2177, %v2498
      %v2563 = vadd.f32 %v2178, %v2501
      %v2564 = vadd.f32 %v2179, %v2503
      %v2565 = vadd.f32 %v2180, %v2506
      %v2566 = vadd.f32 %v2181, %v2508
      %v2567 = vadd.f32 %v2182, %v2511
      %v2568 = vadd.f32 %v2183, %v2513
      %v2569 = vadd.f32 %v2184, %v2516
      %v2570 = vadd.f32 %v2185, %v2518
      %v2571 = vadd.f32 %v2186, %v2521
      %v2572 = vadd.f32 %v2187, %v2523
      %v2573 = vadd.f32 %v2188, %v2526
      %v2574 = vadd.f32 %v2189, %v2528
      %v2575 = vadd.f32 %v2190, %v2531
      %v2576 = vadd.f32 %v2191, %v2533
      %v2577 = vadd.f32 %v2192, %v2536
      %v2578 = vadd.f32 %v2193, %v2538
      %v2579 = vadd.f32 %v2194, %v2541
      %v2580 = vadd.f32 %v2195, %v2543
      %v2581 = vld [vmem:[%s237 + $0xa0] sm:$0x7]
      %s2582 = scalar_lea.vmem %s1, 448
      %v2583 = vld [vmem:[%s2582] sm:$0xf]
      %v2584 = vld [vmem:[%s2582 + $0x4] sm:$0xf]
      %v2585 = vld [vmem:[%s2582 + $0x8] sm:$0xf]
      %v2586 = vld [vmem:[%s2582 + $0xc] sm:$0xf]
      %v2587 = vld [vmem:[%s2582 + $0x10] sm:$0xf]
      %v2588 = vld [vmem:[%s2582 + $0x14] sm:$0xf]
      %v2589 = vld [vmem:[%s2582 + $0x18] sm:$0xf]
      %v2590 = vld [vmem:[%s2582 + $0x1c] sm:$0xf]
      %v2591 = vld [vmem:[%s2582 + $0x20] sm:$0xf]
      %v2592 = vld [vmem:[%s2582 + $0x24] sm:$0xf]
      %v2593 = vld [vmem:[%s2582 + $0x28] sm:$0xf]
      %v2594 = vld [vmem:[%s2582 + $0x2c] sm:$0xf]
      %v2595 = vld [vmem:[%s2582 + $0x30] sm:$0xf]
      %v2596 = vld [vmem:[%s2582 + $0x34] sm:$0xf]
      %v2597 = vld [vmem:[%s2582 + $0x38] sm:$0xf]
      %v2598 = vld [vmem:[%s2582 + $0x3c] sm:$0xf]
      %v2600 = vunpack.c.l.b16 %v2581
      %v2601 = vpack.c.b16 %v2600, %v2600
      %vm2602 = vsmask.f32 5376
      %v2604 = vshrl.u32 %v2324, 16
      %v2606 = vrot.slane %v2604, 2
      %v2607 = vshll.u32 %v2324, 16
      %v2609 = vrot.slane %v2607, 3
      %v2610 = vor.u32 %v2606, %v2609
      %v2612 = vshrl.u32 %v2325, 16
      %v2614 = vrot.slane %v2612, 2
      %v2615 = vshll.u32 %v2325, 16
      %v2617 = vrot.slane %v2615, 3
      %v2618 = vor.u32 %v2614, %v2617
      %v2619 = vsel %vm2602, %v2610, %v2618
      %v2621 = vshrl.u32 %v2326, 16
      %v2623 = vrot.slane %v2621, 2
      %v2624 = vshll.u32 %v2326, 16
      %v2626 = vrot.slane %v2624, 3
      %v2627 = vor.u32 %v2623, %v2626
      %v2628 = vsel %vm2602, %v2618, %v2627
      %v2630 = vshrl.u32 %v2327, 16
      %v2632 = vrot.slane %v2630, 2
      %v2633 = vshll.u32 %v2327, 16
      %v2635 = vrot.slane %v2633, 3
      %v2636 = vor.u32 %v2632, %v2635
      %v2637 = vsel %vm2602, %v2627, %v2636
      %v2639 = vshrl.u32 %v2328, 16
      %v2641 = vrot.slane %v2639, 2
      %v2642 = vshll.u32 %v2328, 16
      %v2644 = vrot.slane %v2642, 3
      %v2645 = vor.u32 %v2641, %v2644
      %v2646 = vsel %vm2602, %v2636, %v2645
      %v2648 = vshrl.u32 %v2329, 16
      %v2650 = vrot.slane %v2648, 2
      %v2651 = vshll.u32 %v2329, 16
      %v2653 = vrot.slane %v2651, 3
      %v2654 = vor.u32 %v2650, %v2653
      %v2655 = vsel %vm2602, %v2645, %v2654
      %v2657 = vshrl.u32 %v2330, 16
      %v2659 = vrot.slane %v2657, 2
      %v2660 = vshll.u32 %v2330, 16
      %v2662 = vrot.slane %v2660, 3
      %v2663 = vor.u32 %v2659, %v2662
      %v2664 = vsel %vm2602, %v2654, %v2663
      %v2666 = vshrl.u32 %v2331, 16
      %v2668 = vrot.slane %v2666, 2
      %v2669 = vshll.u32 %v2331, 16
      %v2671 = vrot.slane %v2669, 3
      %v2672 = vor.u32 %v2668, %v2671
      %v2673 = vsel %vm2602, %v2663, %v2672
      %v2675 = vshrl.u32 %v2332, 16
      %v2677 = vrot.slane %v2675, 2
      %v2678 = vshll.u32 %v2332, 16
      %v2680 = vrot.slane %v2678, 3
      %v2681 = vor.u32 %v2677, %v2680
      %v2682 = vsel %vm2602, %v2672, %v2681
      %v2684 = vshrl.u32 %v2333, 16
      %v2686 = vrot.slane %v2684, 2
      %v2687 = vshll.u32 %v2333, 16
      %v2689 = vrot.slane %v2687, 3
      %v2690 = vor.u32 %v2686, %v2689
      %v2691 = vsel %vm2602, %v2681, %v2690
      %v2693 = vshrl.u32 %v2334, 16
      %v2695 = vrot.slane %v2693, 2
      %v2696 = vshll.u32 %v2334, 16
      %v2698 = vrot.slane %v2696, 3
      %v2699 = vor.u32 %v2695, %v2698
      %v2700 = vsel %vm2602, %v2690, %v2699
      %v2702 = vshrl.u32 %v2335, 16
      %v2704 = vrot.slane %v2702, 2
      %v2705 = vshll.u32 %v2335, 16
      %v2707 = vrot.slane %v2705, 3
      %v2708 = vor.u32 %v2704, %v2707
      %v2709 = vsel %vm2602, %v2699, %v2708
      %v2711 = vshrl.u32 %v2336, 16
      %v2713 = vrot.slane %v2711, 2
      %v2714 = vshll.u32 %v2336, 16
      %v2716 = vrot.slane %v2714, 3
      %v2717 = vor.u32 %v2713, %v2716
      %v2718 = vsel %vm2602, %v2708, %v2717
      %v2720 = vshrl.u32 %v2337, 16
      %v2722 = vrot.slane %v2720, 2
      %v2723 = vshll.u32 %v2337, 16
      %v2725 = vrot.slane %v2723, 3
      %v2726 = vor.u32 %v2722, %v2725
      %v2727 = vsel %vm2602, %v2717, %v2726
      %v2729 = vshrl.u32 %v2338, 16
      %v2731 = vrot.slane %v2729, 2
      %v2732 = vshll.u32 %v2338, 16
      %v2734 = vrot.slane %v2732, 3
      %v2735 = vor.u32 %v2731, %v2734
      %v2736 = vsel %vm2602, %v2726, %v2735
      %v2738 = vshrl.u32 %v2339, 16
      %v2740 = vrot.slane %v2738, 2
      %v2741 = vshll.u32 %v2339, 16
      %v2743 = vrot.slane %v2741, 3
      %v2744 = vor.u32 %v2740, %v2743
      %v2745 = vsel %vm2602, %v2735, %v2744
      %v2747 = vshrl.u32 %v2340, 16
      %v2749 = vrot.slane %v2747, 2
      %v2750 = vshll.u32 %v2340, 16
      %v2752 = vrot.slane %v2750, 3
      %v2753 = vor.u32 %v2749, %v2752
      %v2754 = vsel %vm2602, %v2744, %v2753
      %v2756 = vshrl.u32 %v2341, 16
      %v2758 = vrot.slane %v2756, 2
      %v2759 = vshll.u32 %v2341, 16
      %v2761 = vrot.slane %v2759, 3
      %v2762 = vor.u32 %v2758, %v2761
      %v2763 = vsel %vm2602, %v2753, %v2762
      %v2765 = vshrl.u32 %v2601, 16
      %v2767 = vrot.slane %v2765, 2
      %v2768 = vshll.u32 %v2601, 16
      %v2770 = vrot.slane %v2768, 3
      %v2771 = vor.u32 %v2767, %v2770
      %v2772 = vsel %vm2602, %v2762, %v2771
      %v2807 = vunpack.c.l.b16 %v2583
      %v2808 = vunpack.c.l.b16 %v2584
      %v2809 = vunpack.c.l.b16 %v2585
      %v2810 = vunpack.c.l.b16 %v2586
      %v2811 = vunpack.c.l.b16 %v2587
      %v2812 = vunpack.c.l.b16 %v2588
      %v2813 = vunpack.c.l.b16 %v2589
      %v2814 = vunpack.c.l.b16 %v2590
      %v2815 = vunpack.c.l.b16 %v2591
      %v2816 = vunpack.c.l.b16 %v2592
      %v2817 = vunpack.c.l.b16 %v2593
      %v2818 = vunpack.c.l.b16 %v2594
      %v2819 = vunpack.c.l.b16 %v2595
      %v2820 = vunpack.c.l.b16 %v2596
      %v2821 = vunpack.c.l.b16 %v2597
      %v2822 = vunpack.c.l.b16 %v2598
      %v2823 = vpack.c.b16 %v2808, %v2807
      %v2824 = vpack.c.b16 %v2810, %v2809
      %v2825 = vpack.c.b16 %v2812, %v2811
      %v2826 = vpack.c.b16 %v2814, %v2813
      %v2827 = vpack.c.b16 %v2816, %v2815
      %v2828 = vpack.c.b16 %v2818, %v2817
      %v2829 = vpack.c.b16 %v2820, %v2819
      %v2830 = vpack.c.b16 %v2822, %v2821
      %2839 = vmatpush.bf16.msra.mxu0 %v2830
      %2840 = vmatpush.bf16.msra.mxu0 %v2829
      %2841 = vmatpush.bf16.msra.mxu0 %v2828
      %2842 = vmatpush.bf16.msra.mxu0 %v2827
      %2843 = vmatpush.bf16.msra.mxu0 %v2826
      %2844 = vmatpush.bf16.msra.mxu0 %v2825
      %2845 = vmatpush.bf16.msra.mxu0 %v2824
      %2846 = vmatpush.bf16.msra.mxu0 %v2823
      %2847 = vmatmul.bf16.gmra.mxu0 %v2619
      %v2848 = vpop.f32.mrf.mxu0
      %v2849 = vadd.f32 0.0, %v2848
      %v2850 = vpop.f32.mrf.mxu0
      %v2851 = vadd.f32 0.0, %v2850
      %2852 = vmatmul.bf16.gmra.mxu0 %v2628
      %v2853 = vpop.f32.mrf.mxu0
      %v2854 = vadd.f32 0.0, %v2853
      %v2855 = vpop.f32.mrf.mxu0
      %v2856 = vadd.f32 0.0, %v2855
      %2857 = vmatmul.bf16.gmra.mxu0 %v2637
      %v2858 = vpop.f32.mrf.mxu0
      %v2859 = vadd.f32 0.0, %v2858
      %v2860 = vpop.f32.mrf.mxu0
      %v2861 = vadd.f32 0.0, %v2860
      %2862 = vmatmul.bf16.gmra.mxu0 %v2646
      %v2863 = vpop.f32.mrf.mxu0
      %v2864 = vadd.f32 0.0, %v2863
      %v2865 = vpop.f32.mrf.mxu0
      %v2866 = vadd.f32 0.0, %v2865
      %2867 = vmatmul.bf16.gmra.mxu0 %v2655
      %v2868 = vpop.f32.mrf.mxu0
      %v2869 = vadd.f32 0.0, %v2868
      %v2870 = vpop.f32.mrf.mxu0
      %v2871 = vadd.f32 0.0, %v2870
      %2872 = vmatmul.bf16.gmra.mxu0 %v2664
      %v2873 = vpop.f32.mrf.mxu0
      %v2874 = vadd.f32 0.0, %v2873
      %v2875 = vpop.f32.mrf.mxu0
      %v2876 = vadd.f32 0.0, %v2875
      %2877 = vmatmul.bf16.gmra.mxu0 %v2673
      %v2878 = vpop.f32.mrf.mxu0
      %v2879 = vadd.f32 0.0, %v2878
      %v2880 = vpop.f32.mrf.mxu0
      %v2881 = vadd.f32 0.0, %v2880
      %2882 = vmatmul.bf16.gmra.mxu0 %v2682
      %v2883 = vpop.f32.mrf.mxu0
      %v2884 = vadd.f32 0.0, %v2883
      %v2885 = vpop.f32.mrf.mxu0
      %v2886 = vadd.f32 0.0, %v2885
      %2887 = vmatmul.bf16.gmra.mxu0 %v2691
      %v2888 = vpop.f32.mrf.mxu0
      %v2889 = vadd.f32 0.0, %v2888
      %v2890 = vpop.f32.mrf.mxu0
      %v2891 = vadd.f32 0.0, %v2890
      %2892 = vmatmul.bf16.gmra.mxu0 %v2700
      %v2893 = vpop.f32.mrf.mxu0
      %v2894 = vadd.f32 0.0, %v2893
      %v2895 = vpop.f32.mrf.mxu0
      %v2896 = vadd.f32 0.0, %v2895
      %2897 = vmatmul.bf16.gmra.mxu0 %v2709
      %v2898 = vpop.f32.mrf.mxu0
      %v2899 = vadd.f32 0.0, %v2898
      %v2900 = vpop.f32.mrf.mxu0
      %v2901 = vadd.f32 0.0, %v2900
      %2902 = vmatmul.bf16.gmra.mxu0 %v2718
      %v2903 = vpop.f32.mrf.mxu0
      %v2904 = vadd.f32 0.0, %v2903
      %v2905 = vpop.f32.mrf.mxu0
      %v2906 = vadd.f32 0.0, %v2905
      %2907 = vmatmul.bf16.gmra.mxu0 %v2727
      %v2908 = vpop.f32.mrf.mxu0
      %v2909 = vadd.f32 0.0, %v2908
      %v2910 = vpop.f32.mrf.mxu0
      %v2911 = vadd.f32 0.0, %v2910
      %2912 = vmatmul.bf16.gmra.mxu0 %v2736
      %v2913 = vpop.f32.mrf.mxu0
      %v2914 = vadd.f32 0.0, %v2913
      %v2915 = vpop.f32.mrf.mxu0
      %v2916 = vadd.f32 0.0, %v2915
      %2917 = vmatmul.bf16.gmra.mxu0 %v2745
      %v2918 = vpop.f32.mrf.mxu0
      %v2919 = vadd.f32 0.0, %v2918
      %v2920 = vpop.f32.mrf.mxu0
      %v2921 = vadd.f32 0.0, %v2920
      %2922 = vmatmul.bf16.gmra.mxu0 %v2754
      %v2923 = vpop.f32.mrf.mxu0
      %v2924 = vadd.f32 0.0, %v2923
      %v2925 = vpop.f32.mrf.mxu0
      %v2926 = vadd.f32 0.0, %v2925
      %2927 = vmatmul.bf16.gmra.mxu0 %v2763
      %v2928 = vpop.f32.mrf.mxu0
      %v2929 = vadd.f32 0.0, %v2928
      %v2930 = vpop.f32.mrf.mxu0
      %v2931 = vadd.f32 0.0, %v2930
      %2932 = vmatmul.bf16.gmra.mxu0 %v2772
      %v2933 = vpop.f32.mrf.mxu0
      %v2934 = vadd.f32 0.0, %v2933
      %v2935 = vpop.f32.mrf.mxu0
      %v2936 = vadd.f32 0.0, %v2935
      %2937 = vdwg.mxu0
      %v2938 = vadd.f32 %v2545, %v2849
      %v2939 = vadd.f32 %v2546, %v2851
      %v2940 = vadd.f32 %v2547, %v2854
      %v2941 = vadd.f32 %v2548, %v2856
      %v2942 = vadd.f32 %v2549, %v2859
      %v2943 = vadd.f32 %v2550, %v2861
      %v2944 = vadd.f32 %v2551, %v2864
      %v2945 = vadd.f32 %v2552, %v2866
      %v2946 = vadd.f32 %v2553, %v2869
      %v2947 = vadd.f32 %v2554, %v2871
      %v2948 = vadd.f32 %v2555, %v2874
      %v2949 = vadd.f32 %v2556, %v2876
      %v2950 = vadd.f32 %v2557, %v2879
      %v2951 = vadd.f32 %v2558, %v2881
      %v2952 = vadd.f32 %v2559, %v2884
      %v2953 = vadd.f32 %v2560, %v2886
      %v2954 = vadd.f32 %v2561, %v2889
      %v2955 = vadd.f32 %v2562, %v2891
      %v2956 = vadd.f32 %v2563, %v2894
      %v2957 = vadd.f32 %v2564, %v2896
      %v2958 = vadd.f32 %v2565, %v2899
      %v2959 = vadd.f32 %v2566, %v2901
      %v2960 = vadd.f32 %v2567, %v2904
      %v2961 = vadd.f32 %v2568, %v2906
      %v2962 = vadd.f32 %v2569, %v2909
      %v2963 = vadd.f32 %v2570, %v2911
      %v2964 = vadd.f32 %v2571, %v2914
      %v2965 = vadd.f32 %v2572, %v2916
      %v2966 = vadd.f32 %v2573, %v2919
      %v2967 = vadd.f32 %v2574, %v2921
      %v2968 = vadd.f32 %v2575, %v2924
      %v2969 = vadd.f32 %v2576, %v2926
      %v2970 = vadd.f32 %v2577, %v2929
      %v2971 = vadd.f32 %v2578, %v2931
      %v2972 = vadd.f32 %v2579, %v2934
      %v2973 = vadd.f32 %v2580, %v2936
      %v2974 = vld [vmem:[%s237 + $0x10] sm:$0x8]
      %s2975 = scalar_lea.vmem %s1, 512
      %v2976 = vld [vmem:[%s2975] sm:$0xf]
      %v2977 = vld [vmem:[%s2975 + $0x4] sm:$0xf]
      %v2978 = vld [vmem:[%s2975 + $0x8] sm:$0xf]
      %v2979 = vld [vmem:[%s2975 + $0xc] sm:$0xf]
      %v2980 = vld [vmem:[%s2975 + $0x10] sm:$0xf]
      %v2981 = vld [vmem:[%s2975 + $0x14] sm:$0xf]
      %v2982 = vld [vmem:[%s2975 + $0x18] sm:$0xf]
      %v2983 = vld [vmem:[%s2975 + $0x1c] sm:$0xf]
      %v2984 = vld [vmem:[%s2975 + $0x20] sm:$0xf]
      %v2985 = vld [vmem:[%s2975 + $0x24] sm:$0xf]
      %v2986 = vld [vmem:[%s2975 + $0x28] sm:$0xf]
      %v2987 = vld [vmem:[%s2975 + $0x2c] sm:$0xf]
      %v2988 = vld [vmem:[%s2975 + $0x30] sm:$0xf]
      %v2989 = vld [vmem:[%s2975 + $0x34] sm:$0xf]
      %v2990 = vld [vmem:[%s2975 + $0x38] sm:$0xf]
      %v2991 = vld [vmem:[%s2975 + $0x3c] sm:$0xf]
      %v2993 = vunpack.c.l.b16 %v2974
      %v2994 = vpack.c.b16 %v2288, %v2993
      %vm2995 = vcmask 1044480
      %v2996 = vrot.slane %v2994, 3
      %v2997 = vrot.slane %v2325, 3
      %v2998 = vsel %vm2995, %v2996, %v2997
      %v2999 = vrot.slane %v2326, 3
      %v3000 = vsel %vm2995, %v2997, %v2999
      %v3001 = vrot.slane %v2327, 3
      %v3002 = vsel %vm2995, %v2999, %v3001
      %v3003 = vrot.slane %v2328, 3
      %v3004 = vsel %vm2995, %v3001, %v3003
      %v3005 = vrot.slane %v2329, 3
      %v3006 = vsel %vm2995, %v3003, %v3005
      %v3007 = vrot.slane %v2330, 3
      %v3008 = vsel %vm2995, %v3005, %v3007
      %v3009 = vrot.slane %v2331, 3
      %v3010 = vsel %vm2995, %v3007, %v3009
      %v3011 = vrot.slane %v2332, 3
      %v3012 = vsel %vm2995, %v3009, %v3011
      %v3013 = vrot.slane %v2333, 3
      %v3014 = vsel %vm2995, %v3011, %v3013
      %v3015 = vrot.slane %v2334, 3
      %v3016 = vsel %vm2995, %v3013, %v3015
      %v3017 = vrot.slane %v2335, 3
      %v3018 = vsel %vm2995, %v3015, %v3017
      %v3019 = vrot.slane %v2336, 3
      %v3020 = vsel %vm2995, %v3017, %v3019
      %v3021 = vrot.slane %v2337, 3
      %v3022 = vsel %vm2995, %v3019, %v3021
      %v3023 = vrot.slane %v2338, 3
      %v3024 = vsel %vm2995, %v3021, %v3023
      %v3025 = vrot.slane %v2339, 3
      %v3026 = vsel %vm2995, %v3023, %v3025
      %v3027 = vrot.slane %v2340, 3
      %v3028 = vsel %vm2995, %v3025, %v3027
      %v3029 = vrot.slane %v2341, 3
      %v3030 = vsel %vm2995, %v3027, %v3029
      %v3031 = vrot.slane %v2601, 3
      %v3032 = vsel %vm2995, %v3029, %v3031
      %v3067 = vunpack.c.l.b16 %v2976
      %v3068 = vunpack.c.l.b16 %v2977
      %v3069 = vunpack.c.l.b16 %v2978
      %v3070 = vunpack.c.l.b16 %v2979
      %v3071 = vunpack.c.l.b16 %v2980
      %v3072 = vunpack.c.l.b16 %v2981
      %v3073 = vunpack.c.l.b16 %v2982
      %v3074 = vunpack.c.l.b16 %v2983
      %v3075 = vunpack.c.l.b16 %v2984
      %v3076 = vunpack.c.l.b16 %v2985
      %v3077 = vunpack.c.l.b16 %v2986
      %v3078 = vunpack.c.l.b16 %v2987
      %v3079 = vunpack.c.l.b16 %v2988
      %v3080 = vunpack.c.l.b16 %v2989
      %v3081 = vunpack.c.l.b16 %v2990
      %v3082 = vunpack.c.l.b16 %v2991
      %v3083 = vpack.c.b16 %v3068, %v3067
      %v3084 = vpack.c.b16 %v3070, %v3069
      %v3085 = vpack.c.b16 %v3072, %v3071
      %v3086 = vpack.c.b16 %v3074, %v3073
      %v3087 = vpack.c.b16 %v3076, %v3075
      %v3088 = vpack.c.b16 %v3078, %v3077
      %v3089 = vpack.c.b16 %v3080, %v3079
      %v3090 = vpack.c.b16 %v3082, %v3081
      %3099 = vmatpush.bf16.msra.mxu0 %v3090
      %3100 = vmatpush.bf16.msra.mxu0 %v3089
      %3101 = vmatpush.bf16.msra.mxu0 %v3088
      %3102 = vmatpush.bf16.msra.mxu0 %v3087
      %3103 = vmatpush.bf16.msra.mxu0 %v3086
      %3104 = vmatpush.bf16.msra.mxu0 %v3085
      %3105 = vmatpush.bf16.msra.mxu0 %v3084
      %3106 = vmatpush.bf16.msra.mxu0 %v3083
      %3107 = vmatmul.bf16.gmra.mxu0 %v2998
      %v3108 = vpop.f32.mrf.mxu0
      %v3109 = vadd.f32 0.0, %v3108
      %v3110 = vpop.f32.mrf.mxu0
      %v3111 = vadd.f32 0.0, %v3110
      %3112 = vmatmul.bf16.gmra.mxu0 %v3000
      %v3113 = vpop.f32.mrf.mxu0
      %v3114 = vadd.f32 0.0, %v3113
      %v3115 = vpop.f32.mrf.mxu0
      %v3116 = vadd.f32 0.0, %v3115
      %3117 = vmatmul.bf16.gmra.mxu0 %v3002
      %v3118 = vpop.f32.mrf.mxu0
      %v3119 = vadd.f32 0.0, %v3118
      %v3120 = vpop.f32.mrf.mxu0
      %v3121 = vadd.f32 0.0, %v3120
      %3122 = vmatmul.bf16.gmra.mxu0 %v3004
      %v3123 = vpop.f32.mrf.mxu0
      %v3124 = vadd.f32 0.0, %v3123
      %v3125 = vpop.f32.mrf.mxu0
      %v3126 = vadd.f32 0.0, %v3125
      %3127 = vmatmul.bf16.gmra.mxu0 %v3006
      %v3128 = vpop.f32.mrf.mxu0
      %v3129 = vadd.f32 0.0, %v3128
      %v3130 = vpop.f32.mrf.mxu0
      %v3131 = vadd.f32 0.0, %v3130
      %3132 = vmatmul.bf16.gmra.mxu0 %v3008
      %v3133 = vpop.f32.mrf.mxu0
      %v3134 = vadd.f32 0.0, %v3133
      %v3135 = vpop.f32.mrf.mxu0
      %v3136 = vadd.f32 0.0, %v3135
      %3137 = vmatmul.bf16.gmra.mxu0 %v3010
      %v3138 = vpop.f32.mrf.mxu0
      %v3139 = vadd.f32 0.0, %v3138
      %v3140 = vpop.f32.mrf.mxu0
      %v3141 = vadd.f32 0.0, %v3140
      %3142 = vmatmul.bf16.gmra.mxu0 %v3012
      %v3143 = vpop.f32.mrf.mxu0
      %v3144 = vadd.f32 0.0, %v3143
      %v3145 = vpop.f32.mrf.mxu0
      %v3146 = vadd.f32 0.0, %v3145
      %3147 = vmatmul.bf16.gmra.mxu0 %v3014
      %v3148 = vpop.f32.mrf.mxu0
      %v3149 = vadd.f32 0.0, %v3148
      %v3150 = vpop.f32.mrf.mxu0
      %v3151 = vadd.f32 0.0, %v3150
      %3152 = vmatmul.bf16.gmra.mxu0 %v3016
      %v3153 = vpop.f32.mrf.mxu0
      %v3154 = vadd.f32 0.0, %v3153
      %v3155 = vpop.f32.mrf.mxu0
      %v3156 = vadd.f32 0.0, %v3155
      %3157 = vmatmul.bf16.gmra.mxu0 %v3018
      %v3158 = vpop.f32.mrf.mxu0
      %v3159 = vadd.f32 0.0, %v3158
      %v3160 = vpop.f32.mrf.mxu0
      %v3161 = vadd.f32 0.0, %v3160
      %3162 = vmatmul.bf16.gmra.mxu0 %v3020
      %v3163 = vpop.f32.mrf.mxu0
      %v3164 = vadd.f32 0.0, %v3163
      %v3165 = vpop.f32.mrf.mxu0
      %v3166 = vadd.f32 0.0, %v3165
      %3167 = vmatmul.bf16.gmra.mxu0 %v3022
      %v3168 = vpop.f32.mrf.mxu0
      %v3169 = vadd.f32 0.0, %v3168
      %v3170 = vpop.f32.mrf.mxu0
      %v3171 = vadd.f32 0.0, %v3170
      %3172 = vmatmul.bf16.gmra.mxu0 %v3024
      %v3173 = vpop.f32.mrf.mxu0
      %v3174 = vadd.f32 0.0, %v3173
      %v3175 = vpop.f32.mrf.mxu0
      %v3176 = vadd.f32 0.0, %v3175
      %3177 = vmatmul.bf16.gmra.mxu0 %v3026
      %v3178 = vpop.f32.mrf.mxu0
      %v3179 = vadd.f32 0.0, %v3178
      %v3180 = vpop.f32.mrf.mxu0
      %v3181 = vadd.f32 0.0, %v3180
      %3182 = vmatmul.bf16.gmra.mxu0 %v3028
      %v3183 = vpop.f32.mrf.mxu0
      %v3184 = vadd.f32 0.0, %v3183
      %v3185 = vpop.f32.mrf.mxu0
      %v3186 = vadd.f32 0.0, %v3185
      %3187 = vmatmul.bf16.gmra.mxu0 %v3030
      %v3188 = vpop.f32.mrf.mxu0
      %v3189 = vadd.f32 0.0, %v3188
      %v3190 = vpop.f32.mrf.mxu0
      %v3191 = vadd.f32 0.0, %v3190
      %3192 = vmatmul.bf16.gmra.mxu0 %v3032
      %v3193 = vpop.f32.mrf.mxu0
      %v3194 = vadd.f32 0.0, %v3193
      %v3195 = vpop.f32.mrf.mxu0
      %v3196 = vadd.f32 0.0, %v3195
      %3197 = vdwg.mxu0
      %v3198 = vadd.f32 %v2938, %v3109
      %v3199 = vadd.f32 %v2939, %v3111
      %v3200 = vadd.f32 %v2940, %v3114
      %v3201 = vadd.f32 %v2941, %v3116
      %v3202 = vadd.f32 %v2942, %v3119
      %v3203 = vadd.f32 %v2943, %v3121
      %v3204 = vadd.f32 %v2944, %v3124
      %v3205 = vadd.f32 %v2945, %v3126
      %v3206 = vadd.f32 %v2946, %v3129
      %v3207 = vadd.f32 %v2947, %v3131
      %v3208 = vadd.f32 %v2948, %v3134
      %v3209 = vadd.f32 %v2949, %v3136
      %v3210 = vadd.f32 %v2950, %v3139
      %v3211 = vadd.f32 %v2951, %v3141
      %v3212 = vadd.f32 %v2952, %v3144
      %v3213 = vadd.f32 %v2953, %v3146
      %v3214 = vadd.f32 %v2954, %v3149
      %v3215 = vadd.f32 %v2955, %v3151
      %v3216 = vadd.f32 %v2956, %v3154
      %v3217 = vadd.f32 %v2957, %v3156
      %v3218 = vadd.f32 %v2958, %v3159
      %v3219 = vadd.f32 %v2959, %v3161
      %v3220 = vadd.f32 %v2960, %v3164
      %v3221 = vadd.f32 %v2961, %v3166
      %v3222 = vadd.f32 %v2962, %v3169
      %v3223 = vadd.f32 %v2963, %v3171
      %v3224 = vadd.f32 %v2964, %v3174
      %v3225 = vadd.f32 %v2965, %v3176
      %v3226 = vadd.f32 %v2966, %v3179
      %v3227 = vadd.f32 %v2967, %v3181
      %v3228 = vadd.f32 %v2968, %v3184
      %v3229 = vadd.f32 %v2969, %v3186
      %v3230 = vadd.f32 %v2970, %v3189
      %v3231 = vadd.f32 %v2971, %v3191
      %v3232 = vadd.f32 %v2972, %v3194
      %v3233 = vadd.f32 %v2973, %v3196
      %v3234 = vld [vmem:[%s2] sm:$0x1]
      %v3236 = vperm.slane %v3234, 0
      %v3238 = vadd.f32 %v3198, %v3236
      %v3239 = vadd.f32 %v3199, %v3236
      %v3240 = vadd.f32 %v3200, %v3236
      %v3241 = vadd.f32 %v3201, %v3236
      %v3242 = vadd.f32 %v3202, %v3236
      %v3243 = vadd.f32 %v3203, %v3236
      %v3244 = vadd.f32 %v3204, %v3236
      %v3245 = vadd.f32 %v3205, %v3236
      %v3246 = vadd.f32 %v3206, %v3236
      %v3247 = vadd.f32 %v3207, %v3236
      %v3248 = vadd.f32 %v3208, %v3236
      %v3249 = vadd.f32 %v3209, %v3236
      %v3250 = vadd.f32 %v3210, %v3236
      %v3251 = vadd.f32 %v3211, %v3236
      %v3252 = vadd.f32 %v3212, %v3236
      %v3253 = vadd.f32 %v3213, %v3236
      %v3254 = vadd.f32 %v3214, %v3236
      %v3255 = vadd.f32 %v3215, %v3236
      %v3256 = vadd.f32 %v3216, %v3236
      %v3257 = vadd.f32 %v3217, %v3236
      %v3258 = vadd.f32 %v3218, %v3236
      %v3259 = vadd.f32 %v3219, %v3236
      %v3260 = vadd.f32 %v3220, %v3236
      %v3261 = vadd.f32 %v3221, %v3236
      %v3262 = vadd.f32 %v3222, %v3236
      %v3263 = vadd.f32 %v3223, %v3236
      %v3264 = vadd.f32 %v3224, %v3236
      %v3265 = vadd.f32 %v3225, %v3236
      %v3266 = vadd.f32 %v3226, %v3236
      %v3267 = vadd.f32 %v3227, %v3236
      %v3268 = vadd.f32 %v3228, %v3236
      %v3269 = vadd.f32 %v3229, %v3236
      %v3270 = vadd.f32 %v3230, %v3236
      %v3271 = vadd.f32 %v3231, %v3236
      %v3272 = vadd.f32 %v3232, %v3236
      %v3273 = vadd.f32 %v3233, %v3236
      %v3310 = vrot.slane %v3238, 2
      %v3311 = vrot.slane %v3238, 4
      %v3312 = vrot.slane %v3238, 6
      %v3313 = vrot.slane %v3239, 2
      %v3314 = vrot.slane %v3239, 4
      %v3315 = vrot.slane %v3239, 6
      %v3316 = vrot.slane %v3240, 2
      %v3317 = vrot.slane %v3240, 4
      %v3318 = vrot.slane %v3240, 6
      %v3319 = vrot.slane %v3241, 2
      %v3320 = vrot.slane %v3241, 4
      %v3321 = vrot.slane %v3241, 6
      %v3322 = vrot.slane %v3242, 2
      %v3323 = vrot.slane %v3242, 4
      %v3324 = vrot.slane %v3242, 6
      %v3325 = vrot.slane %v3243, 2
      %v3326 = vrot.slane %v3243, 4
      %v3327 = vrot.slane %v3243, 6
      %v3328 = vrot.slane %v3244, 2
      %v3329 = vrot.slane %v3244, 4
      %v3330 = vrot.slane %v3244, 6
      %v3331 = vrot.slane %v3245, 2
      %v3332 = vrot.slane %v3245, 4
      %v3333 = vrot.slane %v3245, 6
      %v3334 = vrot.slane %v3246, 2
      %v3335 = vrot.slane %v3246, 4
      %v3336 = vrot.slane %v3246, 6
      %v3337 = vrot.slane %v3247, 2
      %v3338 = vrot.slane %v3247, 4
      %v3339 = vrot.slane %v3247, 6
      %v3340 = vrot.slane %v3248, 2
      %v3341 = vrot.slane %v3248, 4
      %v3342 = vrot.slane %v3248, 6
      %v3343 = vrot.slane %v3249, 2
      %v3344 = vrot.slane %v3249, 4
      %v3345 = vrot.slane %v3249, 6
      %v3346 = vrot.slane %v3250, 2
      %v3347 = vrot.slane %v3250, 4
      %v3348 = vrot.slane %v3250, 6
      %v3349 = vrot.slane %v3251, 2
      %v3350 = vrot.slane %v3251, 4
      %v3351 = vrot.slane %v3251, 6
      %v3352 = vrot.slane %v3252, 2
      %v3353 = vrot.slane %v3252, 4
      %v3354 = vrot.slane %v3252, 6
      %v3355 = vrot.slane %v3253, 2
      %v3356 = vrot.slane %v3253, 4
      %v3357 = vrot.slane %v3253, 6
      %v3358 = vrot.slane %v3254, 2
      %v3359 = vrot.slane %v3254, 4
      %v3360 = vrot.slane %v3254, 6
      %v3361 = vrot.slane %v3255, 2
      %v3362 = vrot.slane %v3255, 4
      %v3363 = vrot.slane %v3255, 6
      %v3364 = vrot.slane %v3256, 2
      %v3365 = vrot.slane %v3256, 4
      %v3366 = vrot.slane %v3256, 6
      %v3367 = vrot.slane %v3257, 2
      %v3368 = vrot.slane %v3257, 4
      %v3369 = vrot.slane %v3257, 6
      %v3370 = vrot.slane %v3258, 2
      %v3371 = vrot.slane %v3258, 4
      %v3372 = vrot.slane %v3258, 6
      %v3373 = vrot.slane %v3259, 2
      %v3374 = vrot.slane %v3259, 4
      %v3375 = vrot.slane %v3259, 6
      %v3376 = vrot.slane %v3260, 2
      %v3377 = vrot.slane %v3260, 4
      %v3378 = vrot.slane %v3260, 6
      %v3379 = vrot.slane %v3261, 2
      %v3380 = vrot.slane %v3261, 4
      %v3381 = vrot.slane %v3261, 6
      %v3382 = vrot.slane %v3262, 2
      %v3383 = vrot.slane %v3262, 4
      %v3384 = vrot.slane %v3262, 6
      %v3385 = vrot.slane %v3263, 2
      %v3386 = vrot.slane %v3263, 4
      %v3387 = vrot.slane %v3263, 6
      %v3388 = vrot.slane %v3264, 2
      %v3389 = vrot.slane %v3264, 4
      %v3390 = vrot.slane %v3264, 6
      %v3391 = vrot.slane %v3265, 2
      %v3392 = vrot.slane %v3265, 4
      %v3393 = vrot.slane %v3265, 6
      %v3394 = vrot.slane %v3266, 2
      %v3395 = vrot.slane %v3266, 4
      %v3396 = vrot.slane %v3266, 6
      %v3397 = vrot.slane %v3267, 2
      %v3398 = vrot.slane %v3267, 4
      %v3399 = vrot.slane %v3267, 6
      %v3400 = vrot.slane %v3268, 2
      %v3401 = vrot.slane %v3268, 4
      %v3402 = vrot.slane %v3268, 6
      %v3403 = vrot.slane %v3269, 2
      %v3404 = vrot.slane %v3269, 4
      %v3405 = vrot.slane %v3269, 6
      %v3406 = vrot.slane %v3270, 2
      %v3407 = vrot.slane %v3270, 4
      %v3408 = vrot.slane %v3270, 6
      %v3409 = vrot.slane %v3271, 2
      %v3410 = vrot.slane %v3271, 4
      %v3411 = vrot.slane %v3271, 6
      %v3412 = vrot.slane %v3272, 2
      %v3413 = vrot.slane %v3272, 4
      %v3414 = vrot.slane %v3272, 6
      %v3415 = vrot.slane %v3273, 2
      %v3416 = vrot.slane %v3273, 4
      %v3417 = vrot.slane %v3273, 6
      %3418 = vst [vmem:[#allocation1] ss:$4 sm:$0xff] %v3238
      %s3419 = scalar_lea.vmem [#allocation1], 1
      %3420 = vst [vmem:[%s3419] ss:$4 sm:$0xff] %v3310
      %s3421 = scalar_lea.vmem [#allocation1], 2
      %3422 = vst [vmem:[%s3421] ss:$4 sm:$0xff] %v3311
      %s3423 = scalar_lea.vmem [#allocation1], 3
      %3424 = vst [vmem:[%s3423] ss:$4 sm:$0xff] %v3312
      %s3425 = scalar_lea.vmem [#allocation1], 32
      %3426 = vst [vmem:[%s3425] ss:$4 sm:$0xff] %v3239
      %s3427 = scalar_lea.vmem [#allocation1], 33
      %3428 = vst [vmem:[%s3427] ss:$4 sm:$0xff] %v3313
      %s3429 = scalar_lea.vmem [#allocation1], 34
      %3430 = vst [vmem:[%s3429] ss:$4 sm:$0xff] %v3314
      %s3431 = scalar_lea.vmem [#allocation1], 35
      %3432 = vst [vmem:[%s3431] ss:$4 sm:$0xff] %v3315
      %v3433 = vld.sshfl [vmem:[#allocation1] sm:$0xff pattern:$0x73625140]
      %v3434 = vld.sshfl [vmem:[#allocation1 + $0x20] sm:$0xff pattern:$0x73625140]
      %3435 = vst [vmem:[#allocation1] ss:$4 sm:$0xff] %v3240
      %v3436 = vld.sshfl [vmem:[#allocation1] sm:$0xff pattern:$0x73625140]
      %3437 = vst [vmem:[%s3425] ss:$4 sm:$0xff] %v3316
      %3438 = vst [vmem:[%s3427] ss:$4 sm:$0xff] %v3317
      %3439 = vst [vmem:[%s3429] ss:$4 sm:$0xff] %v3318
      %3440 = vst [vmem:[%s3431] ss:$4 sm:$0xff] %v3241
      %v3441 = vld.sshfl [vmem:[#allocation1 + $0x20] sm:$0xff pattern:$0x73625140]
      %3442 = vst [vmem:[#allocation1] ss:$4 sm:$0xff] %v3319
      %3443 = vst [vmem:[%s3419] ss:$4 sm:$0xff] %v3320
      %3444 = vst [vmem:[%s3421] ss:$4 sm:$0xff] %v3321
      %3445 = vst [vmem:[%s3423] ss:$4 sm:$0xff] %v3242
      %3446 = vst [vmem:[%s3425] ss:$4 sm:$0xff] %v3322
      %v3447 = vld.sshfl [vmem:[#allocation1] sm:$0xff pattern:$0x73625140]
      %v3448 = vld.sshfl [vmem:[#allocation1 + $0x20] sm:$0xff pattern:$0x73625140]
      %3449 = vst [vmem:[#allocation1] ss:$4 sm:$0xff] %v3323
      %3450 = vst [vmem:[%s3419] ss:$4 sm:$0xff] %v3324
      %3451 = vst [vmem:[%s3421] ss:$4 sm:$0xff] %v3243
      %3452 = vst [vmem:[%s3423] ss:$4 sm:$0xff] %v3325
      %3453 = vst [vmem:[%s3425] ss:$4 sm:$0xff] %v3326
      %3454 = vst [vmem:[%s3427] ss:$4 sm:$0xff] %v3327
      %3455 = vst [vmem:[%s3429] ss:$4 sm:$0xff] %v3244
      %3456 = vst [vmem:[%s3431] ss:$4 sm:$0xff] %v3328
      %v3457 = vld.sshfl [vmem:[#allocation1] sm:$0xff pattern:$0x73625140]
      %v3458 = vld.sshfl [vmem:[#allocation1 + $0x20] sm:$0xff pattern:$0x73625140]
      %3459 = vst [vmem:[#allocation1] ss:$4 sm:$0xff] %v3329
      %v3460 = vld.sshfl [vmem:[#allocation1] sm:$0xff pattern:$0x73625140]
      %3461 = vst [vmem:[%s3425] ss:$4 sm:$0xff] %v3330
      %3462 = vst [vmem:[%s3427] ss:$4 sm:$0xff] %v3245
      %3463 = vst [vmem:[%s3429] ss:$4 sm:$0xff] %v3331
      %3464 = vst [vmem:[%s3431] ss:$4 sm:$0xff] %v3332
      %v3465 = vld.sshfl [vmem:[#allocation1 + $0x20] sm:$0xff pattern:$0x73625140]
      %3466 = vst [vmem:[#allocation1] ss:$4 sm:$0xff] %v3333
      %3467 = vst [vmem:[%s3419] ss:$4 sm:$0xff] %v3246
      %3468 = vst [vmem:[%s3421] ss:$4 sm:$0xff] %v3334
      %3469 = vst [vmem:[%s3423] ss:$4 sm:$0xff] %v3335
      %3470 = vst [vmem:[%s3425] ss:$4 sm:$0xff] %v3336
      %v3471 = vld.sshfl [vmem:[#allocation1] sm:$0xff pattern:$0x73625140]
      %v3472 = vld.sshfl [vmem:[#allocation1 + $0x20] sm:$0xff pattern:$0x73625140]
      %3473 = vst [vmem:[#allocation1] ss:$4 sm:$0xff] %v3247
      %3474 = vst [vmem:[%s3419] ss:$4 sm:$0xff] %v3337
      %3475 = vst [vmem:[%s3421] ss:$4 sm:$0xff] %v3338
      %3476 = vst [vmem:[%s3423] ss:$4 sm:$0xff] %v3339
      %3477 = vst [vmem:[%s3425] ss:$4 sm:$0xff] %v3248
      %3478 = vst [vmem:[%s3427] ss:$4 sm:$0xff] %v3340
      %3479 = vst [vmem:[%s3429] ss:$4 sm:$0xff] %v3341
      %3480 = vst [vmem:[%s3431] ss:$4 sm:$0xff] %v3342
      %v3481 = vld.sshfl [vmem:[#allocation1] sm:$0xff pattern:$0x73625140]
      %v3482 = vld.sshfl [vmem:[#allocation1 + $0x20] sm:$0xff pattern:$0x73625140]
      %3483 = vst [vmem:[#allocation1] ss:$4 sm:$0xff] %v3249
      %v3484 = vld.sshfl [vmem:[#allocation1] sm:$0xff pattern:$0x73625140]
      %3485 = vst [vmem:[%s3425] ss:$4 sm:$0xff] %v3343
      %3486 = vst [vmem:[%s3427] ss:$4 sm:$0xff] %v3344
      %3487 = vst [vmem:[%s3429] ss:$4 sm:$0xff] %v3345
      %3488 = vst [vmem:[%s3431] ss:$4 sm:$0xff] %v3250
      %v3489 = vld.sshfl [vmem:[#allocation1 + $0x20] sm:$0xff pattern:$0x73625140]
      %3490 = vst [vmem:[#allocation1] ss:$4 sm:$0xff] %v3346
      %3491 = vst [vmem:[%s3419] ss:$4 sm:$0xff] %v3347
      %3492 = vst [vmem:[%s3421] ss:$4 sm:$0xff] %v3348
      %3493 = vst [vmem:[%s3423] ss:$4 sm:$0xff] %v3251
      %3494 = vst [vmem:[%s3425] ss:$4 sm:$0xff] %v3349
      %v3495 = vld.sshfl [vmem:[#allocation1] sm:$0xff pattern:$0x73625140]
      %v3496 = vld.sshfl [vmem:[#allocation1 + $0x20] sm:$0xff pattern:$0x73625140]
      %3497 = vst [vmem:[#allocation1] ss:$4 sm:$0xff] %v3350
      %3498 = vst [vmem:[%s3419] ss:$4 sm:$0xff] %v3351
      %3499 = vst [vmem:[%s3421] ss:$4 sm:$0xff] %v3252
      %3500 = vst [vmem:[%s3423] ss:$4 sm:$0xff] %v3352
      %3501 = vst [vmem:[%s3425] ss:$4 sm:$0xff] %v3353
      %3502 = vst [vmem:[%s3427] ss:$4 sm:$0xff] %v3354
      %3503 = vst [vmem:[%s3429] ss:$4 sm:$0xff] %v3253
      %3504 = vst [vmem:[%s3431] ss:$4 sm:$0xff] %v3355
      %v3505 = vld.sshfl [vmem:[#allocation1] sm:$0xff pattern:$0x73625140]
      %v3506 = vld.sshfl [vmem:[#allocation1 + $0x20] sm:$0xff pattern:$0x73625140]
      %3507 = vst [vmem:[#allocation1] ss:$4 sm:$0xff] %v3356
      %v3508 = vld.sshfl [vmem:[#allocation1] sm:$0xff pattern:$0x73625140]
      %3509 = vst [vmem:[%s3425] ss:$4 sm:$0xff] %v3357
      %3510 = vst [vmem:[%s3427] ss:$4 sm:$0xff] %v3254
      %3511 = vst [vmem:[%s3429] ss:$4 sm:$0xff] %v3358
      %3512 = vst [vmem:[%s3431] ss:$4 sm:$0xff] %v3359
      %v3513 = vld.sshfl [vmem:[#allocation1 + $0x20] sm:$0xff pattern:$0x73625140]
      %3514 = vst [vmem:[#allocation1] ss:$4 sm:$0xff] %v3360
      %3515 = vst [vmem:[%s3419] ss:$4 sm:$0xff] %v3255
      %3516 = vst [vmem:[%s3421] ss:$4 sm:$0xff] %v3361
      %3517 = vst [vmem:[%s3423] ss:$4 sm:$0xff] %v3362
      %3518 = vst [vmem:[%s3425] ss:$4 sm:$0xff] %v3363
      %v3519 = vld.sshfl [vmem:[#allocation1] sm:$0xff pattern:$0x73625140]
      %v3520 = vld.sshfl [vmem:[#allocation1 + $0x20] sm:$0xff pattern:$0x73625140]
      %3521 = vst [vmem:[#allocation1] ss:$4 sm:$0xff] %v3256
      %3522 = vst [vmem:[%s3419] ss:$4 sm:$0xff] %v3364
      %3523 = vst [vmem:[%s3421] ss:$4 sm:$0xff] %v3365
      %3524 = vst [vmem:[%s3423] ss:$4 sm:$0xff] %v3366
      %3525 = vst [vmem:[%s3425] ss:$4 sm:$0xff] %v3257
      %3526 = vst [vmem:[%s3427] ss:$4 sm:$0xff] %v3367
      %3527 = vst [vmem:[%s3429] ss:$4 sm:$0xff] %v3368
      %3528 = vst [vmem:[%s3431] ss:$4 sm:$0xff] %v3369
      %v3529 = vld.sshfl [vmem:[#allocation1] sm:$0xff pattern:$0x73625140]
      %v3530 = vld.sshfl [vmem:[#allocation1 + $0x20] sm:$0xff pattern:$0x73625140]
      %3531 = vst [vmem:[#allocation1] ss:$4 sm:$0xff] %v3258
      %v3532 = vld.sshfl [vmem:[#allocation1] sm:$0xff pattern:$0x73625140]
      %3533 = vst [vmem:[%s3425] ss:$4 sm:$0xff] %v3370
      %3534 = vst [vmem:[%s3427] ss:$4 sm:$0xff] %v3371
      %3535 = vst [vmem:[%s3429] ss:$4 sm:$0xff] %v3372
      %3536 = vst [vmem:[%s3431] ss:$4 sm:$0xff] %v3259
      %v3537 = vld.sshfl [vmem:[#allocation1 + $0x20] sm:$0xff pattern:$0x73625140]
      %3538 = vst [vmem:[#allocation1] ss:$4 sm:$0xff] %v3373
      %3539 = vst [vmem:[%s3419] ss:$4 sm:$0xff] %v3374
      %3540 = vst [vmem:[%s3421] ss:$4 sm:$0xff] %v3375
      %3541 = vst [vmem:[%s3423] ss:$4 sm:$0xff] %v3260
      %3542 = vst [vmem:[%s3425] ss:$4 sm:$0xff] %v3376
      %v3543 = vld.sshfl [vmem:[#allocation1] sm:$0xff pattern:$0x73625140]
      %v3544 = vld.sshfl [vmem:[#allocation1 + $0x20] sm:$0xff pattern:$0x73625140]
      %3545 = vst [vmem:[#allocation1] ss:$4 sm:$0xff] %v3377
      %3546 = vst [vmem:[%s3419] ss:$4 sm:$0xff] %v3378
      %3547 = vst [vmem:[%s3421] ss:$4 sm:$0xff] %v3261
      %3548 = vst [vmem:[%s3423] ss:$4 sm:$0xff] %v3379
      %3549 = vst [vmem:[%s3425] ss:$4 sm:$0xff] %v3380
      %3550 = vst [vmem:[%s3427] ss:$4 sm:$0xff] %v3381
      %3551 = vst [vmem:[%s3429] ss:$4 sm:$0xff] %v3262
      %3552 = vst [vmem:[%s3431] ss:$4 sm:$0xff] %v3382
      %v3553 = vld.sshfl [vmem:[#allocation1] sm:$0xff pattern:$0x73625140]
      %v3554 = vld.sshfl [vmem:[#allocation1 + $0x20] sm:$0xff pattern:$0x73625140]
      %3555 = vst [vmem:[#allocation1] ss:$4 sm:$0xff] %v3383
      %v3556 = vld.sshfl [vmem:[#allocation1] sm:$0xff pattern:$0x73625140]
      %3557 = vst [vmem:[%s3425] ss:$4 sm:$0xff] %v3384
      %3558 = vst [vmem:[%s3427] ss:$4 sm:$0xff] %v3263
      %3559 = vst [vmem:[%s3429] ss:$4 sm:$0xff] %v3385
      %3560 = vst [vmem:[%s3431] ss:$4 sm:$0xff] %v3386
      %v3561 = vld.sshfl [vmem:[#allocation1 + $0x20] sm:$0xff pattern:$0x73625140]
      %3562 = vst [vmem:[#allocation1] ss:$4 sm:$0xff] %v3387
      %3563 = vst [vmem:[%s3419] ss:$4 sm:$0xff] %v3264
      %3564 = vst [vmem:[%s3421] ss:$4 sm:$0xff] %v3388
      %3565 = vst [vmem:[%s3423] ss:$4 sm:$0xff] %v3389
      %3566 = vst [vmem:[%s3425] ss:$4 sm:$0xff] %v3390
      %v3567 = vld.sshfl [vmem:[#allocation1] sm:$0xff pattern:$0x73625140]
      %v3568 = vld.sshfl [vmem:[#allocation1 + $0x20] sm:$0xff pattern:$0x73625140]
      %3569 = vst [vmem:[#allocation1] ss:$4 sm:$0xff] %v3265
      %3570 = vst [vmem:[%s3419] ss:$4 sm:$0xff] %v3391
      %3571 = vst [vmem:[%s3421] ss:$4 sm:$0xff] %v3392
      %3572 = vst [vmem:[%s3423] ss:$4 sm:$0xff] %v3393
      %3573 = vst [vmem:[%s3425] ss:$4 sm:$0xff] %v3266
      %3574 = vst [vmem:[%s3427] ss:$4 sm:$0xff] %v3394
      %3575 = vst [vmem:[%s3429] ss:$4 sm:$0xff] %v3395
      %3576 = vst [vmem:[%s3431] ss:$4 sm:$0xff] %v3396
      %v3577 = vld.sshfl [vmem:[#allocation1] sm:$0xff pattern:$0x73625140]
      %v3578 = vld.sshfl [vmem:[#allocation1 + $0x20] sm:$0xff pattern:$0x73625140]
      %3579 = vst [vmem:[#allocation1] ss:$4 sm:$0xff] %v3267
      %v3580 = vld.sshfl [vmem:[#allocation1] sm:$0xff pattern:$0x73625140]
      %3581 = vst [vmem:[%s3425] ss:$4 sm:$0xff] %v3397
      %3582 = vst [vmem:[%s3427] ss:$4 sm:$0xff] %v3398
      %3583 = vst [vmem:[%s3429] ss:$4 sm:$0xff] %v3399
      %3584 = vst [vmem:[%s3431] ss:$4 sm:$0xff] %v3268
      %v3585 = vld.sshfl [vmem:[#allocation1 + $0x20] sm:$0xff pattern:$0x73625140]
      %3586 = vst [vmem:[#allocation1] ss:$4 sm:$0xff] %v3400
      %3587 = vst [vmem:[%s3419] ss:$4 sm:$0xff] %v3401
      %3588 = vst [vmem:[%s3421] ss:$4 sm:$0xff] %v3402
      %3589 = vst [vmem:[%s3423] ss:$4 sm:$0xff] %v3269
      %3590 = vst [vmem:[%s3425] ss:$4 sm:$0xff] %v3403
      %v3591 = vld.sshfl [vmem:[#allocation1] sm:$0xff pattern:$0x73625140]
      %v3592 = vld.sshfl [vmem:[#allocation1 + $0x20] sm:$0xff pattern:$0x73625140]
      %3593 = vst [vmem:[#allocation1] ss:$4 sm:$0xff] %v3404
      %3594 = vst [vmem:[%s3419] ss:$4 sm:$0xff] %v3405
      %3595 = vst [vmem:[%s3421] ss:$4 sm:$0xff] %v3270
      %3596 = vst [vmem:[%s3423] ss:$4 sm:$0xff] %v3406
      %3597 = vst [vmem:[%s3425] ss:$4 sm:$0xff] %v3407
      %3598 = vst [vmem:[%s3427] ss:$4 sm:$0xff] %v3408
      %3599 = vst [vmem:[%s3429] ss:$4 sm:$0xff] %v3271
      %3600 = vst [vmem:[%s3431] ss:$4 sm:$0xff] %v3409
      %v3601 = vld.sshfl [vmem:[#allocation1] sm:$0xff pattern:$0x73625140]
      %v3602 = vld.sshfl [vmem:[#allocation1 + $0x20] sm:$0xff pattern:$0x73625140]
      %3603 = vst [vmem:[#allocation1] ss:$4 sm:$0xff] %v3410
      %v3604 = vld.sshfl [vmem:[#allocation1] sm:$0xff pattern:$0x73625140]
      %3605 = vst [vmem:[%s3425] ss:$4 sm:$0xff] %v3411
      %3606 = vst [vmem:[%s3427] ss:$4 sm:$0xff] %v3272
      %3607 = vst [vmem:[%s3429] ss:$4 sm:$0xff] %v3412
      %3608 = vst [vmem:[%s3431] ss:$4 sm:$0xff] %v3413
      %v3609 = vld.sshfl [vmem:[#allocation1 + $0x20] sm:$0xff pattern:$0x73625140]
      %3610 = vst [vmem:[#allocation1] ss:$4 sm:$0xff] %v3414
      %3611 = vst [vmem:[%s3419] ss:$4 sm:$0xff] %v3273
      %3612 = vst [vmem:[%s3421] ss:$4 sm:$0xff] %v3415
      %3613 = vst [vmem:[%s3423] ss:$4 sm:$0xff] %v3416
      %3614 = vst [vmem:[%s3425] ss:$4 sm:$0xff] %v3417
      %v3615 = vld.sshfl [vmem:[#allocation1] sm:$0xff pattern:$0x73625140]
      %v3616 = vld.sshfl [vmem:[#allocation1 + $0x20] sm:$0xff pattern:$0x73625140]
      %v3665 = vpack.c.bf16 %v3433, %v3433
      %v3666 = vpack.c.bf16 %v3434, %v3434
      %v3667 = vpack.c.bf16 %v3436, %v3436
      %v3668 = vpack.c.bf16 %v3441, %v3441
      %v3669 = vpack.c.bf16 %v3447, %v3447
      %v3670 = vpack.c.bf16 %v3448, %v3448
      %v3671 = vpack.c.bf16 %v3457, %v3457
      %v3672 = vpack.c.bf16 %v3458, %v3458
      %v3673 = vpack.c.bf16 %v3460, %v3460
      %v3674 = vpack.c.bf16 %v3465, %v3465
      %v3675 = vpack.c.bf16 %v3471, %v3471
      %v3676 = vpack.c.bf16 %v3472, %v3472
      %v3677 = vpack.c.bf16 %v3481, %v3481
      %v3678 = vpack.c.bf16 %v3482, %v3482
      %v3679 = vpack.c.bf16 %v3484, %v3484
      %v3680 = vpack.c.bf16 %v3489, %v3489
      %v3681 = vpack.c.bf16 %v3495, %v3495
      %v3682 = vpack.c.bf16 %v3496, %v3496
      %v3683 = vpack.c.bf16 %v3505, %v3505
      %v3684 = vpack.c.bf16 %v3506, %v3506
      %v3685 = vpack.c.bf16 %v3508, %v3508
      %v3686 = vpack.c.bf16 %v3513, %v3513
      %v3687 = vpack.c.bf16 %v3519, %v3519
      %v3688 = vpack.c.bf16 %v3520, %v3520
      %v3689 = vpack.c.bf16 %v3529, %v3529
      %v3690 = vpack.c.bf16 %v3530, %v3530
      %v3691 = vpack.c.bf16 %v3532, %v3532
      %v3692 = vpack.c.bf16 %v3537, %v3537
      %v3693 = vpack.c.bf16 %v3543, %v3543
      %v3694 = vpack.c.bf16 %v3544, %v3544
      %v3695 = vpack.c.bf16 %v3553, %v3553
      %v3696 = vpack.c.bf16 %v3554, %v3554
      %v3697 = vpack.c.bf16 %v3556, %v3556
      %v3698 = vpack.c.bf16 %v3561, %v3561
      %v3699 = vpack.c.bf16 %v3567, %v3567
      %v3700 = vpack.c.bf16 %v3568, %v3568
      %v3701 = vpack.c.bf16 %v3577, %v3577
      %v3702 = vpack.c.bf16 %v3578, %v3578
      %v3703 = vpack.c.bf16 %v3580, %v3580
      %v3704 = vpack.c.bf16 %v3585, %v3585
      %v3705 = vpack.c.bf16 %v3591, %v3591
      %v3706 = vpack.c.bf16 %v3592, %v3592
      %v3707 = vpack.c.bf16 %v3601, %v3601
      %v3708 = vpack.c.bf16 %v3602, %v3602
      %v3709 = vpack.c.bf16 %v3604, %v3604
      %v3710 = vpack.c.bf16 %v3609, %v3609
      %v3711 = vpack.c.bf16 %v3615, %v3615
      %v3712 = vpack.c.bf16 %v3616, %v3616
      %3713 = vst [vmem:[%s247] sm:$0xf] %v3665
      %3714 = vst [vmem:[%s247 + $0x4] sm:$0xf] %v3666
      %3715 = vst [vmem:[%s247 + $0x8] sm:$0x1] %v3667
      %3716 = vst [vmem:[%s247 + $0xc] sm:$0xf] %v3668
      %3717 = vst [vmem:[%s247 + $0x10] sm:$0xf] %v3669
      %3718 = vst [vmem:[%s247 + $0x14] sm:$0x1] %v3670
      %3719 = vst [vmem:[%s247 + $0x18] sm:$0xf] %v3671
      %3720 = vst [vmem:[%s247 + $0x1c] sm:$0xf] %v3672
      %3721 = vst [vmem:[%s247 + $0x20] sm:$0x1] %v3673
      %3722 = vst [vmem:[%s247 + $0x24] sm:$0xf] %v3674
      %3723 = vst [vmem:[%s247 + $0x28] sm:$0xf] %v3675
      %3724 = vst [vmem:[%s247 + $0x2c] sm:$0x1] %v3676
      %3725 = vst [vmem:[%s247 + $0x30] sm:$0xf] %v3677
      %3726 = vst [vmem:[%s247 + $0x34] sm:$0xf] %v3678
      %3727 = vst [vmem:[%s247 + $0x38] sm:$0x1] %v3679
      %3728 = vst [vmem:[%s247 + $0x3c] sm:$0xf] %v3680
      %3729 = vst [vmem:[%s247 + $0x40] sm:$0xf] %v3681
      %3730 = vst [vmem:[%s247 + $0x44] sm:$0x1] %v3682
      %3731 = vst [vmem:[%s247 + $0x48] sm:$0xf] %v3683
      %3732 = vst [vmem:[%s247 + $0x4c] sm:$0xf] %v3684
      %3733 = vst [vmem:[%s247 + $0x50] sm:$0x1] %v3685
      %3734 = vst [vmem:[%s247 + $0x54] sm:$0xf] %v3686
      %3735 = vst [vmem:[%s247 + $0x58] sm:$0xf] %v3687
      %3736 = vst [vmem:[%s247 + $0x5c] sm:$0x1] %v3688
      %3737 = vst [vmem:[%s247 + $0x60] sm:$0xf] %v3689
      %3738 = vst [vmem:[%s247 + $0x64] sm:$0xf] %v3690
      %3739 = vst [vmem:[%s247 + $0x68] sm:$0x1] %v3691
      %3740 = vst [vmem:[%s247 + $0x6c] sm:$0xf] %v3692
      %3741 = vst [vmem:[%s247 + $0x70] sm:$0xf] %v3693
      %3742 = vst [vmem:[%s247 + $0x74] sm:$0x1] %v3694
      %3743 = vst [vmem:[%s247 + $0x78] sm:$0xf] %v3695
      %3744 = vst [vmem:[%s247 + $0x7c] sm:$0xf] %v3696
      %3745 = vst [vmem:[%s247 + $0x80] sm:$0x1] %v3697
      %3746 = vst [vmem:[%s247 + $0x84] sm:$0xf] %v3698
      %3747 = vst [vmem:[%s247 + $0x88] sm:$0xf] %v3699
      %3748 = vst [vmem:[%s247 + $0x8c] sm:$0x1] %v3700
      %3749 = vst [vmem:[%s247 + $0x90] sm:$0xf] %v3701
      %3750 = vst [vmem:[%s247 + $0x94] sm:$0xf] %v3702
      %3751 = vst [vmem:[%s247 + $0x98] sm:$0x1] %v3703
      %3752 = vst [vmem:[%s247 + $0x9c] sm:$0xf] %v3704
      %3753 = vst [vmem:[%s247 + $0xa0] sm:$0xf] %v3705
      %3754 = vst [vmem:[%s247 + $0xa4] sm:$0x1] %v3706
      %3755 = vst [vmem:[%s247 + $0xa8] sm:$0xf] %v3707
      %3756 = vst [vmem:[%s247 + $0xac] sm:$0xf] %v3708
      %3757 = vst [vmem:[%s247 + $0xb0] sm:$0x1] %v3709
      %3758 = vst [vmem:[%s247 + $0xb4] sm:$0xf] %v3710
      %3759 = vst [vmem:[%s247 + $0xb8] sm:$0xf] %v3711
      %3760 = vst [vmem:[%s247 + $0xbc] sm:$0x1] %v3712
      %v3761 = vlaneseq
      %v3762 = vshrl.u32 %v3761, 7
      %v3763 = vadd.s32 %v3762, 8
      %v3764 = vadd.s32 %v3762, 16
      %v3765 = vadd.s32 %v3762, 24
      %v3766 = vadd.s32 %v3762, 32
      %v3767 = vadd.s32 %v3762, 40
      %v3768 = vadd.s32 %v3762, 48
      %v3769 = vadd.s32 %v3762, 56
      %v3770 = vadd.s32 %v3762, 64
      %v3771 = vadd.s32 %v3762, 72
      %v3772 = vadd.s32 %v3762, 80
      %v3773 = vadd.s32 %v3762, 88
      %v3774 = vadd.s32 %v3762, 96
      %v3775 = vadd.s32 %v3762, 104
      %v3776 = vadd.s32 %v3762, 112
      %v3777 = vadd.s32 %v3762, 120
      %v3778 = vadd.s32 %v3762, 128
      %v3779 = vadd.s32 %v3762, 136
      %v3780 = vadd.s32 %v3762, 144
      %v3781 = vadd.s32 %v3762, 152
      %v3782 = vadd.s32 %v3762, 160
      %v3783 = vadd.s32 %v3762, 168
      %v3784 = vadd.s32 %v3762, 176
      %v3785 = vadd.s32 %v3762, 184
      %v3786 = vadd.s32 %v3762, 192
      %v3787 = vadd.s32 %v3762, 200
      %v3788 = vadd.s32 %v3762, 208
      %v3789 = vadd.s32 %v3762, 216
      %v3790 = vadd.s32 %v3762, 224
      %v3791 = vadd.s32 %v3762, 232
      %v3792 = vadd.s32 %v3762, 240
      %v3793 = vadd.s32 %v3762, 248
      %v3794 = vadd.s32 %v3762, 256
      %v3795 = vadd.s32 %v3762, 264
      %v3796 = vadd.s32 %v3762, 272
      %v3797 = vadd.s32 %v3762, 280
      %vm3798 = vcmp.lt.s32.totalorder %v3762, 0
      %v3799 = vsub.s32 0, %v3762
      %v3800 = vsel %vm3798, %v3799, %v3762
      %v3801 = vand.u32 %v3800, 65535
      %v3802 = vshrl.u32 %v3800, 16
      %v3804 = vmul.u32 %v3801, 14564
      %v3805 = vmul.u32 %v3801, 58254
      %v3806 = vmul.u32 %v3802, 14564
      %v3807 = vmul.u32 %v3802, 58254
      %v3808 = vshll.u32 %v3805, 16
      %v3809 = vshrl.u32 %v3805, 16
      %v3810 = vshll.u32 %v3806, 16
      %v3811 = vshrl.u32 %v3806, 16
      %vm3812 = vc.u32 %v3804, %v3808
      %v3813 = vsel %vm3812, 1, 0
      %v3814 = vadd.s32 %v3804, %v3808
      %v3815 = vadd.s32 %v3807, %v3813
      %vm3816 = vc.u32 %v3814, %v3810
      %v3817 = vsel %vm3816, 1, 0
      %v3818 = vadd.s32 %v3814, %v3810
      %v3819 = vadd.s32 %v3815, %v3817
      %v3820 = vadd.s32 %v3819, %v3809
      %v3821 = vadd.s32 %v3820, %v3811
      %v3822 = vshrl.u32 %v3821, 4
      %v3823 = vmul.u32 %v3822, 18
      %v3824 = vsub.s32 %v3800, %v3823
      %v3825 = vsub.s32 0, %v3824
      %v3826 = vsel %vm3798, %v3825, %v3824
      %vm3827 = vcmp.lt.s32.totalorder %v3763, 0
      %v3828 = vsub.s32 0, %v3763
      %v3829 = vsel %vm3827, %v3828, %v3763
      %v3830 = vand.u32 %v3829, 65535
      %v3831 = vshrl.u32 %v3829, 16
      %v3833 = vmul.u32 %v3830, 14564
      %v3834 = vmul.u32 %v3830, 58254
      %v3835 = vmul.u32 %v3831, 14564
      %v3836 = vmul.u32 %v3831, 58254
      %v3837 = vshll.u32 %v3834, 16
      %v3838 = vshrl.u32 %v3834, 16
      %v3839 = vshll.u32 %v3835, 16
      %v3840 = vshrl.u32 %v3835, 16
      %vm3841 = vc.u32 %v3833, %v3837
      %v3842 = vsel %vm3841, 1, 0
      %v3843 = vadd.s32 %v3833, %v3837
      %v3844 = vadd.s32 %v3836, %v3842
      %vm3845 = vc.u32 %v3843, %v3839
      %v3846 = vsel %vm3845, 1, 0
      %v3847 = vadd.s32 %v3843, %v3839
      %v3848 = vadd.s32 %v3844, %v3846
      %v3849 = vadd.s32 %v3848, %v3838
      %v3850 = vadd.s32 %v3849, %v3840
      %v3851 = vshrl.u32 %v3850, 4
      %v3852 = vmul.u32 %v3851, 18
      %v3853 = vsub.s32 %v3829, %v3852
      %v3854 = vsub.s32 0, %v3853
      %v3855 = vsel %vm3827, %v3854, %v3853
      %vm3856 = vcmp.lt.s32.totalorder %v3764, 0
      %v3857 = vsub.s32 0, %v3764
      %v3858 = vsel %vm3856, %v3857, %v3764
      %v3859 = vand.u32 %v3858, 65535
      %v3860 = vshrl.u32 %v3858, 16
      %v3862 = vmul.u32 %v3859, 14564
      %v3863 = vmul.u32 %v3859, 58254
      %v3864 = vmul.u32 %v3860, 14564
      %v3865 = vmul.u32 %v3860, 58254
      %v3866 = vshll.u32 %v3863, 16
      %v3867 = vshrl.u32 %v3863, 16
      %v3868 = vshll.u32 %v3864, 16
      %v3869 = vshrl.u32 %v3864, 16
      %vm3870 = vc.u32 %v3862, %v3866
      %v3871 = vsel %vm3870, 1, 0
      %v3872 = vadd.s32 %v3862, %v3866
      %v3873 = vadd.s32 %v3865, %v3871
      %vm3874 = vc.u32 %v3872, %v3868
      %v3875 = vsel %vm3874, 1, 0
      %v3876 = vadd.s32 %v3872, %v3868
      %v3877 = vadd.s32 %v3873, %v3875
      %v3878 = vadd.s32 %v3877, %v3867
      %v3879 = vadd.s32 %v3878, %v3869
      %v3880 = vshrl.u32 %v3879, 4
      %v3881 = vmul.u32 %v3880, 18
      %v3882 = vsub.s32 %v3858, %v3881
      %v3883 = vsub.s32 0, %v3882
      %v3884 = vsel %vm3856, %v3883, %v3882
      %vm3885 = vcmp.lt.s32.totalorder %v3765, 0
      %v3886 = vsub.s32 0, %v3765
      %v3887 = vsel %vm3885, %v3886, %v3765
      %v3888 = vand.u32 %v3887, 65535
      %v3889 = vshrl.u32 %v3887, 16
      %v3891 = vmul.u32 %v3888, 14564
      %v3892 = vmul.u32 %v3888, 58254
      %v3893 = vmul.u32 %v3889, 14564
      %v3894 = vmul.u32 %v3889, 58254
      %v3895 = vshll.u32 %v3892, 16
      %v3896 = vshrl.u32 %v3892, 16
      %v3897 = vshll.u32 %v3893, 16
      %v3898 = vshrl.u32 %v3893, 16
      %vm3899 = vc.u32 %v3891, %v3895
      %v3900 = vsel %vm3899, 1, 0
      %v3901 = vadd.s32 %v3891, %v3895
      %v3902 = vadd.s32 %v3894, %v3900
      %vm3903 = vc.u32 %v3901, %v3897
      %v3904 = vsel %vm3903, 1, 0
      %v3905 = vadd.s32 %v3901, %v3897
      %v3906 = vadd.s32 %v3902, %v3904
      %v3907 = vadd.s32 %v3906, %v3896
      %v3908 = vadd.s32 %v3907, %v3898
      %v3909 = vshrl.u32 %v3908, 4
      %v3910 = vmul.u32 %v3909, 18
      %v3911 = vsub.s32 %v3887, %v3910
      %v3912 = vsub.s32 0, %v3911
      %v3913 = vsel %vm3885, %v3912, %v3911
      %vm3914 = vcmp.lt.s32.totalorder %v3766, 0
      %v3915 = vsub.s32 0, %v3766
      %v3916 = vsel %vm3914, %v3915, %v3766
      %v3917 = vand.u32 %v3916, 65535
      %v3918 = vshrl.u32 %v3916, 16
      %v3920 = vmul.u32 %v3917, 14564
      %v3921 = vmul.u32 %v3917, 58254
      %v3922 = vmul.u32 %v3918, 14564
      %v3923 = vmul.u32 %v3918, 58254
      %v3924 = vshll.u32 %v3921, 16
      %v3925 = vshrl.u32 %v3921, 16
      %v3926 = vshll.u32 %v3922, 16
      %v3927 = vshrl.u32 %v3922, 16
      %vm3928 = vc.u32 %v3920, %v3924
      %v3929 = vsel %vm3928, 1, 0
      %v3930 = vadd.s32 %v3920, %v3924
      %v3931 = vadd.s32 %v3923, %v3929
      %vm3932 = vc.u32 %v3930, %v3926
      %v3933 = vsel %vm3932, 1, 0
      %v3934 = vadd.s32 %v3930, %v3926
      %v3935 = vadd.s32 %v3931, %v3933
      %v3936 = vadd.s32 %v3935, %v3925
      %v3937 = vadd.s32 %v3936, %v3927
      %v3938 = vshrl.u32 %v3937, 4
      %v3939 = vmul.u32 %v3938, 18
      %v3940 = vsub.s32 %v3916, %v3939
      %v3941 = vsub.s32 0, %v3940
      %v3942 = vsel %vm3914, %v3941, %v3940
      %vm3943 = vcmp.lt.s32.totalorder %v3767, 0
      %v3944 = vsub.s32 0, %v3767
      %v3945 = vsel %vm3943, %v3944, %v3767
      %v3946 = vand.u32 %v3945, 65535
      %v3947 = vshrl.u32 %v3945, 16
      %v3949 = vmul.u32 %v3946, 14564
      %v3950 = vmul.u32 %v3946, 58254
      %v3951 = vmul.u32 %v3947, 14564
      %v3952 = vmul.u32 %v3947, 58254
      %v3953 = vshll.u32 %v3950, 16
      %v3954 = vshrl.u32 %v3950, 16
      %v3955 = vshll.u32 %v3951, 16
      %v3956 = vshrl.u32 %v3951, 16
      %vm3957 = vc.u32 %v3949, %v3953
      %v3958 = vsel %vm3957, 1, 0
      %v3959 = vadd.s32 %v3949, %v3953
      %v3960 = vadd.s32 %v3952, %v3958
      %vm3961 = vc.u32 %v3959, %v3955
      %v3962 = vsel %vm3961, 1, 0
      %v3963 = vadd.s32 %v3959, %v3955
      %v3964 = vadd.s32 %v3960, %v3962
      %v3965 = vadd.s32 %v3964, %v3954
      %v3966 = vadd.s32 %v3965, %v3956
      %v3967 = vshrl.u32 %v3966, 4
      %v3968 = vmul.u32 %v3967, 18
      %v3969 = vsub.s32 %v3945, %v3968
      %v3970 = vsub.s32 0, %v3969
      %v3971 = vsel %vm3943, %v3970, %v3969
      %vm3972 = vcmp.lt.s32.totalorder %v3768, 0
      %v3973 = vsub.s32 0, %v3768
      %v3974 = vsel %vm3972, %v3973, %v3768
      %v3975 = vand.u32 %v3974, 65535
      %v3976 = vshrl.u32 %v3974, 16
      %v3978 = vmul.u32 %v3975, 14564
      %v3979 = vmul.u32 %v3975, 58254
      %v3980 = vmul.u32 %v3976, 14564
      %v3981 = vmul.u32 %v3976, 58254
      %v3982 = vshll.u32 %v3979, 16
      %v3983 = vshrl.u32 %v3979, 16
      %v3984 = vshll.u32 %v3980, 16
      %v3985 = vshrl.u32 %v3980, 16
      %vm3986 = vc.u32 %v3978, %v3982
      %v3987 = vsel %vm3986, 1, 0
      %v3988 = vadd.s32 %v3978, %v3982
      %v3989 = vadd.s32 %v3981, %v3987
      %vm3990 = vc.u32 %v3988, %v3984
      %v3991 = vsel %vm3990, 1, 0
      %v3992 = vadd.s32 %v3988, %v3984
      %v3993 = vadd.s32 %v3989, %v3991
      %v3994 = vadd.s32 %v3993, %v3983
      %v3995 = vadd.s32 %v3994, %v3985
      %v3996 = vshrl.u32 %v3995, 4
      %v3997 = vmul.u32 %v3996, 18
      %v3998 = vsub.s32 %v3974, %v3997
      %v3999 = vsub.s32 0, %v3998
      %v4000 = vsel %vm3972, %v3999, %v3998
      %vm4001 = vcmp.lt.s32.totalorder %v3769, 0
      %v4002 = vsub.s32 0, %v3769
      %v4003 = vsel %vm4001, %v4002, %v3769
      %v4004 = vand.u32 %v4003, 65535
      %v4005 = vshrl.u32 %v4003, 16
      %v4007 = vmul.u32 %v4004, 14564
      %v4008 = vmul.u32 %v4004, 58254
      %v4009 = vmul.u32 %v4005, 14564
      %v4010 = vmul.u32 %v4005, 58254
      %v4011 = vshll.u32 %v4008, 16
      %v4012 = vshrl.u32 %v4008, 16
      %v4013 = vshll.u32 %v4009, 16
      %v4014 = vshrl.u32 %v4009, 16
      %vm4015 = vc.u32 %v4007, %v4011
      %v4016 = vsel %vm4015, 1, 0
      %v4017 = vadd.s32 %v4007, %v4011
      %v4018 = vadd.s32 %v4010, %v4016
      %vm4019 = vc.u32 %v4017, %v4013
      %v4020 = vsel %vm4019, 1, 0
      %v4021 = vadd.s32 %v4017, %v4013
      %v4022 = vadd.s32 %v4018, %v4020
      %v4023 = vadd.s32 %v4022, %v4012
      %v4024 = vadd.s32 %v4023, %v4014
      %v4025 = vshrl.u32 %v4024, 4
      %v4026 = vmul.u32 %v4025, 18
      %v4027 = vsub.s32 %v4003, %v4026
      %v4028 = vsub.s32 0, %v4027
      %v4029 = vsel %vm4001, %v4028, %v4027
      %vm4030 = vcmp.lt.s32.totalorder %v3770, 0
      %v4031 = vsub.s32 0, %v3770
      %v4032 = vsel %vm4030, %v4031, %v3770
      %v4033 = vand.u32 %v4032, 65535
      %v4034 = vshrl.u32 %v4032, 16
      %v4036 = vmul.u32 %v4033, 14564
      %v4037 = vmul.u32 %v4033, 58254
      %v4038 = vmul.u32 %v4034, 14564
      %v4039 = vmul.u32 %v4034, 58254
      %v4040 = vshll.u32 %v4037, 16
      %v4041 = vshrl.u32 %v4037, 16
      %v4042 = vshll.u32 %v4038, 16
      %v4043 = vshrl.u32 %v4038, 16
      %vm4044 = vc.u32 %v4036, %v4040
      %v4045 = vsel %vm4044, 1, 0
      %v4046 = vadd.s32 %v4036, %v4040
      %v4047 = vadd.s32 %v4039, %v4045
      %vm4048 = vc.u32 %v4046, %v4042
      %v4049 = vsel %vm4048, 1, 0
      %v4050 = vadd.s32 %v4046, %v4042
      %v4051 = vadd.s32 %v4047, %v4049
      %v4052 = vadd.s32 %v4051, %v4041
      %v4053 = vadd.s32 %v4052, %v4043
      %v4054 = vshrl.u32 %v4053, 4
      %v4055 = vmul.u32 %v4054, 18
      %v4056 = vsub.s32 %v4032, %v4055
      %v4057 = vsub.s32 0, %v4056
      %v4058 = vsel %vm4030, %v4057, %v4056
      %vm4059 = vcmp.lt.s32.totalorder %v3771, 0
      %v4060 = vsub.s32 0, %v3771
      %v4061 = vsel %vm4059, %v4060, %v3771
      %v4062 = vand.u32 %v4061, 65535
      %v4063 = vshrl.u32 %v4061, 16
      %v4065 = vmul.u32 %v4062, 14564
      %v4066 = vmul.u32 %v4062, 58254
      %v4067 = vmul.u32 %v4063, 14564
      %v4068 = vmul.u32 %v4063, 58254
      %v4069 = vshll.u32 %v4066, 16
      %v4070 = vshrl.u32 %v4066, 16
      %v4071 = vshll.u32 %v4067, 16
      %v4072 = vshrl.u32 %v4067, 16
      %vm4073 = vc.u32 %v4065, %v4069
      %v4074 = vsel %vm4073, 1, 0
      %v4075 = vadd.s32 %v4065, %v4069
      %v4076 = vadd.s32 %v4068, %v4074
      %vm4077 = vc.u32 %v4075, %v4071
      %v4078 = vsel %vm4077, 1, 0
      %v4079 = vadd.s32 %v4075, %v4071
      %v4080 = vadd.s32 %v4076, %v4078
      %v4081 = vadd.s32 %v4080, %v4070
      %v4082 = vadd.s32 %v4081, %v4072
      %v4083 = vshrl.u32 %v4082, 4
      %v4084 = vmul.u32 %v4083, 18
      %v4085 = vsub.s32 %v4061, %v4084
      %v4086 = vsub.s32 0, %v4085
      %v4087 = vsel %vm4059, %v4086, %v4085
      %vm4088 = vcmp.lt.s32.totalorder %v3772, 0
      %v4089 = vsub.s32 0, %v3772
      %v4090 = vsel %vm4088, %v4089, %v3772
      %v4091 = vand.u32 %v4090, 65535
      %v4092 = vshrl.u32 %v4090, 16
      %v4094 = vmul.u32 %v4091, 14564
      %v4095 = vmul.u32 %v4091, 58254
      %v4096 = vmul.u32 %v4092, 14564
      %v4097 = vmul.u32 %v4092, 58254
      %v4098 = vshll.u32 %v4095, 16
      %v4099 = vshrl.u32 %v4095, 16
      %v4100 = vshll.u32 %v4096, 16
      %v4101 = vshrl.u32 %v4096, 16
      %vm4102 = vc.u32 %v4094, %v4098
      %v4103 = vsel %vm4102, 1, 0
      %v4104 = vadd.s32 %v4094, %v4098
      %v4105 = vadd.s32 %v4097, %v4103
      %vm4106 = vc.u32 %v4104, %v4100
      %v4107 = vsel %vm4106, 1, 0
      %v4108 = vadd.s32 %v4104, %v4100
      %v4109 = vadd.s32 %v4105, %v4107
      %v4110 = vadd.s32 %v4109, %v4099
      %v4111 = vadd.s32 %v4110, %v4101
      %v4112 = vshrl.u32 %v4111, 4
      %v4113 = vmul.u32 %v4112, 18
      %v4114 = vsub.s32 %v4090, %v4113
      %v4115 = vsub.s32 0, %v4114
      %v4116 = vsel %vm4088, %v4115, %v4114
      %vm4117 = vcmp.lt.s32.totalorder %v3773, 0
      %v4118 = vsub.s32 0, %v3773
      %v4119 = vsel %vm4117, %v4118, %v3773
      %v4120 = vand.u32 %v4119, 65535
      %v4121 = vshrl.u32 %v4119, 16
      %v4123 = vmul.u32 %v4120, 14564
      %v4124 = vmul.u32 %v4120, 58254
      %v4125 = vmul.u32 %v4121, 14564
      %v4126 = vmul.u32 %v4121, 58254
      %v4127 = vshll.u32 %v4124, 16
      %v4128 = vshrl.u32 %v4124, 16
      %v4129 = vshll.u32 %v4125, 16
      %v4130 = vshrl.u32 %v4125, 16
      %vm4131 = vc.u32 %v4123, %v4127
      %v4132 = vsel %vm4131, 1, 0
      %v4133 = vadd.s32 %v4123, %v4127
      %v4134 = vadd.s32 %v4126, %v4132
      %vm4135 = vc.u32 %v4133, %v4129
      %v4136 = vsel %vm4135, 1, 0
      %v4137 = vadd.s32 %v4133, %v4129
      %v4138 = vadd.s32 %v4134, %v4136
      %v4139 = vadd.s32 %v4138, %v4128
      %v4140 = vadd.s32 %v4139, %v4130
      %v4141 = vshrl.u32 %v4140, 4
      %v4142 = vmul.u32 %v4141, 18
      %v4143 = vsub.s32 %v4119, %v4142
      %v4144 = vsub.s32 0, %v4143
      %v4145 = vsel %vm4117, %v4144, %v4143
      %vm4146 = vcmp.lt.s32.totalorder %v3774, 0
      %v4147 = vsub.s32 0, %v3774
      %v4148 = vsel %vm4146, %v4147, %v3774
      %v4149 = vand.u32 %v4148, 65535
      %v4150 = vshrl.u32 %v4148, 16
      %v4152 = vmul.u32 %v4149, 14564
      %v4153 = vmul.u32 %v4149, 58254
      %v4154 = vmul.u32 %v4150, 14564
      %v4155 = vmul.u32 %v4150, 58254
      %v4156 = vshll.u32 %v4153, 16
      %v4157 = vshrl.u32 %v4153, 16
      %v4158 = vshll.u32 %v4154, 16
      %v4159 = vshrl.u32 %v4154, 16
      %vm4160 = vc.u32 %v4152, %v4156
      %v4161 = vsel %vm4160, 1, 0
      %v4162 = vadd.s32 %v4152, %v4156
      %v4163 = vadd.s32 %v4155, %v4161
      %vm4164 = vc.u32 %v4162, %v4158
      %v4165 = vsel %vm4164, 1, 0
      %v4166 = vadd.s32 %v4162, %v4158
      %v4167 = vadd.s32 %v4163, %v4165
      %v4168 = vadd.s32 %v4167, %v4157
      %v4169 = vadd.s32 %v4168, %v4159
      %v4170 = vshrl.u32 %v4169, 4
      %v4171 = vmul.u32 %v4170, 18
      %v4172 = vsub.s32 %v4148, %v4171
      %v4173 = vsub.s32 0, %v4172
      %v4174 = vsel %vm4146, %v4173, %v4172
      %vm4175 = vcmp.lt.s32.totalorder %v3775, 0
      %v4176 = vsub.s32 0, %v3775
      %v4177 = vsel %vm4175, %v4176, %v3775
      %v4178 = vand.u32 %v4177, 65535
      %v4179 = vshrl.u32 %v4177, 16
      %v4181 = vmul.u32 %v4178, 14564
      %v4182 = vmul.u32 %v4178, 58254
      %v4183 = vmul.u32 %v4179, 14564
      %v4184 = vmul.u32 %v4179, 58254
      %v4185 = vshll.u32 %v4182, 16
      %v4186 = vshrl.u32 %v4182, 16
      %v4187 = vshll.u32 %v4183, 16
      %v4188 = vshrl.u32 %v4183, 16
      %vm4189 = vc.u32 %v4181, %v4185
      %v4190 = vsel %vm4189, 1, 0
      %v4191 = vadd.s32 %v4181, %v4185
      %v4192 = vadd.s32 %v4184, %v4190
      %vm4193 = vc.u32 %v4191, %v4187
      %v4194 = vsel %vm4193, 1, 0
      %v4195 = vadd.s32 %v4191, %v4187
      %v4196 = vadd.s32 %v4192, %v4194
      %v4197 = vadd.s32 %v4196, %v4186
      %v4198 = vadd.s32 %v4197, %v4188
      %v4199 = vshrl.u32 %v4198, 4
      %v4200 = vmul.u32 %v4199, 18
      %v4201 = vsub.s32 %v4177, %v4200
      %v4202 = vsub.s32 0, %v4201
      %v4203 = vsel %vm4175, %v4202, %v4201
      %vm4204 = vcmp.lt.s32.totalorder %v3776, 0
      %v4205 = vsub.s32 0, %v3776
      %v4206 = vsel %vm4204, %v4205, %v3776
      %v4207 = vand.u32 %v4206, 65535
      %v4208 = vshrl.u32 %v4206, 16
      %v4210 = vmul.u32 %v4207, 14564
      %v4211 = vmul.u32 %v4207, 58254
      %v4212 = vmul.u32 %v4208, 14564
      %v4213 = vmul.u32 %v4208, 58254
      %v4214 = vshll.u32 %v4211, 16
      %v4215 = vshrl.u32 %v4211, 16
      %v4216 = vshll.u32 %v4212, 16
      %v4217 = vshrl.u32 %v4212, 16
      %vm4218 = vc.u32 %v4210, %v4214
      %v4219 = vsel %vm4218, 1, 0
      %v4220 = vadd.s32 %v4210, %v4214
      %v4221 = vadd.s32 %v4213, %v4219
      %vm4222 = vc.u32 %v4220, %v4216
      %v4223 = vsel %vm4222, 1, 0
      %v4224 = vadd.s32 %v4220, %v4216
      %v4225 = vadd.s32 %v4221, %v4223
      %v4226 = vadd.s32 %v4225, %v4215
      %v4227 = vadd.s32 %v4226, %v4217
      %v4228 = vshrl.u32 %v4227, 4
      %v4229 = vmul.u32 %v4228, 18
      %v4230 = vsub.s32 %v4206, %v4229
      %v4231 = vsub.s32 0, %v4230
      %v4232 = vsel %vm4204, %v4231, %v4230
      %vm4233 = vcmp.lt.s32.totalorder %v3777, 0
      %v4234 = vsub.s32 0, %v3777
      %v4235 = vsel %vm4233, %v4234, %v3777
      %v4236 = vand.u32 %v4235, 65535
      %v4237 = vshrl.u32 %v4235, 16
      %v4239 = vmul.u32 %v4236, 14564
      %v4240 = vmul.u32 %v4236, 58254
      %v4241 = vmul.u32 %v4237, 14564
      %v4242 = vmul.u32 %v4237, 58254
      %v4243 = vshll.u32 %v4240, 16
      %v4244 = vshrl.u32 %v4240, 16
      %v4245 = vshll.u32 %v4241, 16
      %v4246 = vshrl.u32 %v4241, 16
      %vm4247 = vc.u32 %v4239, %v4243
      %v4248 = vsel %vm4247, 1, 0
      %v4249 = vadd.s32 %v4239, %v4243
      %v4250 = vadd.s32 %v4242, %v4248
      %vm4251 = vc.u32 %v4249, %v4245
      %v4252 = vsel %vm4251, 1, 0
      %v4253 = vadd.s32 %v4249, %v4245
      %v4254 = vadd.s32 %v4250, %v4252
      %v4255 = vadd.s32 %v4254, %v4244
      %v4256 = vadd.s32 %v4255, %v4246
      %v4257 = vshrl.u32 %v4256, 4
      %v4258 = vmul.u32 %v4257, 18
      %v4259 = vsub.s32 %v4235, %v4258
      %v4260 = vsub.s32 0, %v4259
      %v4261 = vsel %vm4233, %v4260, %v4259
      %vm4262 = vcmp.lt.s32.totalorder %v3778, 0
      %v4263 = vsub.s32 0, %v3778
      %v4264 = vsel %vm4262, %v4263, %v3778
      %v4265 = vand.u32 %v4264, 65535
      %v4266 = vshrl.u32 %v4264, 16
      %v4268 = vmul.u32 %v4265, 14564
      %v4269 = vmul.u32 %v4265, 58254
      %v4270 = vmul.u32 %v4266, 14564
      %v4271 = vmul.u32 %v4266, 58254
      %v4272 = vshll.u32 %v4269, 16
      %v4273 = vshrl.u32 %v4269, 16
      %v4274 = vshll.u32 %v4270, 16
      %v4275 = vshrl.u32 %v4270, 16
      %vm4276 = vc.u32 %v4268, %v4272
      %v4277 = vsel %vm4276, 1, 0
      %v4278 = vadd.s32 %v4268, %v4272
      %v4279 = vadd.s32 %v4271, %v4277
      %vm4280 = vc.u32 %v4278, %v4274
      %v4281 = vsel %vm4280, 1, 0
      %v4282 = vadd.s32 %v4278, %v4274
      %v4283 = vadd.s32 %v4279, %v4281
      %v4284 = vadd.s32 %v4283, %v4273
      %v4285 = vadd.s32 %v4284, %v4275
      %v4286 = vshrl.u32 %v4285, 4
      %v4287 = vmul.u32 %v4286, 18
      %v4288 = vsub.s32 %v4264, %v4287
      %v4289 = vsub.s32 0, %v4288
      %v4290 = vsel %vm4262, %v4289, %v4288
      %vm4291 = vcmp.lt.s32.totalorder %v3779, 0
      %v4292 = vsub.s32 0, %v3779
      %v4293 = vsel %vm4291, %v4292, %v3779
      %v4294 = vand.u32 %v4293, 65535
      %v4295 = vshrl.u32 %v4293, 16
      %v4297 = vmul.u32 %v4294, 14564
      %v4298 = vmul.u32 %v4294, 58254
      %v4299 = vmul.u32 %v4295, 14564
      %v4300 = vmul.u32 %v4295, 58254
      %v4301 = vshll.u32 %v4298, 16
      %v4302 = vshrl.u32 %v4298, 16
      %v4303 = vshll.u32 %v4299, 16
      %v4304 = vshrl.u32 %v4299, 16
      %vm4305 = vc.u32 %v4297, %v4301
      %v4306 = vsel %vm4305, 1, 0
      %v4307 = vadd.s32 %v4297, %v4301
      %v4308 = vadd.s32 %v4300, %v4306
      %vm4309 = vc.u32 %v4307, %v4303
      %v4310 = vsel %vm4309, 1, 0
      %v4311 = vadd.s32 %v4307, %v4303
      %v4312 = vadd.s32 %v4308, %v4310
      %v4313 = vadd.s32 %v4312, %v4302
      %v4314 = vadd.s32 %v4313, %v4304
      %v4315 = vshrl.u32 %v4314, 4
      %v4316 = vmul.u32 %v4315, 18
      %v4317 = vsub.s32 %v4293, %v4316
      %v4318 = vsub.s32 0, %v4317
      %v4319 = vsel %vm4291, %v4318, %v4317
      %vm4320 = vcmp.lt.s32.totalorder %v3780, 0
      %v4321 = vsub.s32 0, %v3780
      %v4322 = vsel %vm4320, %v4321, %v3780
      %v4323 = vand.u32 %v4322, 65535
      %v4324 = vshrl.u32 %v4322, 16
      %v4326 = vmul.u32 %v4323, 14564
      %v4327 = vmul.u32 %v4323, 58254
      %v4328 = vmul.u32 %v4324, 14564
      %v4329 = vmul.u32 %v4324, 58254
      %v4330 = vshll.u32 %v4327, 16
      %v4331 = vshrl.u32 %v4327, 16
      %v4332 = vshll.u32 %v4328, 16
      %v4333 = vshrl.u32 %v4328, 16
      %vm4334 = vc.u32 %v4326, %v4330
      %v4335 = vsel %vm4334, 1, 0
      %v4336 = vadd.s32 %v4326, %v4330
      %v4337 = vadd.s32 %v4329, %v4335
      %vm4338 = vc.u32 %v4336, %v4332
      %v4339 = vsel %vm4338, 1, 0
      %v4340 = vadd.s32 %v4336, %v4332
      %v4341 = vadd.s32 %v4337, %v4339
      %v4342 = vadd.s32 %v4341, %v4331
      %v4343 = vadd.s32 %v4342, %v4333
      %v4344 = vshrl.u32 %v4343, 4
      %v4345 = vmul.u32 %v4344, 18
      %v4346 = vsub.s32 %v4322, %v4345
      %v4347 = vsub.s32 0, %v4346
      %v4348 = vsel %vm4320, %v4347, %v4346
      %vm4349 = vcmp.lt.s32.totalorder %v3781, 0
      %v4350 = vsub.s32 0, %v3781
      %v4351 = vsel %vm4349, %v4350, %v3781
      %v4352 = vand.u32 %v4351, 65535
      %v4353 = vshrl.u32 %v4351, 16
      %v4355 = vmul.u32 %v4352, 14564
      %v4356 = vmul.u32 %v4352, 58254
      %v4357 = vmul.u32 %v4353, 14564
      %v4358 = vmul.u32 %v4353, 58254
      %v4359 = vshll.u32 %v4356, 16
      %v4360 = vshrl.u32 %v4356, 16
      %v4361 = vshll.u32 %v4357, 16
      %v4362 = vshrl.u32 %v4357, 16
      %vm4363 = vc.u32 %v4355, %v4359
      %v4364 = vsel %vm4363, 1, 0
      %v4365 = vadd.s32 %v4355, %v4359
      %v4366 = vadd.s32 %v4358, %v4364
      %vm4367 = vc.u32 %v4365, %v4361
      %v4368 = vsel %vm4367, 1, 0
      %v4369 = vadd.s32 %v4365, %v4361
      %v4370 = vadd.s32 %v4366, %v4368
      %v4371 = vadd.s32 %v4370, %v4360
      %v4372 = vadd.s32 %v4371, %v4362
      %v4373 = vshrl.u32 %v4372, 4
      %v4374 = vmul.u32 %v4373, 18
      %v4375 = vsub.s32 %v4351, %v4374
      %v4376 = vsub.s32 0, %v4375
      %v4377 = vsel %vm4349, %v4376, %v4375
      %vm4378 = vcmp.lt.s32.totalorder %v3782, 0
      %v4379 = vsub.s32 0, %v3782
      %v4380 = vsel %vm4378, %v4379, %v3782
      %v4381 = vand.u32 %v4380, 65535
      %v4382 = vshrl.u32 %v4380, 16
      %v4384 = vmul.u32 %v4381, 14564
      %v4385 = vmul.u32 %v4381, 58254
      %v4386 = vmul.u32 %v4382, 14564
      %v4387 = vmul.u32 %v4382, 58254
      %v4388 = vshll.u32 %v4385, 16
      %v4389 = vshrl.u32 %v4385, 16
      %v4390 = vshll.u32 %v4386, 16
      %v4391 = vshrl.u32 %v4386, 16
      %vm4392 = vc.u32 %v4384, %v4388
      %v4393 = vsel %vm4392, 1, 0
      %v4394 = vadd.s32 %v4384, %v4388
      %v4395 = vadd.s32 %v4387, %v4393
      %vm4396 = vc.u32 %v4394, %v4390
      %v4397 = vsel %vm4396, 1, 0
      %v4398 = vadd.s32 %v4394, %v4390
      %v4399 = vadd.s32 %v4395, %v4397
      %v4400 = vadd.s32 %v4399, %v4389
      %v4401 = vadd.s32 %v4400, %v4391
      %v4402 = vshrl.u32 %v4401, 4
      %v4403 = vmul.u32 %v4402, 18
      %v4404 = vsub.s32 %v4380, %v4403
      %v4405 = vsub.s32 0, %v4404
      %v4406 = vsel %vm4378, %v4405, %v4404
      %vm4407 = vcmp.lt.s32.totalorder %v3783, 0
      %v4408 = vsub.s32 0, %v3783
      %v4409 = vsel %vm4407, %v4408, %v3783
      %v4410 = vand.u32 %v4409, 65535
      %v4411 = vshrl.u32 %v4409, 16
      %v4413 = vmul.u32 %v4410, 14564
      %v4414 = vmul.u32 %v4410, 58254
      %v4415 = vmul.u32 %v4411, 14564
      %v4416 = vmul.u32 %v4411, 58254
      %v4417 = vshll.u32 %v4414, 16
      %v4418 = vshrl.u32 %v4414, 16
      %v4419 = vshll.u32 %v4415, 16
      %v4420 = vshrl.u32 %v4415, 16
      %vm4421 = vc.u32 %v4413, %v4417
      %v4422 = vsel %vm4421, 1, 0
      %v4423 = vadd.s32 %v4413, %v4417
      %v4424 = vadd.s32 %v4416, %v4422
      %vm4425 = vc.u32 %v4423, %v4419
      %v4426 = vsel %vm4425, 1, 0
      %v4427 = vadd.s32 %v4423, %v4419
      %v4428 = vadd.s32 %v4424, %v4426
      %v4429 = vadd.s32 %v4428, %v4418
      %v4430 = vadd.s32 %v4429, %v4420
      %v4431 = vshrl.u32 %v4430, 4
      %v4432 = vmul.u32 %v4431, 18
      %v4433 = vsub.s32 %v4409, %v4432
      %v4434 = vsub.s32 0, %v4433
      %v4435 = vsel %vm4407, %v4434, %v4433
      %vm4436 = vcmp.lt.s32.totalorder %v3784, 0
      %v4437 = vsub.s32 0, %v3784
      %v4438 = vsel %vm4436, %v4437, %v3784
      %v4439 = vand.u32 %v4438, 65535
      %v4440 = vshrl.u32 %v4438, 16
      %v4442 = vmul.u32 %v4439, 14564
      %v4443 = vmul.u32 %v4439, 58254
      %v4444 = vmul.u32 %v4440, 14564
      %v4445 = vmul.u32 %v4440, 58254
      %v4446 = vshll.u32 %v4443, 16
      %v4447 = vshrl.u32 %v4443, 16
      %v4448 = vshll.u32 %v4444, 16
      %v4449 = vshrl.u32 %v4444, 16
      %vm4450 = vc.u32 %v4442, %v4446
      %v4451 = vsel %vm4450, 1, 0
      %v4452 = vadd.s32 %v4442, %v4446
      %v4453 = vadd.s32 %v4445, %v4451
      %vm4454 = vc.u32 %v4452, %v4448
      %v4455 = vsel %vm4454, 1, 0
      %v4456 = vadd.s32 %v4452, %v4448
      %v4457 = vadd.s32 %v4453, %v4455
      %v4458 = vadd.s32 %v4457, %v4447
      %v4459 = vadd.s32 %v4458, %v4449
      %v4460 = vshrl.u32 %v4459, 4
      %v4461 = vmul.u32 %v4460, 18
      %v4462 = vsub.s32 %v4438, %v4461
      %v4463 = vsub.s32 0, %v4462
      %v4464 = vsel %vm4436, %v4463, %v4462
      %vm4465 = vcmp.lt.s32.totalorder %v3785, 0
      %v4466 = vsub.s32 0, %v3785
      %v4467 = vsel %vm4465, %v4466, %v3785
      %v4468 = vand.u32 %v4467, 65535
      %v4469 = vshrl.u32 %v4467, 16
      %v4471 = vmul.u32 %v4468, 14564
      %v4472 = vmul.u32 %v4468, 58254
      %v4473 = vmul.u32 %v4469, 14564
      %v4474 = vmul.u32 %v4469, 58254
      %v4475 = vshll.u32 %v4472, 16
      %v4476 = vshrl.u32 %v4472, 16
      %v4477 = vshll.u32 %v4473, 16
      %v4478 = vshrl.u32 %v4473, 16
      %vm4479 = vc.u32 %v4471, %v4475
      %v4480 = vsel %vm4479, 1, 0
      %v4481 = vadd.s32 %v4471, %v4475
      %v4482 = vadd.s32 %v4474, %v4480
      %vm4483 = vc.u32 %v4481, %v4477
      %v4484 = vsel %vm4483, 1, 0
      %v4485 = vadd.s32 %v4481, %v4477
      %v4486 = vadd.s32 %v4482, %v4484
      %v4487 = vadd.s32 %v4486, %v4476
      %v4488 = vadd.s32 %v4487, %v4478
      %v4489 = vshrl.u32 %v4488, 4
      %v4490 = vmul.u32 %v4489, 18
      %v4491 = vsub.s32 %v4467, %v4490
      %v4492 = vsub.s32 0, %v4491
      %v4493 = vsel %vm4465, %v4492, %v4491
      %vm4494 = vcmp.lt.s32.totalorder %v3786, 0
      %v4495 = vsub.s32 0, %v3786
      %v4496 = vsel %vm4494, %v4495, %v3786
      %v4497 = vand.u32 %v4496, 65535
      %v4498 = vshrl.u32 %v4496, 16
      %v4500 = vmul.u32 %v4497, 14564
      %v4501 = vmul.u32 %v4497, 58254
      %v4502 = vmul.u32 %v4498, 14564
      %v4503 = vmul.u32 %v4498, 58254
      %v4504 = vshll.u32 %v4501, 16
      %v4505 = vshrl.u32 %v4501, 16
      %v4506 = vshll.u32 %v4502, 16
      %v4507 = vshrl.u32 %v4502, 16
      %vm4508 = vc.u32 %v4500, %v4504
      %v4509 = vsel %vm4508, 1, 0
      %v4510 = vadd.s32 %v4500, %v4504
      %v4511 = vadd.s32 %v4503, %v4509
      %vm4512 = vc.u32 %v4510, %v4506
      %v4513 = vsel %vm4512, 1, 0
      %v4514 = vadd.s32 %v4510, %v4506
      %v4515 = vadd.s32 %v4511, %v4513
      %v4516 = vadd.s32 %v4515, %v4505
      %v4517 = vadd.s32 %v4516, %v4507
      %v4518 = vshrl.u32 %v4517, 4
      %v4519 = vmul.u32 %v4518, 18
      %v4520 = vsub.s32 %v4496, %v4519
      %v4521 = vsub.s32 0, %v4520
      %v4522 = vsel %vm4494, %v4521, %v4520
      %vm4523 = vcmp.lt.s32.totalorder %v3787, 0
      %v4524 = vsub.s32 0, %v3787
      %v4525 = vsel %vm4523, %v4524, %v3787
      %v4526 = vand.u32 %v4525, 65535
      %v4527 = vshrl.u32 %v4525, 16
      %v4529 = vmul.u32 %v4526, 14564
      %v4530 = vmul.u32 %v4526, 58254
      %v4531 = vmul.u32 %v4527, 14564
      %v4532 = vmul.u32 %v4527, 58254
      %v4533 = vshll.u32 %v4530, 16
      %v4534 = vshrl.u32 %v4530, 16
      %v4535 = vshll.u32 %v4531, 16
      %v4536 = vshrl.u32 %v4531, 16
      %vm4537 = vc.u32 %v4529, %v4533
      %v4538 = vsel %vm4537, 1, 0
      %v4539 = vadd.s32 %v4529, %v4533
      %v4540 = vadd.s32 %v4532, %v4538
      %vm4541 = vc.u32 %v4539, %v4535
      %v4542 = vsel %vm4541, 1, 0
      %v4543 = vadd.s32 %v4539, %v4535
      %v4544 = vadd.s32 %v4540, %v4542
      %v4545 = vadd.s32 %v4544, %v4534
      %v4546 = vadd.s32 %v4545, %v4536
      %v4547 = vshrl.u32 %v4546, 4
      %v4548 = vmul.u32 %v4547, 18
      %v4549 = vsub.s32 %v4525, %v4548
      %v4550 = vsub.s32 0, %v4549
      %v4551 = vsel %vm4523, %v4550, %v4549
      %vm4552 = vcmp.lt.s32.totalorder %v3788, 0
      %v4553 = vsub.s32 0, %v3788
      %v4554 = vsel %vm4552, %v4553, %v3788
      %v4555 = vand.u32 %v4554, 65535
      %v4556 = vshrl.u32 %v4554, 16
      %v4558 = vmul.u32 %v4555, 14564
      %v4559 = vmul.u32 %v4555, 58254
      %v4560 = vmul.u32 %v4556, 14564
      %v4561 = vmul.u32 %v4556, 58254
      %v4562 = vshll.u32 %v4559, 16
      %v4563 = vshrl.u32 %v4559, 16
      %v4564 = vshll.u32 %v4560, 16
      %v4565 = vshrl.u32 %v4560, 16
      %vm4566 = vc.u32 %v4558, %v4562
      %v4567 = vsel %vm4566, 1, 0
      %v4568 = vadd.s32 %v4558, %v4562
      %v4569 = vadd.s32 %v4561, %v4567
      %vm4570 = vc.u32 %v4568, %v4564
      %v4571 = vsel %vm4570, 1, 0
      %v4572 = vadd.s32 %v4568, %v4564
      %v4573 = vadd.s32 %v4569, %v4571
      %v4574 = vadd.s32 %v4573, %v4563
      %v4575 = vadd.s32 %v4574, %v4565
      %v4576 = vshrl.u32 %v4575, 4
      %v4577 = vmul.u32 %v4576, 18
      %v4578 = vsub.s32 %v4554, %v4577
      %v4579 = vsub.s32 0, %v4578
      %v4580 = vsel %vm4552, %v4579, %v4578
      %vm4581 = vcmp.lt.s32.totalorder %v3789, 0
      %v4582 = vsub.s32 0, %v3789
      %v4583 = vsel %vm4581, %v4582, %v3789
      %v4584 = vand.u32 %v4583, 65535
      %v4585 = vshrl.u32 %v4583, 16
      %v4587 = vmul.u32 %v4584, 14564
      %v4588 = vmul.u32 %v4584, 58254
      %v4589 = vmul.u32 %v4585, 14564
      %v4590 = vmul.u32 %v4585, 58254
      %v4591 = vshll.u32 %v4588, 16
      %v4592 = vshrl.u32 %v4588, 16
      %v4593 = vshll.u32 %v4589, 16
      %v4594 = vshrl.u32 %v4589, 16
      %vm4595 = vc.u32 %v4587, %v4591
      %v4596 = vsel %vm4595, 1, 0
      %v4597 = vadd.s32 %v4587, %v4591
      %v4598 = vadd.s32 %v4590, %v4596
      %vm4599 = vc.u32 %v4597, %v4593
      %v4600 = vsel %vm4599, 1, 0
      %v4601 = vadd.s32 %v4597, %v4593
      %v4602 = vadd.s32 %v4598, %v4600
      %v4603 = vadd.s32 %v4602, %v4592
      %v4604 = vadd.s32 %v4603, %v4594
      %v4605 = vshrl.u32 %v4604, 4
      %v4606 = vmul.u32 %v4605, 18
      %v4607 = vsub.s32 %v4583, %v4606
      %v4608 = vsub.s32 0, %v4607
      %v4609 = vsel %vm4581, %v4608, %v4607
      %vm4610 = vcmp.lt.s32.totalorder %v3790, 0
      %v4611 = vsub.s32 0, %v3790
      %v4612 = vsel %vm4610, %v4611, %v3790
      %v4613 = vand.u32 %v4612, 65535
      %v4614 = vshrl.u32 %v4612, 16
      %v4616 = vmul.u32 %v4613, 14564
      %v4617 = vmul.u32 %v4613, 58254
      %v4618 = vmul.u32 %v4614, 14564
      %v4619 = vmul.u32 %v4614, 58254
      %v4620 = vshll.u32 %v4617, 16
      %v4621 = vshrl.u32 %v4617, 16
      %v4622 = vshll.u32 %v4618, 16
      %v4623 = vshrl.u32 %v4618, 16
      %vm4624 = vc.u32 %v4616, %v4620
      %v4625 = vsel %vm4624, 1, 0
      %v4626 = vadd.s32 %v4616, %v4620
      %v4627 = vadd.s32 %v4619, %v4625
      %vm4628 = vc.u32 %v4626, %v4622
      %v4629 = vsel %vm4628, 1, 0
      %v4630 = vadd.s32 %v4626, %v4622
      %v4631 = vadd.s32 %v4627, %v4629
      %v4632 = vadd.s32 %v4631, %v4621
      %v4633 = vadd.s32 %v4632, %v4623
      %v4634 = vshrl.u32 %v4633, 4
      %v4635 = vmul.u32 %v4634, 18
      %v4636 = vsub.s32 %v4612, %v4635
      %v4637 = vsub.s32 0, %v4636
      %v4638 = vsel %vm4610, %v4637, %v4636
      %vm4639 = vcmp.lt.s32.totalorder %v3791, 0
      %v4640 = vsub.s32 0, %v3791
      %v4641 = vsel %vm4639, %v4640, %v3791
      %v4642 = vand.u32 %v4641, 65535
      %v4643 = vshrl.u32 %v4641, 16
      %v4645 = vmul.u32 %v4642, 14564
      %v4646 = vmul.u32 %v4642, 58254
      %v4647 = vmul.u32 %v4643, 14564
      %v4648 = vmul.u32 %v4643, 58254
      %v4649 = vshll.u32 %v4646, 16
      %v4650 = vshrl.u32 %v4646, 16
      %v4651 = vshll.u32 %v4647, 16
      %v4652 = vshrl.u32 %v4647, 16
      %vm4653 = vc.u32 %v4645, %v4649
      %v4654 = vsel %vm4653, 1, 0
      %v4655 = vadd.s32 %v4645, %v4649
      %v4656 = vadd.s32 %v4648, %v4654
      %vm4657 = vc.u32 %v4655, %v4651
      %v4658 = vsel %vm4657, 1, 0
      %v4659 = vadd.s32 %v4655, %v4651
      %v4660 = vadd.s32 %v4656, %v4658
      %v4661 = vadd.s32 %v4660, %v4650
      %v4662 = vadd.s32 %v4661, %v4652
      %v4663 = vshrl.u32 %v4662, 4
      %v4664 = vmul.u32 %v4663, 18
      %v4665 = vsub.s32 %v4641, %v4664
      %v4666 = vsub.s32 0, %v4665
      %v4667 = vsel %vm4639, %v4666, %v4665
      %vm4668 = vcmp.lt.s32.totalorder %v3792, 0
      %v4669 = vsub.s32 0, %v3792
      %v4670 = vsel %vm4668, %v4669, %v3792
      %v4671 = vand.u32 %v4670, 65535
      %v4672 = vshrl.u32 %v4670, 16
      %v4674 = vmul.u32 %v4671, 14564
      %v4675 = vmul.u32 %v4671, 58254
      %v4676 = vmul.u32 %v4672, 14564
      %v4677 = vmul.u32 %v4672, 58254
      %v4678 = vshll.u32 %v4675, 16
      %v4679 = vshrl.u32 %v4675, 16
      %v4680 = vshll.u32 %v4676, 16
      %v4681 = vshrl.u32 %v4676, 16
      %vm4682 = vc.u32 %v4674, %v4678
      %v4683 = vsel %vm4682, 1, 0
      %v4684 = vadd.s32 %v4674, %v4678
      %v4685 = vadd.s32 %v4677, %v4683
      %vm4686 = vc.u32 %v4684, %v4680
      %v4687 = vsel %vm4686, 1, 0
      %v4688 = vadd.s32 %v4684, %v4680
      %v4689 = vadd.s32 %v4685, %v4687
      %v4690 = vadd.s32 %v4689, %v4679
      %v4691 = vadd.s32 %v4690, %v4681
      %v4692 = vshrl.u32 %v4691, 4
      %v4693 = vmul.u32 %v4692, 18
      %v4694 = vsub.s32 %v4670, %v4693
      %v4695 = vsub.s32 0, %v4694
      %v4696 = vsel %vm4668, %v4695, %v4694
      %vm4697 = vcmp.lt.s32.totalorder %v3793, 0
      %v4698 = vsub.s32 0, %v3793
      %v4699 = vsel %vm4697, %v4698, %v3793
      %v4700 = vand.u32 %v4699, 65535
      %v4701 = vshrl.u32 %v4699, 16
      %v4703 = vmul.u32 %v4700, 14564
      %v4704 = vmul.u32 %v4700, 58254
      %v4705 = vmul.u32 %v4701, 14564
      %v4706 = vmul.u32 %v4701, 58254
      %v4707 = vshll.u32 %v4704, 16
      %v4708 = vshrl.u32 %v4704, 16
      %v4709 = vshll.u32 %v4705, 16
      %v4710 = vshrl.u32 %v4705, 16
      %vm4711 = vc.u32 %v4703, %v4707
      %v4712 = vsel %vm4711, 1, 0
      %v4713 = vadd.s32 %v4703, %v4707
      %v4714 = vadd.s32 %v4706, %v4712
      %vm4715 = vc.u32 %v4713, %v4709
      %v4716 = vsel %vm4715, 1, 0
      %v4717 = vadd.s32 %v4713, %v4709
      %v4718 = vadd.s32 %v4714, %v4716
      %v4719 = vadd.s32 %v4718, %v4708
      %v4720 = vadd.s32 %v4719, %v4710
      %v4721 = vshrl.u32 %v4720, 4
      %v4722 = vmul.u32 %v4721, 18
      %v4723 = vsub.s32 %v4699, %v4722
      %v4724 = vsub.s32 0, %v4723
      %v4725 = vsel %vm4697, %v4724, %v4723
      %vm4726 = vcmp.lt.s32.totalorder %v3794, 0
      %v4727 = vsub.s32 0, %v3794
      %v4728 = vsel %vm4726, %v4727, %v3794
      %v4729 = vand.u32 %v4728, 65535
      %v4730 = vshrl.u32 %v4728, 16
      %v4732 = vmul.u32 %v4729, 14564
      %v4733 = vmul.u32 %v4729, 58254
      %v4734 = vmul.u32 %v4730, 14564
      %v4735 = vmul.u32 %v4730, 58254
      %v4736 = vshll.u32 %v4733, 16
      %v4737 = vshrl.u32 %v4733, 16
      %v4738 = vshll.u32 %v4734, 16
      %v4739 = vshrl.u32 %v4734, 16
      %vm4740 = vc.u32 %v4732, %v4736
      %v4741 = vsel %vm4740, 1, 0
      %v4742 = vadd.s32 %v4732, %v4736
      %v4743 = vadd.s32 %v4735, %v4741
      %vm4744 = vc.u32 %v4742, %v4738
      %v4745 = vsel %vm4744, 1, 0
      %v4746 = vadd.s32 %v4742, %v4738
      %v4747 = vadd.s32 %v4743, %v4745
      %v4748 = vadd.s32 %v4747, %v4737
      %v4749 = vadd.s32 %v4748, %v4739
      %v4750 = vshrl.u32 %v4749, 4
      %v4751 = vmul.u32 %v4750, 18
      %v4752 = vsub.s32 %v4728, %v4751
      %v4753 = vsub.s32 0, %v4752
      %v4754 = vsel %vm4726, %v4753, %v4752
      %vm4755 = vcmp.lt.s32.totalorder %v3795, 0
      %v4756 = vsub.s32 0, %v3795
      %v4757 = vsel %vm4755, %v4756, %v3795
      %v4758 = vand.u32 %v4757, 65535
      %v4759 = vshrl.u32 %v4757, 16
      %v4761 = vmul.u32 %v4758, 14564
      %v4762 = vmul.u32 %v4758, 58254
      %v4763 = vmul.u32 %v4759, 14564
      %v4764 = vmul.u32 %v4759, 58254
      %v4765 = vshll.u32 %v4762, 16
      %v4766 = vshrl.u32 %v4762, 16
      %v4767 = vshll.u32 %v4763, 16
      %v4768 = vshrl.u32 %v4763, 16
      %vm4769 = vc.u32 %v4761, %v4765
      %v4770 = vsel %vm4769, 1, 0
      %v4771 = vadd.s32 %v4761, %v4765
      %v4772 = vadd.s32 %v4764, %v4770
      %vm4773 = vc.u32 %v4771, %v4767
      %v4774 = vsel %vm4773, 1, 0
      %v4775 = vadd.s32 %v4771, %v4767
      %v4776 = vadd.s32 %v4772, %v4774
      %v4777 = vadd.s32 %v4776, %v4766
      %v4778 = vadd.s32 %v4777, %v4768
      %v4779 = vshrl.u32 %v4778, 4
      %v4780 = vmul.u32 %v4779, 18
      %v4781 = vsub.s32 %v4757, %v4780
      %v4782 = vsub.s32 0, %v4781
      %v4783 = vsel %vm4755, %v4782, %v4781
      %vm4784 = vcmp.lt.s32.totalorder %v3796, 0
      %v4785 = vsub.s32 0, %v3796
      %v4786 = vsel %vm4784, %v4785, %v3796
      %v4787 = vand.u32 %v4786, 65535
      %v4788 = vshrl.u32 %v4786, 16
      %v4790 = vmul.u32 %v4787, 14564
      %v4791 = vmul.u32 %v4787, 58254
      %v4792 = vmul.u32 %v4788, 14564
      %v4793 = vmul.u32 %v4788, 58254
      %v4794 = vshll.u32 %v4791, 16
      %v4795 = vshrl.u32 %v4791, 16
      %v4796 = vshll.u32 %v4792, 16
      %v4797 = vshrl.u32 %v4792, 16
      %vm4798 = vc.u32 %v4790, %v4794
      %v4799 = vsel %vm4798, 1, 0
      %v4800 = vadd.s32 %v4790, %v4794
      %v4801 = vadd.s32 %v4793, %v4799
      %vm4802 = vc.u32 %v4800, %v4796
      %v4803 = vsel %vm4802, 1, 0
      %v4804 = vadd.s32 %v4800, %v4796
      %v4805 = vadd.s32 %v4801, %v4803
      %v4806 = vadd.s32 %v4805, %v4795
      %v4807 = vadd.s32 %v4806, %v4797
      %v4808 = vshrl.u32 %v4807, 4
      %v4809 = vmul.u32 %v4808, 18
      %v4810 = vsub.s32 %v4786, %v4809
      %v4811 = vsub.s32 0, %v4810
      %v4812 = vsel %vm4784, %v4811, %v4810
      %vm4813 = vcmp.lt.s32.totalorder %v3797, 0
      %v4814 = vsub.s32 0, %v3797
      %v4815 = vsel %vm4813, %v4814, %v3797
      %v4816 = vand.u32 %v4815, 65535
      %v4817 = vshrl.u32 %v4815, 16
      %v4819 = vmul.u32 %v4816, 14564
      %v4820 = vmul.u32 %v4816, 58254
      %v4821 = vmul.u32 %v4817, 14564
      %v4822 = vmul.u32 %v4817, 58254
      %v4823 = vshll.u32 %v4820, 16
      %v4824 = vshrl.u32 %v4820, 16
      %v4825 = vshll.u32 %v4821, 16
      %v4826 = vshrl.u32 %v4821, 16
      %vm4827 = vc.u32 %v4819, %v4823
      %v4828 = vsel %vm4827, 1, 0
      %v4829 = vadd.s32 %v4819, %v4823
      %v4830 = vadd.s32 %v4822, %v4828
      %vm4831 = vc.u32 %v4829, %v4825
      %v4832 = vsel %vm4831, 1, 0
      %v4833 = vadd.s32 %v4829, %v4825
      %v4834 = vadd.s32 %v4830, %v4832
      %v4835 = vadd.s32 %v4834, %v4824
      %v4836 = vadd.s32 %v4835, %v4826
      %v4837 = vshrl.u32 %v4836, 4
      %v4838 = vmul.u32 %v4837, 18
      %v4839 = vsub.s32 %v4815, %v4838
      %v4840 = vsub.s32 0, %v4839
      %v4841 = vsel %vm4813, %v4840, %v4839
      %vm4842 = vcmp.ne.s32.totalorder %v3826, 0
      %vm4843 = vcmp.ne.s32.totalorder %v3855, 0
      %vm4844 = vcmp.ne.s32.totalorder %v3884, 0
      %vm4845 = vcmp.ne.s32.totalorder %v3913, 0
      %vm4846 = vcmp.ne.s32.totalorder %v3942, 0
      %vm4847 = vcmp.ne.s32.totalorder %v3971, 0
      %vm4848 = vcmp.ne.s32.totalorder %v4000, 0
      %vm4849 = vcmp.ne.s32.totalorder %v4029, 0
      %vm4850 = vcmp.ne.s32.totalorder %v4058, 0
      %vm4851 = vcmp.ne.s32.totalorder %v4087, 0
      %vm4852 = vcmp.ne.s32.totalorder %v4116, 0
      %vm4853 = vcmp.ne.s32.totalorder %v4145, 0
      %vm4854 = vcmp.ne.s32.totalorder %v4174, 0
      %vm4855 = vcmp.ne.s32.totalorder %v4203, 0
      %vm4856 = vcmp.ne.s32.totalorder %v4232, 0
      %vm4857 = vcmp.ne.s32.totalorder %v4261, 0
      %vm4858 = vcmp.ne.s32.totalorder %v4290, 0
      %vm4859 = vcmp.ne.s32.totalorder %v4319, 0
      %vm4860 = vcmp.ne.s32.totalorder %v4348, 0
      %vm4861 = vcmp.ne.s32.totalorder %v4377, 0
      %vm4862 = vcmp.ne.s32.totalorder %v4406, 0
      %vm4863 = vcmp.ne.s32.totalorder %v4435, 0
      %vm4864 = vcmp.ne.s32.totalorder %v4464, 0
      %vm4865 = vcmp.ne.s32.totalorder %v4493, 0
      %vm4866 = vcmp.ne.s32.totalorder %v4522, 0
      %vm4867 = vcmp.ne.s32.totalorder %v4551, 0
      %vm4868 = vcmp.ne.s32.totalorder %v4580, 0
      %vm4869 = vcmp.ne.s32.totalorder %v4609, 0
      %vm4870 = vcmp.ne.s32.totalorder %v4638, 0
      %vm4871 = vcmp.ne.s32.totalorder %v4667, 0
      %vm4872 = vcmp.ne.s32.totalorder %v4696, 0
      %vm4873 = vcmp.ne.s32.totalorder %v4725, 0
      %vm4874 = vcmp.ne.s32.totalorder %v4754, 0
      %vm4875 = vcmp.ne.s32.totalorder %v4783, 0
      %vm4876 = vcmp.ne.s32.totalorder %v4812, 0
      %vm4877 = vcmp.ne.s32.totalorder %v4841, 0
      %vm4878 = vcmp.lt.s32.totalorder %v3826, 0
      %vm4879 = vcmp.lt.s32.totalorder %v3855, 0
      %vm4880 = vcmp.lt.s32.totalorder %v3884, 0
      %vm4881 = vcmp.lt.s32.totalorder %v3913, 0
      %vm4882 = vcmp.lt.s32.totalorder %v3942, 0
      %vm4883 = vcmp.lt.s32.totalorder %v3971, 0
      %vm4884 = vcmp.lt.s32.totalorder %v4000, 0
      %vm4885 = vcmp.lt.s32.totalorder %v4029, 0
      %vm4886 = vcmp.lt.s32.totalorder %v4058, 0
      %vm4887 = vcmp.lt.s32.totalorder %v4087, 0
      %vm4888 = vcmp.lt.s32.totalorder %v4116, 0
      %vm4889 = vcmp.lt.s32.totalorder %v4145, 0
      %vm4890 = vcmp.lt.s32.totalorder %v4174, 0
      %vm4891 = vcmp.lt.s32.totalorder %v4203, 0
      %vm4892 = vcmp.lt.s32.totalorder %v4232, 0
      %vm4893 = vcmp.lt.s32.totalorder %v4261, 0
      %vm4894 = vcmp.lt.s32.totalorder %v4290, 0
      %vm4895 = vcmp.lt.s32.totalorder %v4319, 0
      %vm4896 = vcmp.lt.s32.totalorder %v4348, 0
      %vm4897 = vcmp.lt.s32.totalorder %v4377, 0
      %vm4898 = vcmp.lt.s32.totalorder %v4406, 0
      %vm4899 = vcmp.lt.s32.totalorder %v4435, 0
      %vm4900 = vcmp.lt.s32.totalorder %v4464, 0
      %vm4901 = vcmp.lt.s32.totalorder %v4493, 0
      %vm4902 = vcmp.lt.s32.totalorder %v4522, 0
      %vm4903 = vcmp.lt.s32.totalorder %v4551, 0
      %vm4904 = vcmp.lt.s32.totalorder %v4580, 0
      %vm4905 = vcmp.lt.s32.totalorder %v4609, 0
      %vm4906 = vcmp.lt.s32.totalorder %v4638, 0
      %vm4907 = vcmp.lt.s32.totalorder %v4667, 0
      %vm4908 = vcmp.lt.s32.totalorder %v4696, 0
      %vm4909 = vcmp.lt.s32.totalorder %v4725, 0
      %vm4910 = vcmp.lt.s32.totalorder %v4754, 0
      %vm4911 = vcmp.lt.s32.totalorder %v4783, 0
      %vm4912 = vcmp.lt.s32.totalorder %v4812, 0
      %vm4913 = vcmp.lt.s32.totalorder %v4841, 0
      %vm4914 = vmand %vm4878, %vm4842
      %vm4915 = vmand %vm4879, %vm4843
      %vm4916 = vmand %vm4880, %vm4844
      %vm4917 = vmand %vm4881, %vm4845
      %vm4918 = vmand %vm4882, %vm4846
      %vm4919 = vmand %vm4883, %vm4847
      %vm4920 = vmand %vm4884, %vm4848
      %vm4921 = vmand %vm4885, %vm4849
      %vm4922 = vmand %vm4886, %vm4850
      %vm4923 = vmand %vm4887, %vm4851
      %vm4924 = vmand %vm4888, %vm4852
      %vm4925 = vmand %vm4889, %vm4853
      %vm4926 = vmand %vm4890, %vm4854
      %vm4927 = vmand %vm4891, %vm4855
      %vm4928 = vmand %vm4892, %vm4856
      %vm4929 = vmand %vm4893, %vm4857
      %vm4930 = vmand %vm4894, %vm4858
      %vm4931 = vmand %vm4895, %vm4859
      %vm4932 = vmand %vm4896, %vm4860
      %vm4933 = vmand %vm4897, %vm4861
      %vm4934 = vmand %vm4898, %vm4862
      %vm4935 = vmand %vm4899, %vm4863
      %vm4936 = vmand %vm4900, %vm4864
      %vm4937 = vmand %vm4901, %vm4865
      %vm4938 = vmand %vm4902, %vm4866
      %vm4939 = vmand %vm4903, %vm4867
      %vm4940 = vmand %vm4904, %vm4868
      %vm4941 = vmand %vm4905, %vm4869
      %vm4942 = vmand %vm4906, %vm4870
      %vm4943 = vmand %vm4907, %vm4871
      %vm4944 = vmand %vm4908, %vm4872
      %vm4945 = vmand %vm4909, %vm4873
      %vm4946 = vmand %vm4910, %vm4874
      %vm4947 = vmand %vm4911, %vm4875
      %vm4948 = vmand %vm4912, %vm4876
      %vm4949 = vmand %vm4913, %vm4877
      %v4950 = vadd.s32 %v3826, 18
      %v4951 = vadd.s32 %v3855, 18
      %v4952 = vadd.s32 %v3884, 18
      %v4953 = vadd.s32 %v3913, 18
      %v4954 = vadd.s32 %v3942, 18
      %v4955 = vadd.s32 %v3971, 18
      %v4956 = vadd.s32 %v4000, 18
      %v4957 = vadd.s32 %v4029, 18
      %v4958 = vadd.s32 %v4058, 18
      %v4959 = vadd.s32 %v4087, 18
      %v4960 = vadd.s32 %v4116, 18
      %v4961 = vadd.s32 %v4145, 18
      %v4962 = vadd.s32 %v4174, 18
      %v4963 = vadd.s32 %v4203, 18
      %v4964 = vadd.s32 %v4232, 18
      %v4965 = vadd.s32 %v4261, 18
      %v4966 = vadd.s32 %v4290, 18
      %v4967 = vadd.s32 %v4319, 18
      %v4968 = vadd.s32 %v4348, 18
      %v4969 = vadd.s32 %v4377, 18
      %v4970 = vadd.s32 %v4406, 18
      %v4971 = vadd.s32 %v4435, 18
      %v4972 = vadd.s32 %v4464, 18
      %v4973 = vadd.s32 %v4493, 18
      %v4974 = vadd.s32 %v4522, 18
      %v4975 = vadd.s32 %v4551, 18
      %v4976 = vadd.s32 %v4580, 18
      %v4977 = vadd.s32 %v4609, 18
      %v4978 = vadd.s32 %v4638, 18
      %v4979 = vadd.s32 %v4667, 18
      %v4980 = vadd.s32 %v4696, 18
      %v4981 = vadd.s32 %v4725, 18
      %v4982 = vadd.s32 %v4754, 18
      %v4983 = vadd.s32 %v4783, 18
      %v4984 = vadd.s32 %v4812, 18
      %v4985 = vadd.s32 %v4841, 18
      %v4986 = vsel %vm4914, %v4950, %v3826
      %v4987 = vsel %vm4915, %v4951, %v3855
      %v4988 = vsel %vm4916, %v4952, %v3884
      %v4989 = vsel %vm4917, %v4953, %v3913
      %v4990 = vsel %vm4918, %v4954, %v3942
      %v4991 = vsel %vm4919, %v4955, %v3971
      %v4992 = vsel %vm4920, %v4956, %v4000
      %v4993 = vsel %vm4921, %v4957, %v4029
      %v4994 = vsel %vm4922, %v4958, %v4058
      %v4995 = vsel %vm4923, %v4959, %v4087
      %v4996 = vsel %vm4924, %v4960, %v4116
      %v4997 = vsel %vm4925, %v4961, %v4145
      %v4998 = vsel %vm4926, %v4962, %v4174
      %v4999 = vsel %vm4927, %v4963, %v4203
      %v5000 = vsel %vm4928, %v4964, %v4232
      %v5001 = vsel %vm4929, %v4965, %v4261
      %v5002 = vsel %vm4930, %v4966, %v4290
      %v5003 = vsel %vm4931, %v4967, %v4319
      %v5004 = vsel %vm4932, %v4968, %v4348
      %v5005 = vsel %vm4933, %v4969, %v4377
      %v5006 = vsel %vm4934, %v4970, %v4406
      %v5007 = vsel %vm4935, %v4971, %v4435
      %v5008 = vsel %vm4936, %v4972, %v4464
      %v5009 = vsel %vm4937, %v4973, %v4493
      %v5010 = vsel %vm4938, %v4974, %v4522
      %v5011 = vsel %vm4939, %v4975, %v4551
      %v5012 = vsel %vm4940, %v4976, %v4580
      %v5013 = vsel %vm4941, %v4977, %v4609
      %v5014 = vsel %vm4942, %v4978, %v4638
      %v5015 = vsel %vm4943, %v4979, %v4667
      %v5016 = vsel %vm4944, %v4980, %v4696
      %v5017 = vsel %vm4945, %v4981, %v4725
      %v5018 = vsel %vm4946, %v4982, %v4754
      %v5019 = vsel %vm4947, %v4983, %v4783
      %v5020 = vsel %vm4948, %v4984, %v4812
      %v5021 = vsel %vm4949, %v4985, %v4841
      %vm5022 = vcmp.lt.s32.totalorder %v4986, 16
      %vm5023 = vcmp.lt.s32.totalorder %v4987, 16
      %vm5024 = vcmp.lt.s32.totalorder %v4988, 16
      %vm5025 = vcmp.lt.s32.totalorder %v4989, 16
      %vm5026 = vcmp.lt.s32.totalorder %v4990, 16
      %vm5027 = vcmp.lt.s32.totalorder %v4991, 16
      %vm5028 = vcmp.lt.s32.totalorder %v4992, 16
      %vm5029 = vcmp.lt.s32.totalorder %v4993, 16
      %vm5030 = vcmp.lt.s32.totalorder %v4994, 16
      %vm5031 = vcmp.lt.s32.totalorder %v4995, 16
      %vm5032 = vcmp.lt.s32.totalorder %v4996, 16
      %vm5033 = vcmp.lt.s32.totalorder %v4997, 16
      %vm5034 = vcmp.lt.s32.totalorder %v4998, 16
      %vm5035 = vcmp.lt.s32.totalorder %v4999, 16
      %vm5036 = vcmp.lt.s32.totalorder %v5000, 16
      %vm5037 = vcmp.lt.s32.totalorder %v5001, 16
      %vm5038 = vcmp.lt.s32.totalorder %v5002, 16
      %vm5039 = vcmp.lt.s32.totalorder %v5003, 16
      %vm5040 = vcmp.lt.s32.totalorder %v5004, 16
      %vm5041 = vcmp.lt.s32.totalorder %v5005, 16
      %vm5042 = vcmp.lt.s32.totalorder %v5006, 16
      %vm5043 = vcmp.lt.s32.totalorder %v5007, 16
      %vm5044 = vcmp.lt.s32.totalorder %v5008, 16
      %vm5045 = vcmp.lt.s32.totalorder %v5009, 16
      %vm5046 = vcmp.lt.s32.totalorder %v5010, 16
      %vm5047 = vcmp.lt.s32.totalorder %v5011, 16
      %vm5048 = vcmp.lt.s32.totalorder %v5012, 16
      %vm5049 = vcmp.lt.s32.totalorder %v5013, 16
      %vm5050 = vcmp.lt.s32.totalorder %v5014, 16
      %vm5051 = vcmp.lt.s32.totalorder %v5015, 16
      %vm5052 = vcmp.lt.s32.totalorder %v5016, 16
      %vm5053 = vcmp.lt.s32.totalorder %v5017, 16
      %vm5054 = vcmp.lt.s32.totalorder %v5018, 16
      %vm5055 = vcmp.lt.s32.totalorder %v5019, 16
      %vm5056 = vcmp.lt.s32.totalorder %v5020, 16
      %vm5057 = vcmp.lt.s32.totalorder %v5021, 16
      %v5058 = vsel %vm5022, 1, 0
      %v5059 = vsel %vm5023, 1, 0
      %v5060 = vsel %vm5024, 1, 0
      %v5061 = vsel %vm5025, 1, 0
      %v5062 = vsel %vm5026, 1, 0
      %v5063 = vsel %vm5027, 1, 0
      %v5064 = vsel %vm5028, 1, 0
      %v5065 = vsel %vm5029, 1, 0
      %v5066 = vsel %vm5030, 1, 0
      %v5067 = vsel %vm5031, 1, 0
      %v5068 = vsel %vm5032, 1, 0
      %v5069 = vsel %vm5033, 1, 0
      %v5070 = vsel %vm5034, 1, 0
      %v5071 = vsel %vm5035, 1, 0
      %v5072 = vsel %vm5036, 1, 0
      %v5073 = vsel %vm5037, 1, 0
      %v5074 = vsel %vm5038, 1, 0
      %v5075 = vsel %vm5039, 1, 0
      %v5076 = vsel %vm5040, 1, 0
      %v5077 = vsel %vm5041, 1, 0
      %v5078 = vsel %vm5042, 1, 0
      %v5079 = vsel %vm5043, 1, 0
      %v5080 = vsel %vm5044, 1, 0
      %v5081 = vsel %vm5045, 1, 0
      %v5082 = vsel %vm5046, 1, 0
      %v5083 = vsel %vm5047, 1, 0
      %v5084 = vsel %vm5048, 1, 0
      %v5085 = vsel %vm5049, 1, 0
      %v5086 = vsel %vm5050, 1, 0
      %v5087 = vsel %vm5051, 1, 0
      %v5088 = vsel %vm5052, 1, 0
      %v5089 = vsel %vm5053, 1, 0
      %v5090 = vsel %vm5054, 1, 0
      %v5091 = vsel %vm5055, 1, 0
      %v5092 = vsel %vm5056, 1, 0
      %v5093 = vsel %vm5057, 1, 0
      %vm5094 = vcmp.eq.s32.totalorder %v5058, 1
      %vm5095 = vcmp.eq.s32.totalorder %v5059, 1
      %vm5096 = vcmp.eq.s32.totalorder %v5060, 1
      %vm5097 = vcmp.eq.s32.totalorder %v5061, 1
      %vm5098 = vcmp.eq.s32.totalorder %v5062, 1
      %vm5099 = vcmp.eq.s32.totalorder %v5063, 1
      %vm5100 = vcmp.eq.s32.totalorder %v5064, 1
      %vm5101 = vcmp.eq.s32.totalorder %v5065, 1
      %vm5102 = vcmp.eq.s32.totalorder %v5066, 1
      %vm5103 = vcmp.eq.s32.totalorder %v5067, 1
      %vm5104 = vcmp.eq.s32.totalorder %v5068, 1
      %vm5105 = vcmp.eq.s32.totalorder %v5069, 1
      %vm5106 = vcmp.eq.s32.totalorder %v5070, 1
      %vm5107 = vcmp.eq.s32.totalorder %v5071, 1
      %vm5108 = vcmp.eq.s32.totalorder %v5072, 1
      %vm5109 = vcmp.eq.s32.totalorder %v5073, 1
      %vm5110 = vcmp.eq.s32.totalorder %v5074, 1
      %vm5111 = vcmp.eq.s32.totalorder %v5075, 1
      %vm5112 = vcmp.eq.s32.totalorder %v5076, 1
      %vm5113 = vcmp.eq.s32.totalorder %v5077, 1
      %vm5114 = vcmp.eq.s32.totalorder %v5078, 1
      %vm5115 = vcmp.eq.s32.totalorder %v5079, 1
      %vm5116 = vcmp.eq.s32.totalorder %v5080, 1
      %vm5117 = vcmp.eq.s32.totalorder %v5081, 1
      %vm5118 = vcmp.eq.s32.totalorder %v5082, 1
      %vm5119 = vcmp.eq.s32.totalorder %v5083, 1
      %vm5120 = vcmp.eq.s32.totalorder %v5084, 1
      %vm5121 = vcmp.eq.s32.totalorder %v5085, 1
      %vm5122 = vcmp.eq.s32.totalorder %v5086, 1
      %vm5123 = vcmp.eq.s32.totalorder %v5087, 1
      %vm5124 = vcmp.eq.s32.totalorder %v5088, 1
      %vm5125 = vcmp.eq.s32.totalorder %v5089, 1
      %vm5126 = vcmp.eq.s32.totalorder %v5090, 1
      %vm5127 = vcmp.eq.s32.totalorder %v5091, 1
      %vm5128 = vcmp.eq.s32.totalorder %v5092, 1
      %vm5129 = vcmp.eq.s32.totalorder %v5093, 1
      %v5130 = vsel %vm5094, %v3238, 0.0
      %v5131 = vsel %vm5095, %v3239, 0.0
      %v5132 = vsel %vm5096, %v3240, 0.0
      %v5133 = vsel %vm5097, %v3241, 0.0
      %v5134 = vsel %vm5098, %v3242, 0.0
      %v5135 = vsel %vm5099, %v3243, 0.0
      %v5136 = vsel %vm5100, %v3244, 0.0
      %v5137 = vsel %vm5101, %v3245, 0.0
      %v5138 = vsel %vm5102, %v3246, 0.0
      %v5139 = vsel %vm5103, %v3247, 0.0
      %v5140 = vsel %vm5104, %v3248, 0.0
      %v5141 = vsel %vm5105, %v3249, 0.0
      %v5142 = vsel %vm5106, %v3250, 0.0
      %v5143 = vsel %vm5107, %v3251, 0.0
      %v5144 = vsel %vm5108, %v3252, 0.0
      %v5145 = vsel %vm5109, %v3253, 0.0
      %v5146 = vsel %vm5110, %v3254, 0.0
      %v5147 = vsel %vm5111, %v3255, 0.0
      %v5148 = vsel %vm5112, %v3256, 0.0
      %v5149 = vsel %vm5113, %v3257, 0.0
      %v5150 = vsel %vm5114, %v3258, 0.0
      %v5151 = vsel %vm5115, %v3259, 0.0
      %v5152 = vsel %vm5116, %v3260, 0.0
      %v5153 = vsel %vm5117, %v3261, 0.0
      %v5154 = vsel %vm5118, %v3262, 0.0
      %v5155 = vsel %vm5119, %v3263, 0.0
      %v5156 = vsel %vm5120, %v3264, 0.0
      %v5157 = vsel %vm5121, %v3265, 0.0
      %v5158 = vsel %vm5122, %v3266, 0.0
      %v5159 = vsel %vm5123, %v3267, 0.0
      %v5160 = vsel %vm5124, %v3268, 0.0
      %v5161 = vsel %vm5125, %v3269, 0.0
      %v5162 = vsel %vm5126, %v3270, 0.0
      %v5163 = vsel %vm5127, %v3271, 0.0
      %v5164 = vsel %vm5128, %v3272, 0.0
      %v5165 = vsel %vm5129, %v3273, 0.0
      %v5166 = vadd.f32 %v5130, %v5131
      %v5167 = vadd.f32 %v5166, %v5132
      %v5168 = vadd.f32 %v5167, %v5133
      %v5169 = vadd.f32 %v5168, %v5134
      %v5170 = vadd.f32 %v5169, %v5135
      %v5171 = vadd.f32 %v5170, %v5136
      %v5172 = vadd.f32 %v5171, %v5137
      %v5173 = vadd.f32 %v5172, %v5138
      %v5174 = vadd.f32 %v5173, %v5139
      %v5175 = vadd.f32 %v5174, %v5140
      %v5176 = vadd.f32 %v5175, %v5141
      %v5177 = vadd.f32 %v5176, %v5142
      %v5178 = vadd.f32 %v5177, %v5143
      %v5179 = vadd.f32 %v5178, %v5144
      %v5180 = vadd.f32 %v5179, %v5145
      %v5181 = vadd.f32 %v5180, %v5146
      %v5182 = vadd.f32 %v5181, %v5147
      %v5183 = vadd.f32 %v5182, %v5148
      %v5184 = vadd.f32 %v5183, %v5149
      %v5185 = vadd.f32 %v5184, %v5150
      %v5186 = vadd.f32 %v5185, %v5151
      %v5187 = vadd.f32 %v5186, %v5152
      %v5188 = vadd.f32 %v5187, %v5153
      %v5189 = vadd.f32 %v5188, %v5154
      %v5190 = vadd.f32 %v5189, %v5155
      %v5191 = vadd.f32 %v5190, %v5156
      %v5192 = vadd.f32 %v5191, %v5157
      %v5193 = vadd.f32 %v5192, %v5158
      %v5194 = vadd.f32 %v5193, %v5159
      %v5195 = vadd.f32 %v5194, %v5160
      %v5196 = vadd.f32 %v5195, %v5161
      %v5197 = vadd.f32 %v5196, %v5162
      %v5198 = vadd.f32 %v5197, %v5163
      %v5199 = vadd.f32 %v5198, %v5164
      %v5200 = vadd.f32 %v5199, %v5165
      %v5201 = vrot.slane %v5200, 4
      %v5202 = vadd.f32 %v5200, %v5201
      %v5203 = vrot.slane %v5202, 2
      %v5204 = vadd.f32 %v5202, %v5203
      %v5205 = vrot.slane %v5204, 1
      %v5206 = vadd.f32 %v5204, %v5205
      %v5207 = vmul.f32 %v5130, %v5130
      %v5208 = vmul.f32 %v5131, %v5131
      %v5209 = vmul.f32 %v5132, %v5132
      %v5210 = vmul.f32 %v5133, %v5133
      %v5211 = vmul.f32 %v5134, %v5134
      %v5212 = vmul.f32 %v5135, %v5135
      %v5213 = vmul.f32 %v5136, %v5136
      %v5214 = vmul.f32 %v5137, %v5137
      %v5215 = vmul.f32 %v5138, %v5138
      %v5216 = vmul.f32 %v5139, %v5139
      %v5217 = vmul.f32 %v5140, %v5140
      %v5218 = vmul.f32 %v5141, %v5141
      %v5219 = vmul.f32 %v5142, %v5142
      %v5220 = vmul.f32 %v5143, %v5143
      %v5221 = vmul.f32 %v5144, %v5144
      %v5222 = vmul.f32 %v5145, %v5145
      %v5223 = vmul.f32 %v5146, %v5146
      %v5224 = vmul.f32 %v5147, %v5147
      %v5225 = vmul.f32 %v5148, %v5148
      %v5226 = vmul.f32 %v5149, %v5149
      %v5227 = vmul.f32 %v5150, %v5150
      %v5228 = vmul.f32 %v5151, %v5151
      %v5229 = vmul.f32 %v5152, %v5152
      %v5230 = vmul.f32 %v5153, %v5153
      %v5231 = vmul.f32 %v5154, %v5154
      %v5232 = vmul.f32 %v5155, %v5155
      %v5233 = vmul.f32 %v5156, %v5156
      %v5234 = vmul.f32 %v5157, %v5157
      %v5235 = vmul.f32 %v5158, %v5158
      %v5236 = vmul.f32 %v5159, %v5159
      %v5237 = vmul.f32 %v5160, %v5160
      %v5238 = vmul.f32 %v5161, %v5161
      %v5239 = vmul.f32 %v5162, %v5162
      %v5240 = vmul.f32 %v5163, %v5163
      %v5241 = vmul.f32 %v5164, %v5164
      %v5242 = vmul.f32 %v5165, %v5165
      %v5243 = vadd.f32 %v5207, %v5208
      %v5244 = vadd.f32 %v5243, %v5209
      %v5245 = vadd.f32 %v5244, %v5210
      %v5246 = vadd.f32 %v5245, %v5211
      %v5247 = vadd.f32 %v5246, %v5212
      %v5248 = vadd.f32 %v5247, %v5213
      %v5249 = vadd.f32 %v5248, %v5214
      %v5250 = vadd.f32 %v5249, %v5215
      %v5251 = vadd.f32 %v5250, %v5216
      %v5252 = vadd.f32 %v5251, %v5217
      %v5253 = vadd.f32 %v5252, %v5218
      %v5254 = vadd.f32 %v5253, %v5219
      %v5255 = vadd.f32 %v5254, %v5220
      %v5256 = vadd.f32 %v5255, %v5221
      %v5257 = vadd.f32 %v5256, %v5222
      %v5258 = vadd.f32 %v5257, %v5223
      %v5259 = vadd.f32 %v5258, %v5224
      %v5260 = vadd.f32 %v5259, %v5225
      %v5261 = vadd.f32 %v5260, %v5226
      %v5262 = vadd.f32 %v5261, %v5227
      %v5263 = vadd.f32 %v5262, %v5228
      %v5264 = vadd.f32 %v5263, %v5229
      %v5265 = vadd.f32 %v5264, %v5230
      %v5266 = vadd.f32 %v5265, %v5231
      %v5267 = vadd.f32 %v5266, %v5232
      %v5268 = vadd.f32 %v5267, %v5233
      %v5269 = vadd.f32 %v5268, %v5234
      %v5270 = vadd.f32 %v5269, %v5235
      %v5271 = vadd.f32 %v5270, %v5236
      %v5272 = vadd.f32 %v5271, %v5237
      %v5273 = vadd.f32 %v5272, %v5238
      %v5274 = vadd.f32 %v5273, %v5239
      %v5275 = vadd.f32 %v5274, %v5240
      %v5276 = vadd.f32 %v5275, %v5241
      %v5277 = vadd.f32 %v5276, %v5242
      %v5278 = vrot.slane %v5277, 4
      %v5279 = vadd.f32 %v5277, %v5278
      %v5280 = vrot.slane %v5279, 2
      %v5281 = vadd.f32 %v5279, %v5280
      %v5282 = vrot.slane %v5281, 1
      %v5283 = vadd.f32 %v5281, %v5282
      %vm5284 = vcmask 1040384
      %v5285 = vsel %vm5284, %v5206, %v5283
      %5286 = vst [vmem:[%s255] sm:$0x3] %v5285
      %s5287 = smul.u32 16, %s21
      %p5288 = scmp.lt.s32.totalorder %s20, 1
      %s5289 = scalar_select %p5288, %s20, 1
      %p5290 = scmp.lt.s32.totalorder %s5287, 15
      %s5291 = scalar_select %p5290, %s5287, 15
      %s5292 = smul.addr %s5291, 3
      %s5293 = smul.addr %s5289, 48
      %s5294 = sadd.s32 %s5292, %s5293
      %s5295 = smul.addr %s5294, 4
      %s5296 = scalar_lea.vmem %s3, %s5295
      %p5297 = scmp.lt.s32.totalorder %s20, 1
      %s5298 = scalar_select %p5297, %s20, 1
      %p5299 = scmp.lt.s32.totalorder %s21, 0
      %s5300 = scalar_select %p5299, %s21, 0
      %s5301 = sadd.s32 %s5300, %s5298
      %s5302 = smul.addr %s5301, 2
      %s5303 = scalar_lea.vmem %s4, %s5302
      // Predicated region
      $region33: #{decoder_block_forward.4} parent=31 // pred_check
        %p5304 = pneg %p118
      $region34: #{decoder_block_forward.4} parent=31 // pred_check_branch
        %5306 = sbr.rel (%p5304) target = $region36
      $region35: #{decoder_block_forward.4} parent=31 // pred_region
        %s5307 = smul.u32 16, %s21
      $region36: #{decoder_block_forward.4} parent=31 // pred_fallthru
        _
      // Predicated region
      $region37: #{decoder_block_forward.4} parent=31 // pred_check
        %p5308 = pneg %p146
      $region38: #{decoder_block_forward.4} parent=31 // pred_check_branch
        %5310 = sbr.rel (%p5308) target = $region40
      $region39: #{decoder_block_forward.4} parent=31 // pred_region
        _
      $region40: #{decoder_block_forward.4} parent=31 // pred_fallthru
        _
    $region32: #{decoder_block_forward.4} parent=5 // pred_fallthru
      _
    %p5311 = scmp.le.s32.totalorder 2, %s11
    // Predicated region
    $region41: #{decoder_block_forward.4} parent=5 // pred_check
      %p5312 = pneg %p5311
    $region42: #{decoder_block_forward.4} parent=5 // pred_check_branch
      %5314 = sbr.rel (%p5312) target = $region44
    $region43: #{decoder_block_forward.4} parent=5 // pred_region
      %s5315 = ssub.s32 %s11, 2
      // Predicated region
      $region45: #{decoder_block_forward.4} parent=43 // pred_check
        %p5316 = pneg %p124
      $region46: #{decoder_block_forward.4} parent=43 // pred_check_branch
        %5318 = sbr.rel (%p5316) target = $region48
      $region47: #{decoder_block_forward.4} parent=43 // pred_region
        %s5319 = smul.u32 16, %s23
        %p5320 = scmp.lt.s32.totalorder %s22, 1
        %s5321 = scalar_select %p5320, %s22, 1
        %p5322 = scmp.lt.s32.totalorder %s5319, 15
        %s5323 = scalar_select %p5322, %s5319, 15
        %s5324 = smul.addr %s5323, 3
        %s5325 = smul.addr %s5321, 48
        %s5326 = sadd.s32 %s5324, %s5325
        %s5327 = smul.addr %s5326, 4
        %s5328 = scalar_lea.vmem %s3, %s5327
      $region48: #{decoder_block_forward.4} parent=43 // pred_fallthru
        _
      // Predicated region
      $region49: #{decoder_block_forward.4} parent=43 // pred_check
        %p5329 = pneg %p152
      $region50: #{decoder_block_forward.4} parent=43 // pred_check_branch
        %5331 = sbr.rel (%p5329) target = $region52
      $region51: #{decoder_block_forward.4} parent=43 // pred_region
        %p5332 = scmp.lt.s32.totalorder %s22, 1
        %s5333 = scalar_select %p5332, %s22, 1
        %p5334 = scmp.lt.s32.totalorder %s23, 0
        %s5335 = scalar_select %p5334, %s23, 0
        %s5336 = sadd.s32 %s5335, %s5333
        %s5337 = smul.addr %s5336, 2
        %s5338 = scalar_lea.vmem %s4, %s5337
      $region52: #{decoder_block_forward.4} parent=43 // pred_fallthru
        _
    $region44: #{decoder_block_forward.4} parent=5 // pred_fallthru
      _
  $region6: #{decoder_block_forward.4} parent=0 // loop_footer
    %s15 = sadd.s32 1, %s11
  $region7: #{decoder_block_forward.4} parent=0 // loop_footer_branch
    %10 = sbr.rel target = $region3
  $region8: #{decoder_block_forward.4} parent=0 // loop_exit
    _

</llo_original>
